<compile_context>
chip_gen: v6e
topology: v6e:2x2x1
jax: 0.10.0
libtpu: 0.0.40
codegen_flags: <defaults>
</compile_context>

<pallas_src>
import functools
import math

import jax
import jax.numpy as jnp
from jax.experimental import pallas as pl
from jax.experimental.pallas import tpu as pltpu

_LANE = 128   # each (gate, rule) unit block is padded to one full vreg lane width
_SUB = 8      # batch is padded to a full sublane tile


def _round_up(x, m):
    return ((x + m - 1) // m) * m


def _small_pack_layout(in_dim, enc_dim, hidden_p):
    """Row offsets of the packed 'small weights' buffer (width = hidden_p lanes)."""
    in_p = _round_up(in_dim, _SUB)
    be1, be2, bd1, bd2 = 0, 1, 2, 3
    we1 = _SUB
    we2 = we1 + in_p
    wd1 = we2 + _round_up(enc_dim, _SUB)
    wd2 = wd1 + hidden_p
    rows = wd2 + hidden_p
    return dict(in_p=in_p, be1=be1, be2=be2, bd1=bd1, bd2=bd2,
                we1=we1, we2=we2, wd1=wd1, wd2=wd2, rows=rows)


# ----------------------------- fused forward kernel -----------------------------
def _fused_model_kernel(x_ref, small_ref, rnn_ref, out_ref, sc_ref, *,
                        seq, batch_p, num_rules, hidden_p, in_dim, enc_dim, out_dim):
    S, Bp, R, Hp, E = seq, batch_p, num_rules, hidden_p, enc_dim
    GW = R * Hp              # one gate group: R rule blocks of Hp lanes each
    W = 4 * GW               # i2h / h2h width (gate-major: [i | f | o | g])
    f32 = jnp.float32
    L = _small_pack_layout(in_dim, E, Hp)

    # ---- unpack weights (static slices of the two packed VMEM buffers) ----
    be1 = small_ref[L["be1"]:L["be1"] + 1, 0:E]
    be2 = small_ref[L["be2"]:L["be2"] + 1, 0:E]
    bd1 = small_ref[L["bd1"]:L["bd1"] + 1, 0:Hp]
    bd2 = small_ref[L["bd2"]:L["bd2"] + 1, 0:out_dim]
    we1 = small_ref[L["we1"]:L["we1"] + L["in_p"], 0:E]
    we2 = small_ref[L["we2"]:L["we2"] + E, 0:E]
    wd1 = small_ref[L["wd1"]:L["wd1"] + Hp, 0:Hp]
    wd2 = small_ref[L["wd2"]:L["wd2"] + Hp, 0:out_dim]

    wi = rnn_ref[0:E, :]                          # (E, W)   i2h, gate-major, 128-padded blocks
    wh = rnn_ref[E:E + Hp, :]                     # (Hp, W)  h2h
    wsi = rnn_ref[E + Hp:E + Hp + 1, :]           # (1, W)   scorer weights (i2h half)
    wsh = rnn_ref[E + Hp + 1:E + Hp + 2, :]       # (1, W)   scorer weights (h2h half)

    # ---- encoder over all S*Bp tokens (two GEMMs, hoisted out of the recurrence) ----
    x = x_ref[...]
    e1 = jnp.maximum(jnp.dot(x, we1, preferred_element_type=f32) + be1, 0.0)
    enc = jnp.dot(e1, we2, preferred_element_type=f32) + be2             # (S*Bp, E)

    # ---- i2h projection for all timesteps & rules (hoisted; one GEMM) ----
    ih_all = jnp.dot(enc, wi, preferred_element_type=f32)                # (S*Bp, W)

    # scorer logits = GroupLinear(relu(cat(i_h, h_h))): VPU multiply by the broadcast weight
    # row + aligned gate-block adds + one per-rule single-vreg lane reduction (no MXU).
    def rule_logits(act, wrow):
        t = jnp.maximum(act, 0.0) * wrow
        g = (t[:, 0 * GW:1 * GW] + t[:, 1 * GW:2 * GW]
             + t[:, 2 * GW:3 * GW] + t[:, 3 * GW:4 * GW])                # (rows, R*Hp)
        return [jnp.sum(g[:, r * Hp:(r + 1) * Hp], axis=-1, keepdims=True) for r in range(R)]

    si_all = rule_logits(ih_all, wsi)             # i2h half of the logits, hoisted: R x (S*Bp, 1)

    h = jnp.zeros((Bp, Hp), f32)
    c = jnp.zeros((Bp, Hp), f32)
    h_steps = []
    sc_steps = [[] for _ in range(R)]

    # S is small & static: fully unrolled; only h2h GEMM + pointwise gate math are serial.
    for t in range(S):
        r0 = t * Bp
        ih_t = ih_all[r0:r0 + Bp, :]                                     # (Bp, W), aligned
        hh_t = jnp.dot(h, wh, preferred_element_type=f32)                # (Bp, W)

        # --- rule scores: exact softmax over R per-rule scalar logits (no cross-lane ops) ---
        sh = rule_logits(hh_t, wsh)
        logit = [si_all[r][r0:r0 + Bp, :] + sh[r] for r in range(R)]     # R x (Bp, 1)
        m = logit[0]
        for r in range(1, R):
            m = jnp.maximum(m, logit[r])
        ex = [jnp.exp(logit[r] - m) for r in range(R)]
        den = ex[0]
        for r in range(1, R):
            den = den + ex[r]
        score = [ex[r] / den for r in range(R)]                          # exact divide (torch parity)

        # --- gates: every (gate, rule) slice is a whole 128-lane group (no relayout) ---
        preact = ih_t + hh_t
        sig = jax.nn.sigmoid(preact[:, :3 * GW])                         # [i | f | o]
        tg = jnp.tanh(preact[:, 3 * GW:])                                # g
        h_new = jnp.zeros((Bp, Hp), f32)
        c_new = jnp.zeros((Bp, Hp), f32)
        for r in range(R):
            i_r = sig[:, 0 * GW + r * Hp: 0 * GW + (r + 1) * Hp]
            f_r = sig[:, 1 * GW + r * Hp: 1 * GW + (r + 1) * Hp]
            o_r = sig[:, 2 * GW + r * Hp: 2 * GW + (r + 1) * Hp]
            g_r = tg[:, r * Hp:(r + 1) * Hp]
            c_r = c * f_r + i_r * g_r                                    # shared carry (as in torch)
            h_r = o_r * jnp.tanh(c_r)
            c_new = c_new + c_r * score[r]
            h_new = h_new + h_r * score[r]
        h, c = h_new, c_new
        h_steps.append(h)
        for r in range(R):
            sc_steps[r].append(score[r])

    # ---- decoder over all S*Bp hidden states (two GEMMs, hoisted) ----
    h_all = jnp.concatenate(h_steps, axis=0)                             # (S*Bp, Hp)
    d1 = jnp.maximum(jnp.dot(h_all, wd1, preferred_element_type=f32) + bd1, 0.0)
    out_ref[...] = jnp.dot(d1, wd2, preferred_element_type=f32) + bd2    # single store

    sc_cols = [jnp.concatenate(sc_steps[r], axis=0) for r in range(R)]   # R x (S*Bp, 1)
    sc_ref[...] = jnp.concatenate(sc_cols, axis=-1)                      # single store


# ----------------------------- Model ('Modular' variant) -----------------------------
def modular_hidden_dim(enc_dim, hid_dim, num_rules):
    hid_new = (4 * num_rules * enc_dim + 1) ** 2
    hid_new += 4 * (4 * num_rules + 1) * (5 * hid_dim * hid_dim + hid_dim * (4 * enc_dim + 1))
    hid_new = math.sqrt(hid_new) - (4 * num_rules * enc_dim + 1)
    hid_new /= 2 * (4 * num_rules + 1)
    return int(hid_new)


def init_params(key, in_dim, enc_dim, hid_dim, out_dim, num_rules):
    H = modular_hidden_dim(enc_dim, hid_dim, num_rules)
    R = num_rules
    ks = jax.random.split(key, 11)

    def u(k, shape, fan_in):
        b = 1.0 / math.sqrt(fan_in)
        return jax.random.uniform(k, shape, jnp.float32, -b, b)

    params = {
        # encoder: Linear(in,enc) + ReLU + Linear(enc,enc)  (bias=True)
        "we1": u(ks[0], (in_dim, enc_dim), in_dim),
        "be1": u(ks[1], (1, enc_dim), in_dim),
        "we2": u(ks[2], (enc_dim, enc_dim), enc_dim),
        "be2": u(ks[3], (1, enc_dim), enc_dim),
        # GroupLSTMCell (bias=False): i2h Linear(enc, 4*R*H), h2h Linear(H, 4*R*H)
        # columns ordered (rule, gate[i,f,o,g], unit) -- torch reference layout.
        "wi": u(ks[4], (enc_dim, 4 * R * H), enc_dim),
        "wh": u(ks[5], (H, 4 * R * H), H),
        # scorer GroupLinearLayer(R, 8H, 1, bias=False): (R, 8H) = [i_h part (4H) | h_h part (4H)]
        "ws": u(ks[6], (R, 8 * H), 8 * H),
        # decoder: Linear(H,H) + ReLU + Linear(H,out)  (bias=True)
        "wd1": u(ks[7], (H, H), H),
        "bd1": u(ks[8], (1, H), H),
        "wd2": u(ks[9], (H, out_dim), H),
        "bd2": u(ks[10], (1, out_dim), H),
    }
    return params, H


def model_forward(params, x, op, *, num_rules, hidden):
    """Model(model='Modular', op=False).forward(x, op).
       x: (B, S, in_dim); op: (B, S, num_rules) (unused in this config, as in torch).
       Returns (out: (B, S, out_dim), scores: (B, S, num_rules, 1))."""
    del op  # Modular with op=False computes the score from cat(i_h, h_h)
    B, S, in_dim = x.shape
    H, R = hidden, num_rules
    Hp = _LANE
    Bp = _round_up(B, _SUB)
    E = params["we1"].shape[1]
    out_dim = params["wd2"].shape[1]
    L = _small_pack_layout(in_dim, E, Hp)

    # --- time-major input, batch padded to a full sublane tile, in_dim padded to 8 ---
    xt = jnp.transpose(x, (1, 0, 2))
    x_tm = jnp.pad(xt, ((0, 0), (0, Bp - B), (0, L["in_p"] - in_dim))).reshape(S * Bp, L["in_p"])

    # --- one-time weight layout prep: gate-major columns, every (gate, rule) block padded
    #     to a full 128-lane group; decoder padded to Hp; everything packed into 2 buffers ---
    def gate_major(w):        # (rows, 4*R*H) torch (rule,gate,unit) -> (rows, 4*R*Hp) (gate,rule,unit_pad)
        rows = w.shape[0]
        w4 = w.reshape(rows, R, 4, H).transpose(0, 2, 1, 3)               # (rows, 4, R, H)
        return jnp.pad(w4, ((0, 0), (0, 0), (0, 0), (0, Hp - H))).reshape(rows, 4 * R * Hp)

    def scorer_row(w_part):   # (R, 4H) (gate,unit) -> (1, 4*R*Hp)
        w4 = w_part.reshape(R, 4, H).transpose(1, 0, 2)                   # (4, R, H)
        return jnp.pad(w4, ((0, 0), (0, 0), (0, Hp - H))).reshape(1, 4 * R * Hp)

    wi_gm = gate_major(params["wi"])                                      # (E, 4*R*Hp)
    wh_gm = jnp.pad(gate_major(params["wh"]), ((0, Hp - H), (0, 0)))      # (Hp, 4*R*Hp)
    wsi_row = scorer_row(params["ws"][:, :4 * H])
    wsh_row = scorer_row(params["ws"][:, 4 * H:])
    rnn_pack = jnp.concatenate([wi_gm, wh_gm, wsi_row, wsh_row], axis=0)  # (E+Hp+2, 4*R*Hp)

    small_pack = jnp.zeros((L["rows"], Hp), jnp.float32)
    small_pack = small_pack.at[L["be1"], :E].set(params["be1"][0])
    small_pack = small_pack.at[L["be2"], :E].set(params["be2"][0])
    small_pack = small_pack.at[L["bd1"], :H].set(params["bd1"][0])
    small_pack = small_pack.at[L["bd2"], :out_dim].set(params["bd2"][0])
    small_pack = small_pack.at[L["we1"]:L["we1"] + in_dim, :E].set(params["we1"])
    small_pack = small_pack.at[L["we2"]:L["we2"] + E, :E].set(params["we2"])
    small_pack = small_pack.at[L["wd1"]:L["wd1"] + H, :H].set(params["wd1"])
    small_pack = small_pack.at[L["wd2"]:L["wd2"] + H, :out_dim].set(params["wd2"])

    kernel = functools.partial(_fused_model_kernel, seq=S, batch_p=Bp, num_rules=R,
                               hidden_p=Hp, in_dim=in_dim, enc_dim=E, out_dim=out_dim)
    vmem = lambda: pl.BlockSpec(memory_space=pltpu.MemorySpace.VMEM)
    dec2d, sc2d = pl.pallas_call(
        kernel,
        in_specs=[vmem(), vmem(), vmem()],
        out_specs=[vmem(), vmem()],
        out_shape=[jax.ShapeDtypeStruct((S * Bp, out_dim), jnp.float32),
                   jax.ShapeDtypeStruct((S * Bp, R), jnp.float32)],
    )(x_tm, small_pack, rnn_pack)

    out = dec2d.reshape(S, Bp, out_dim)[:, :B].transpose(1, 0, 2)         # (B, S, out_dim)
    scores = sc2d.reshape(S, Bp, R)[:, :B].transpose(1, 0, 2)[..., None]  # (B, S, R, 1)
    return out, scores


# ----------------------------- pure-JAX reference (torch semantics) -----------------------------
def model_forward_ref(params, x, op, *, num_rules, hidden):
    del op
    B, S, _ = x.shape
    H, R = hidden, num_rules
    enc = jnp.maximum(x @ params["we1"] + params["be1"][0], 0.0) @ params["we2"] + params["be2"][0]
    h = jnp.zeros((B, H), jnp.float32)
    c = jnp.zeros((B, H), jnp.float32)
    outs, scs = [], []
    for t in range(S):
        xt = enc[:, t, :]
        i_h = (xt @ params["wi"]).reshape(B, R, 4 * H)
        h_h = (h @ params["wh"]).reshape(B, R, 4 * H)
        cat = jnp.concatenate([i_h, h_h], axis=-1)
        logits = jnp.einsum("brj,rj->br", jnp.maximum(cat, 0.0), params["ws"])
        score = jax.nn.softmax(logits, axis=1)[..., None]
        preact = i_h + h_h
        gates = jax.nn.sigmoid(preact[..., :3 * H])
        g_t = jnp.tanh(preact[..., 3 * H:])
        i_t, f_t, o_t = gates[..., :H], gates[..., H:2 * H], gates[..., 2 * H:3 * H]
        c_t = c[:, None, :] * f_t + i_t * g_t
        h_t = o_t * jnp.tanh(c_t)
        h = (h_t * score).sum(axis=1)
        c = (c_t * score).sum(axis=1)
        outs.append(h)
        scs.append(score)
    out = jnp.stack(outs)                                                 # (S, B, H)
    out = jnp.maximum(out @ params["wd1"] + params["bd1"][0], 0.0) @ params["wd2"] + params["bd2"][0]
    out = jnp.transpose(out, (1, 0, 2))
    scores = jnp.transpose(jnp.stack(scs), (1, 0, 2, 3))
    return out, scores


if __name__ == "__main__":
    in_dim, enc_dim, hid_dim, out_dim, num_rules = 6, 16, 32, 4, 2
    batch, seq = 4, 8

    key = jax.random.PRNGKey(0)
    kp, kx, kop = jax.random.split(key, 3)
    params, H = init_params(kp, in_dim, enc_dim, hid_dim, out_dim, num_rules)

    x = jax.random.normal(kx, (batch, seq, in_dim), jnp.float32)
    op = jax.random.normal(kop, (batch, seq, num_rules), jnp.float32)

    fwd = jax.jit(functools.partial(model_forward, num_rules=num_rules, hidden=H))
    out, scores = fwd(params, x, op)
    jax.block_until_ready((out, scores))

    ref = jax.jit(functools.partial(model_forward_ref, num_rules=num_rules, hidden=H))
    ref_out, ref_sc = ref(params, x, op)
    jax.block_until_ready((ref_out, ref_sc))

    assert out.shape == (batch, seq, out_dim)
    assert scores.shape == (batch, seq, num_rules, 1)
    assert bool(jnp.all(jnp.isfinite(out))) and bool(jnp.all(jnp.isfinite(scores)))
    assert bool(jnp.allclose(scores.sum(axis=2), 1.0, atol=1e-5))
    assert float(jnp.max(jnp.abs(out - ref_out))) < 2e-2
    assert float(jnp.max(jnp.abs(scores - ref_sc))) < 2e-2
    print("KERNEL_OK")
</pallas_src>

<mosaic_0001>
module attributes {stable_mosaic.version = 11 : i64} {
  func.func @_fused_model_kernel(%arg0: memref<64x8xf32, #tpu.memory_space<vmem>>, %arg1: memref<288x128xf32, #tpu.memory_space<vmem>>, %arg2: memref<146x1024xf32, #tpu.memory_space<vmem>>, %arg3: memref<64x4xf32, #tpu.memory_space<vmem>>, %arg4: memref<64x2xf32, #tpu.memory_space<vmem>>) attributes {dimension_semantics = [], scalar_prefetch = 0 : i64, scratch_operands = 0 : i64, tpu.core_type = #tpu.core_type<tc>} {
    %c0 = arith.constant 0 : index
    %c0_0 = arith.constant 0 : index
    %0 = vector.load %arg1[%c0, %c0_0] : memref<288x128xf32, #tpu.memory_space<vmem>>, vector<1x16xf32>
    %c1 = arith.constant 1 : index
    %c0_1 = arith.constant 0 : index
    %1 = vector.load %arg1[%c1, %c0_1] : memref<288x128xf32, #tpu.memory_space<vmem>>, vector<1x16xf32>
    %c2 = arith.constant 2 : index
    %c0_2 = arith.constant 0 : index
    %2 = vector.load %arg1[%c2, %c0_2] : memref<288x128xf32, #tpu.memory_space<vmem>>, vector<1x128xf32>
    %c3 = arith.constant 3 : index
    %c0_3 = arith.constant 0 : index
    %3 = vector.load %arg1[%c3, %c0_3] : memref<288x128xf32, #tpu.memory_space<vmem>>, vector<1x4xf32>
    %c8 = arith.constant 8 : index
    %c0_4 = arith.constant 0 : index
    %4 = vector.load %arg1[%c8, %c0_4] : memref<288x128xf32, #tpu.memory_space<vmem>>, vector<8x16xf32>
    %c16 = arith.constant 16 : index
    %c0_5 = arith.constant 0 : index
    %5 = vector.load %arg1[%c16, %c0_5] : memref<288x128xf32, #tpu.memory_space<vmem>>, vector<16x16xf32>
    %c32 = arith.constant 32 : index
    %c0_6 = arith.constant 0 : index
    %6 = vector.load %arg1[%c32, %c0_6] : memref<288x128xf32, #tpu.memory_space<vmem>>, vector<128x128xf32>
    %c160 = arith.constant 160 : index
    %c0_7 = arith.constant 0 : index
    %7 = vector.load %arg1[%c160, %c0_7] : memref<288x128xf32, #tpu.memory_space<vmem>>, vector<128x4xf32>
    %c0_8 = arith.constant 0 : index
    %c0_9 = arith.constant 0 : index
    %8 = vector.load %arg2[%c0_8, %c0_9] : memref<146x1024xf32, #tpu.memory_space<vmem>>, vector<16x1024xf32>
    %c16_10 = arith.constant 16 : index
    %c0_11 = arith.constant 0 : index
    %9 = vector.load %arg2[%c16_10, %c0_11] : memref<146x1024xf32, #tpu.memory_space<vmem>>, vector<128x1024xf32>
    %c144 = arith.constant 144 : index
    %c0_12 = arith.constant 0 : index
    %10 = vector.load %arg2[%c144, %c0_12] : memref<146x1024xf32, #tpu.memory_space<vmem>>, vector<1x1024xf32>
    %c145 = arith.constant 145 : index
    %c0_13 = arith.constant 0 : index
    %11 = vector.load %arg2[%c145, %c0_13] : memref<146x1024xf32, #tpu.memory_space<vmem>>, vector<1x1024xf32>
    %c0_14 = arith.constant 0 : index
    %c0_15 = arith.constant 0 : index
    %12 = vector.load %arg0[%c0_14, %c0_15] : memref<64x8xf32, #tpu.memory_space<vmem>>, vector<64x8xf32>
    %cst = arith.constant dense<0.000000e+00> : vector<64x16xf32>
    %13 = tpu.matmul %12, %4, %cst {dimension_numbers = #tpu.dot_dimension_numbers<[1], [0], [0], [1], [0, 0, 1, 1], [], []>} : vector<64x8xf32>, vector<8x16xf32>, vector<64x16xf32> -> vector<64x16xf32>
    %14 = vector.broadcast %0 : vector<1x16xf32> to vector<64x16xf32>
    %15 = arith.addf %13, %14 : vector<64x16xf32>
    %cst_16 = arith.constant 0.000000e+00 : f32
    %16 = vector.broadcast %cst_16 : f32 to vector<64x16xf32>
    %17 = arith.maximumf %15, %16 : vector<64x16xf32>
    %cst_17 = arith.constant dense<0.000000e+00> : vector<64x16xf32>
    %18 = tpu.matmul %17, %5, %cst_17 {dimension_numbers = #tpu.dot_dimension_numbers<[1], [0], [0], [1], [0, 0, 1, 1], [], []>} : vector<64x16xf32>, vector<16x16xf32>, vector<64x16xf32> -> vector<64x16xf32>
    %19 = vector.broadcast %1 : vector<1x16xf32> to vector<64x16xf32>
    %20 = arith.addf %18, %19 : vector<64x16xf32>
    %cst_18 = arith.constant dense<0.000000e+00> : vector<64x1024xf32>
    %21 = tpu.matmul %20, %8, %cst_18 {dimension_numbers = #tpu.dot_dimension_numbers<[1], [0], [0], [1], [0, 0, 1, 1], [], []>} : vector<64x16xf32>, vector<16x1024xf32>, vector<64x1024xf32> -> vector<64x1024xf32>
    %cst_19 = arith.constant 0.000000e+00 : f32
    %22 = vector.broadcast %cst_19 : f32 to vector<64x1024xf32>
    %23 = arith.maximumf %21, %22 : vector<64x1024xf32>
    %24 = vector.broadcast %10 : vector<1x1024xf32> to vector<64x1024xf32>
    %25 = arith.mulf %23, %24 : vector<64x1024xf32>
    %26 = vector.extract_strided_slice %25 {offsets = [0, 0], sizes = [64, 256], strides = [1, 1]} : vector<64x1024xf32> to vector<64x256xf32>
    %27 = vector.extract_strided_slice %25 {offsets = [0, 256], sizes = [64, 256], strides = [1, 1]} : vector<64x1024xf32> to vector<64x256xf32>
    %28 = arith.addf %26, %27 : vector<64x256xf32>
    %29 = vector.extract_strided_slice %25 {offsets = [0, 512], sizes = [64, 256], strides = [1, 1]} : vector<64x1024xf32> to vector<64x256xf32>
    %30 = arith.addf %28, %29 : vector<64x256xf32>
    %31 = vector.extract_strided_slice %25 {offsets = [0, 768], sizes = [64, 256], strides = [1, 1]} : vector<64x1024xf32> to vector<64x256xf32>
    %32 = arith.addf %30, %31 : vector<64x256xf32>
    %33 = vector.extract_strided_slice %32 {offsets = [0, 0], sizes = [64, 128], strides = [1, 1]} : vector<64x256xf32> to vector<64x128xf32>
    %cst_20 = arith.constant dense<0.000000e+00> : vector<64xf32>
    %34 = vector.multi_reduction <add>, %33, %cst_20 [1] : vector<64x128xf32> to vector<64xf32>
    %35 = vector.shape_cast %34 : vector<64xf32> to vector<64x1xf32>
    %36 = vector.extract_strided_slice %32 {offsets = [0, 128], sizes = [64, 128], strides = [1, 1]} : vector<64x256xf32> to vector<64x128xf32>
    %cst_21 = arith.constant dense<0.000000e+00> : vector<64xf32>
    %37 = vector.multi_reduction <add>, %36, %cst_21 [1] : vector<64x128xf32> to vector<64xf32>
    %38 = vector.shape_cast %37 : vector<64xf32> to vector<64x1xf32>
    %cst_22 = arith.constant 0.000000e+00 : f32
    %39 = vector.broadcast %cst_22 : f32 to vector<8x128xf32>
    %cst_23 = arith.constant 0.000000e+00 : f32
    %40 = vector.broadcast %cst_23 : f32 to vector<8x128xf32>
    %41 = vector.extract_strided_slice %21 {offsets = [0, 0], sizes = [8, 1024], strides = [1, 1]} : vector<64x1024xf32> to vector<8x1024xf32>
    %cst_24 = arith.constant dense<0.000000e+00> : vector<8x1024xf32>
    %42 = tpu.matmul %39, %9, %cst_24 {dimension_numbers = #tpu.dot_dimension_numbers<[1], [0], [0], [1], [0, 0, 1, 1], [], []>} : vector<8x128xf32>, vector<128x1024xf32>, vector<8x1024xf32> -> vector<8x1024xf32>
    %cst_25 = arith.constant 0.000000e+00 : f32
    %43 = vector.broadcast %cst_25 : f32 to vector<8x1024xf32>
    %44 = arith.maximumf %42, %43 : vector<8x1024xf32>
    %45 = vector.broadcast %11 : vector<1x1024xf32> to vector<8x1024xf32>
    %46 = arith.mulf %44, %45 : vector<8x1024xf32>
    %47 = vector.extract_strided_slice %46 {offsets = [0, 0], sizes = [8, 256], strides = [1, 1]} : vector<8x1024xf32> to vector<8x256xf32>
    %48 = vector.extract_strided_slice %46 {offsets = [0, 256], sizes = [8, 256], strides = [1, 1]} : vector<8x1024xf32> to vector<8x256xf32>
    %49 = arith.addf %47, %48 : vector<8x256xf32>
    %50 = vector.extract_strided_slice %46 {offsets = [0, 512], sizes = [8, 256], strides = [1, 1]} : vector<8x1024xf32> to vector<8x256xf32>
    %51 = arith.addf %49, %50 : vector<8x256xf32>
    %52 = vector.extract_strided_slice %46 {offsets = [0, 768], sizes = [8, 256], strides = [1, 1]} : vector<8x1024xf32> to vector<8x256xf32>
    %53 = arith.addf %51, %52 : vector<8x256xf32>
    %54 = vector.extract_strided_slice %53 {offsets = [0, 0], sizes = [8, 128], strides = [1, 1]} : vector<8x256xf32> to vector<8x128xf32>
    %cst_26 = arith.constant dense<0.000000e+00> : vector<8xf32>
    %55 = vector.multi_reduction <add>, %54, %cst_26 [1] : vector<8x128xf32> to vector<8xf32>
    %56 = vector.shape_cast %55 : vector<8xf32> to vector<8x1xf32>
    %57 = vector.extract_strided_slice %53 {offsets = [0, 128], sizes = [8, 128], strides = [1, 1]} : vector<8x256xf32> to vector<8x128xf32>
    %cst_27 = arith.constant dense<0.000000e+00> : vector<8xf32>
    %58 = vector.multi_reduction <add>, %57, %cst_27 [1] : vector<8x128xf32> to vector<8xf32>
    %59 = vector.shape_cast %58 : vector<8xf32> to vector<8x1xf32>
    %60 = vector.extract_strided_slice %35 {offsets = [0, 0], sizes = [8, 1], strides = [1, 1]} : vector<64x1xf32> to vector<8x1xf32>
    %61 = arith.addf %60, %56 : vector<8x1xf32>
    %62 = vector.extract_strided_slice %38 {offsets = [0, 0], sizes = [8, 1], strides = [1, 1]} : vector<64x1xf32> to vector<8x1xf32>
    %63 = arith.addf %62, %59 : vector<8x1xf32>
    %64 = arith.maximumf %61, %63 : vector<8x1xf32>
    %65 = arith.subf %61, %64 : vector<8x1xf32>
    %66 = math.exp %65 : vector<8x1xf32>
    %67 = arith.subf %63, %64 : vector<8x1xf32>
    %68 = math.exp %67 : vector<8x1xf32>
    %69 = arith.addf %66, %68 : vector<8x1xf32>
    %70 = arith.divf %66, %69 : vector<8x1xf32>
    %71 = arith.divf %68, %69 : vector<8x1xf32>
    %72 = arith.addf %41, %42 : vector<8x1024xf32>
    %73 = vector.extract_strided_slice %72 {offsets = [0, 0], sizes = [8, 768], strides = [1, 1]} : vector<8x1024xf32> to vector<8x768xf32>
    %74 = arith.negf %73 : vector<8x768xf32>
    %75 = math.exp %74 : vector<8x768xf32>
    %cst_28 = arith.constant 1.000000e+00 : f32
    %76 = vector.broadcast %cst_28 : f32 to vector<8x768xf32>
    %77 = arith.addf %76, %75 : vector<8x768xf32>
    %78 = arith.divf %76, %77 : vector<8x768xf32>
    %79 = vector.extract_strided_slice %72 {offsets = [0, 768], sizes = [8, 256], strides = [1, 1]} : vector<8x1024xf32> to vector<8x256xf32>
    %80 = math.tanh %79 : vector<8x256xf32>
    %cst_29 = arith.constant 0.000000e+00 : f32
    %81 = vector.broadcast %cst_29 : f32 to vector<8x128xf32>
    %cst_30 = arith.constant 0.000000e+00 : f32
    %82 = vector.broadcast %cst_30 : f32 to vector<8x128xf32>
    %83 = vector.extract_strided_slice %78 {offsets = [0, 0], sizes = [8, 128], strides = [1, 1]} : vector<8x768xf32> to vector<8x128xf32>
    %84 = vector.extract_strided_slice %78 {offsets = [0, 256], sizes = [8, 128], strides = [1, 1]} : vector<8x768xf32> to vector<8x128xf32>
    %85 = vector.extract_strided_slice %78 {offsets = [0, 512], sizes = [8, 128], strides = [1, 1]} : vector<8x768xf32> to vector<8x128xf32>
    %86 = vector.extract_strided_slice %80 {offsets = [0, 0], sizes = [8, 128], strides = [1, 1]} : vector<8x256xf32> to vector<8x128xf32>
    %87 = arith.mulf %40, %84 : vector<8x128xf32>
    %88 = arith.mulf %83, %86 : vector<8x128xf32>
    %89 = arith.addf %87, %88 : vector<8x128xf32>
    %90 = math.tanh %89 : vector<8x128xf32>
    %91 = arith.mulf %85, %90 : vector<8x128xf32>
    %92 = vector.broadcast %70 : vector<8x1xf32> to vector<8x128xf32>
    %93 = arith.mulf %89, %92 : vector<8x128xf32>
    %94 = arith.addf %82, %93 : vector<8x128xf32>
    %95 = vector.broadcast %70 : vector<8x1xf32> to vector<8x128xf32>
    %96 = arith.mulf %91, %95 : vector<8x128xf32>
    %97 = arith.addf %81, %96 : vector<8x128xf32>
    %98 = vector.extract_strided_slice %78 {offsets = [0, 128], sizes = [8, 128], strides = [1, 1]} : vector<8x768xf32> to vector<8x128xf32>
    %99 = vector.extract_strided_slice %78 {offsets = [0, 384], sizes = [8, 128], strides = [1, 1]} : vector<8x768xf32> to vector<8x128xf32>
    %100 = vector.extract_strided_slice %78 {offsets = [0, 640], sizes = [8, 128], strides = [1, 1]} : vector<8x768xf32> to vector<8x128xf32>
    %101 = vector.extract_strided_slice %80 {offsets = [0, 128], sizes = [8, 128], strides = [1, 1]} : vector<8x256xf32> to vector<8x128xf32>
    %102 = arith.mulf %40, %99 : vector<8x128xf32>
    %103 = arith.mulf %98, %101 : vector<8x128xf32>
    %104 = arith.addf %102, %103 : vector<8x128xf32>
    %105 = math.tanh %104 : vector<8x128xf32>
    %106 = arith.mulf %100, %105 : vector<8x128xf32>
    %107 = vector.broadcast %71 : vector<8x1xf32> to vector<8x128xf32>
    %108 = arith.mulf %104, %107 : vector<8x128xf32>
    %109 = arith.addf %94, %108 : vector<8x128xf32>
    %110 = vector.broadcast %71 : vector<8x1xf32> to vector<8x128xf32>
    %111 = arith.mulf %106, %110 : vector<8x128xf32>
    %112 = arith.addf %97, %111 : vector<8x128xf32>
    %113 = vector.extract_strided_slice %21 {offsets = [8, 0], sizes = [8, 1024], strides = [1, 1]} : vector<64x1024xf32> to vector<8x1024xf32>
    %cst_31 = arith.constant dense<0.000000e+00> : vector<8x1024xf32>
    %114 = tpu.matmul %112, %9, %cst_31 {dimension_numbers = #tpu.dot_dimension_numbers<[1], [0], [0], [1], [0, 0, 1, 1], [], []>} : vector<8x128xf32>, vector<128x1024xf32>, vector<8x1024xf32> -> vector<8x1024xf32>
    %cst_32 = arith.constant 0.000000e+00 : f32
    %115 = vector.broadcast %cst_32 : f32 to vector<8x1024xf32>
    %116 = arith.maximumf %114, %115 : vector<8x1024xf32>
    %117 = vector.broadcast %11 : vector<1x1024xf32> to vector<8x1024xf32>
    %118 = arith.mulf %116, %117 : vector<8x1024xf32>
    %119 = vector.extract_strided_slice %118 {offsets = [0, 0], sizes = [8, 256], strides = [1, 1]} : vector<8x1024xf32> to vector<8x256xf32>
    %120 = vector.extract_strided_slice %118 {offsets = [0, 256], sizes = [8, 256], strides = [1, 1]} : vector<8x1024xf32> to vector<8x256xf32>
    %121 = arith.addf %119, %120 : vector<8x256xf32>
    %122 = vector.extract_strided_slice %118 {offsets = [0, 512], sizes = [8, 256], strides = [1, 1]} : vector<8x1024xf32> to vector<8x256xf32>
    %123 = arith.addf %121, %122 : vector<8x256xf32>
    %124 = vector.extract_strided_slice %118 {offsets = [0, 768], sizes = [8, 256], strides = [1, 1]} : vector<8x1024xf32> to vector<8x256xf32>
    %125 = arith.addf %123, %124 : vector<8x256xf32>
    %126 = vector.extract_strided_slice %125 {offsets = [0, 0], sizes = [8, 128], strides = [1, 1]} : vector<8x256xf32> to vector<8x128xf32>
    %cst_33 = arith.constant dense<0.000000e+00> : vector<8xf32>
    %127 = vector.multi_reduction <add>, %126, %cst_33 [1] : vector<8x128xf32> to vector<8xf32>
    %128 = vector.shape_cast %127 : vector<8xf32> to vector<8x1xf32>
    %129 = vector.extract_strided_slice %125 {offsets = [0, 128], sizes = [8, 128], strides = [1, 1]} : vector<8x256xf32> to vector<8x128xf32>
    %cst_34 = arith.constant dense<0.000000e+00> : vector<8xf32>
    %130 = vector.multi_reduction <add>, %129, %cst_34 [1] : vector<8x128xf32> to vector<8xf32>
    %131 = vector.shape_cast %130 : vector<8xf32> to vector<8x1xf32>
    %132 = vector.extract_strided_slice %35 {offsets = [8, 0], sizes = [8, 1], strides = [1, 1]} : vector<64x1xf32> to vector<8x1xf32>
    %133 = arith.addf %132, %128 : vector<8x1xf32>
    %134 = vector.extract_strided_slice %38 {offsets = [8, 0], sizes = [8, 1], strides = [1, 1]} : vector<64x1xf32> to vector<8x1xf32>
    %135 = arith.addf %134, %131 : vector<8x1xf32>
    %136 = arith.maximumf %133, %135 : vector<8x1xf32>
    %137 = arith.subf %133, %136 : vector<8x1xf32>
    %138 = math.exp %137 : vector<8x1xf32>
    %139 = arith.subf %135, %136 : vector<8x1xf32>
    %140 = math.exp %139 : vector<8x1xf32>
    %141 = arith.addf %138, %140 : vector<8x1xf32>
    %142 = arith.divf %138, %141 : vector<8x1xf32>
    %143 = arith.divf %140, %141 : vector<8x1xf32>
    %144 = arith.addf %113, %114 : vector<8x1024xf32>
    %145 = vector.extract_strided_slice %144 {offsets = [0, 0], sizes = [8, 768], strides = [1, 1]} : vector<8x1024xf32> to vector<8x768xf32>
    %146 = arith.negf %145 : vector<8x768xf32>
    %147 = math.exp %146 : vector<8x768xf32>
    %cst_35 = arith.constant 1.000000e+00 : f32
    %148 = vector.broadcast %cst_35 : f32 to vector<8x768xf32>
    %149 = arith.addf %148, %147 : vector<8x768xf32>
    %150 = arith.divf %148, %149 : vector<8x768xf32>
    %151 = vector.extract_strided_slice %144 {offsets = [0, 768], sizes = [8, 256], strides = [1, 1]} : vector<8x1024xf32> to vector<8x256xf32>
    %152 = math.tanh %151 : vector<8x256xf32>
    %cst_36 = arith.constant 0.000000e+00 : f32
    %153 = vector.broadcast %cst_36 : f32 to vector<8x128xf32>
    %cst_37 = arith.constant 0.000000e+00 : f32
    %154 = vector.broadcast %cst_37 : f32 to vector<8x128xf32>
    %155 = vector.extract_strided_slice %150 {offsets = [0, 0], sizes = [8, 128], strides = [1, 1]} : vector<8x768xf32> to vector<8x128xf32>
    %156 = vector.extract_strided_slice %150 {offsets = [0, 256], sizes = [8, 128], strides = [1, 1]} : vector<8x768xf32> to vector<8x128xf32>
    %157 = vector.extract_strided_slice %150 {offsets = [0, 512], sizes = [8, 128], strides = [1, 1]} : vector<8x768xf32> to vector<8x128xf32>
    %158 = vector.extract_strided_slice %152 {offsets = [0, 0], sizes = [8, 128], strides = [1, 1]} : vector<8x256xf32> to vector<8x128xf32>
    %159 = arith.mulf %109, %156 : vector<8x128xf32>
    %160 = arith.mulf %155, %158 : vector<8x128xf32>
    %161 = arith.addf %159, %160 : vector<8x128xf32>
    %162 = math.tanh %161 : vector<8x128xf32>
    %163 = arith.mulf %157, %162 : vector<8x128xf32>
    %164 = vector.broadcast %142 : vector<8x1xf32> to vector<8x128xf32>
    %165 = arith.mulf %161, %164 : vector<8x128xf32>
    %166 = arith.addf %154, %165 : vector<8x128xf32>
    %167 = vector.broadcast %142 : vector<8x1xf32> to vector<8x128xf32>
    %168 = arith.mulf %163, %167 : vector<8x128xf32>
    %169 = arith.addf %153, %168 : vector<8x128xf32>
    %170 = vector.extract_strided_slice %150 {offsets = [0, 128], sizes = [8, 128], strides = [1, 1]} : vector<8x768xf32> to vector<8x128xf32>
    %171 = vector.extract_strided_slice %150 {offsets = [0, 384], sizes = [8, 128], strides = [1, 1]} : vector<8x768xf32> to vector<8x128xf32>
    %172 = vector.extract_strided_slice %150 {offsets = [0, 640], sizes = [8, 128], strides = [1, 1]} : vector<8x768xf32> to vector<8x128xf32>
    %173 = vector.extract_strided_slice %152 {offsets = [0, 128], sizes = [8, 128], strides = [1, 1]} : vector<8x256xf32> to vector<8x128xf32>
    %174 = arith.mulf %109, %171 : vector<8x128xf32>
    %175 = arith.mulf %170, %173 : vector<8x128xf32>
    %176 = arith.addf %174, %175 : vector<8x128xf32>
    %177 = math.tanh %176 : vector<8x128xf32>
    %178 = arith.mulf %172, %177 : vector<8x128xf32>
    %179 = vector.broadcast %143 : vector<8x1xf32> to vector<8x128xf32>
    %180 = arith.mulf %176, %179 : vector<8x128xf32>
    %181 = arith.addf %166, %180 : vector<8x128xf32>
    %182 = vector.broadcast %143 : vector<8x1xf32> to vector<8x128xf32>
    %183 = arith.mulf %178, %182 : vector<8x128xf32>
    %184 = arith.addf %169, %183 : vector<8x128xf32>
    %185 = vector.extract_strided_slice %21 {offsets = [16, 0], sizes = [8, 1024], strides = [1, 1]} : vector<64x1024xf32> to vector<8x1024xf32>
    %cst_38 = arith.constant dense<0.000000e+00> : vector<8x1024xf32>
    %186 = tpu.matmul %184, %9, %cst_38 {dimension_numbers = #tpu.dot_dimension_numbers<[1], [0], [0], [1], [0, 0, 1, 1], [], []>} : vector<8x128xf32>, vector<128x1024xf32>, vector<8x1024xf32> -> vector<8x1024xf32>
    %cst_39 = arith.constant 0.000000e+00 : f32
    %187 = vector.broadcast %cst_39 : f32 to vector<8x1024xf32>
    %188 = arith.maximumf %186, %187 : vector<8x1024xf32>
    %189 = vector.broadcast %11 : vector<1x1024xf32> to vector<8x1024xf32>
    %190 = arith.mulf %188, %189 : vector<8x1024xf32>
    %191 = vector.extract_strided_slice %190 {offsets = [0, 0], sizes = [8, 256], strides = [1, 1]} : vector<8x1024xf32> to vector<8x256xf32>
    %192 = vector.extract_strided_slice %190 {offsets = [0, 256], sizes = [8, 256], strides = [1, 1]} : vector<8x1024xf32> to vector<8x256xf32>
    %193 = arith.addf %191, %192 : vector<8x256xf32>
    %194 = vector.extract_strided_slice %190 {offsets = [0, 512], sizes = [8, 256], strides = [1, 1]} : vector<8x1024xf32> to vector<8x256xf32>
    %195 = arith.addf %193, %194 : vector<8x256xf32>
    %196 = vector.extract_strided_slice %190 {offsets = [0, 768], sizes = [8, 256], strides = [1, 1]} : vector<8x1024xf32> to vector<8x256xf32>
    %197 = arith.addf %195, %196 : vector<8x256xf32>
    %198 = vector.extract_strided_slice %197 {offsets = [0, 0], sizes = [8, 128], strides = [1, 1]} : vector<8x256xf32> to vector<8x128xf32>
    %cst_40 = arith.constant dense<0.000000e+00> : vector<8xf32>
    %199 = vector.multi_reduction <add>, %198, %cst_40 [1] : vector<8x128xf32> to vector<8xf32>
    %200 = vector.shape_cast %199 : vector<8xf32> to vector<8x1xf32>
    %201 = vector.extract_strided_slice %197 {offsets = [0, 128], sizes = [8, 128], strides = [1, 1]} : vector<8x256xf32> to vector<8x128xf32>
    %cst_41 = arith.constant dense<0.000000e+00> : vector<8xf32>
    %202 = vector.multi_reduction <add>, %201, %cst_41 [1] : vector<8x128xf32> to vector<8xf32>
    %203 = vector.shape_cast %202 : vector<8xf32> to vector<8x1xf32>
    %204 = vector.extract_strided_slice %35 {offsets = [16, 0], sizes = [8, 1], strides = [1, 1]} : vector<64x1xf32> to vector<8x1xf32>
    %205 = arith.addf %204, %200 : vector<8x1xf32>
    %206 = vector.extract_strided_slice %38 {offsets = [16, 0], sizes = [8, 1], strides = [1, 1]} : vector<64x1xf32> to vector<8x1xf32>
    %207 = arith.addf %206, %203 : vector<8x1xf32>
    %208 = arith.maximumf %205, %207 : vector<8x1xf32>
    %209 = arith.subf %205, %208 : vector<8x1xf32>
    %210 = math.exp %209 : vector<8x1xf32>
    %211 = arith.subf %207, %208 : vector<8x1xf32>
    %212 = math.exp %211 : vector<8x1xf32>
    %213 = arith.addf %210, %212 : vector<8x1xf32>
    %214 = arith.divf %210, %213 : vector<8x1xf32>
    %215 = arith.divf %212, %213 : vector<8x1xf32>
    %216 = arith.addf %185, %186 : vector<8x1024xf32>
    %217 = vector.extract_strided_slice %216 {offsets = [0, 0], sizes = [8, 768], strides = [1, 1]} : vector<8x1024xf32> to vector<8x768xf32>
    %218 = arith.negf %217 : vector<8x768xf32>
    %219 = math.exp %218 : vector<8x768xf32>
    %cst_42 = arith.constant 1.000000e+00 : f32
    %220 = vector.broadcast %cst_42 : f32 to vector<8x768xf32>
    %221 = arith.addf %220, %219 : vector<8x768xf32>
    %222 = arith.divf %220, %221 : vector<8x768xf32>
    %223 = vector.extract_strided_slice %216 {offsets = [0, 768], sizes = [8, 256], strides = [1, 1]} : vector<8x1024xf32> to vector<8x256xf32>
    %224 = math.tanh %223 : vector<8x256xf32>
    %cst_43 = arith.constant 0.000000e+00 : f32
    %225 = vector.broadcast %cst_43 : f32 to vector<8x128xf32>
    %cst_44 = arith.constant 0.000000e+00 : f32
    %226 = vector.broadcast %cst_44 : f32 to vector<8x128xf32>
    %227 = vector.extract_strided_slice %222 {offsets = [0, 0], sizes = [8, 128], strides = [1, 1]} : vector<8x768xf32> to vector<8x128xf32>
    %228 = vector.extract_strided_slice %222 {offsets = [0, 256], sizes = [8, 128], strides = [1, 1]} : vector<8x768xf32> to vector<8x128xf32>
    %229 = vector.extract_strided_slice %222 {offsets = [0, 512], sizes = [8, 128], strides = [1, 1]} : vector<8x768xf32> to vector<8x128xf32>
    %230 = vector.extract_strided_slice %224 {offsets = [0, 0], sizes = [8, 128], strides = [1, 1]} : vector<8x256xf32> to vector<8x128xf32>
    %231 = arith.mulf %181, %228 : vector<8x128xf32>
    %232 = arith.mulf %227, %230 : vector<8x128xf32>
    %233 = arith.addf %231, %232 : vector<8x128xf32>
    %234 = math.tanh %233 : vector<8x128xf32>
    %235 = arith.mulf %229, %234 : vector<8x128xf32>
    %236 = vector.broadcast %214 : vector<8x1xf32> to vector<8x128xf32>
    %237 = arith.mulf %233, %236 : vector<8x128xf32>
    %238 = arith.addf %226, %237 : vector<8x128xf32>
    %239 = vector.broadcast %214 : vector<8x1xf32> to vector<8x128xf32>
    %240 = arith.mulf %235, %239 : vector<8x128xf32>
    %241 = arith.addf %225, %240 : vector<8x128xf32>
    %242 = vector.extract_strided_slice %222 {offsets = [0, 128], sizes = [8, 128], strides = [1, 1]} : vector<8x768xf32> to vector<8x128xf32>
    %243 = vector.extract_strided_slice %222 {offsets = [0, 384], sizes = [8, 128], strides = [1, 1]} : vector<8x768xf32> to vector<8x128xf32>
    %244 = vector.extract_strided_slice %222 {offsets = [0, 640], sizes = [8, 128], strides = [1, 1]} : vector<8x768xf32> to vector<8x128xf32>
    %245 = vector.extract_strided_slice %224 {offsets = [0, 128], sizes = [8, 128], strides = [1, 1]} : vector<8x256xf32> to vector<8x128xf32>
    %246 = arith.mulf %181, %243 : vector<8x128xf32>
    %247 = arith.mulf %242, %245 : vector<8x128xf32>
    %248 = arith.addf %246, %247 : vector<8x128xf32>
    %249 = math.tanh %248 : vector<8x128xf32>
    %250 = arith.mulf %244, %249 : vector<8x128xf32>
    %251 = vector.broadcast %215 : vector<8x1xf32> to vector<8x128xf32>
    %252 = arith.mulf %248, %251 : vector<8x128xf32>
    %253 = arith.addf %238, %252 : vector<8x128xf32>
    %254 = vector.broadcast %215 : vector<8x1xf32> to vector<8x128xf32>
    %255 = arith.mulf %250, %254 : vector<8x128xf32>
    %256 = arith.addf %241, %255 : vector<8x128xf32>
    %257 = vector.extract_strided_slice %21 {offsets = [24, 0], sizes = [8, 1024], strides = [1, 1]} : vector<64x1024xf32> to vector<8x1024xf32>
    %cst_45 = arith.constant dense<0.000000e+00> : vector<8x1024xf32>
    %258 = tpu.matmul %256, %9, %cst_45 {dimension_numbers = #tpu.dot_dimension_numbers<[1], [0], [0], [1], [0, 0, 1, 1], [], []>} : vector<8x128xf32>, vector<128x1024xf32>, vector<8x1024xf32> -> vector<8x1024xf32>
    %cst_46 = arith.constant 0.000000e+00 : f32
    %259 = vector.broadcast %cst_46 : f32 to vector<8x1024xf32>
    %260 = arith.maximumf %258, %259 : vector<8x1024xf32>
    %261 = vector.broadcast %11 : vector<1x1024xf32> to vector<8x1024xf32>
    %262 = arith.mulf %260, %261 : vector<8x1024xf32>
    %263 = vector.extract_strided_slice %262 {offsets = [0, 0], sizes = [8, 256], strides = [1, 1]} : vector<8x1024xf32> to vector<8x256xf32>
    %264 = vector.extract_strided_slice %262 {offsets = [0, 256], sizes = [8, 256], strides = [1, 1]} : vector<8x1024xf32> to vector<8x256xf32>
    %265 = arith.addf %263, %264 : vector<8x256xf32>
    %266 = vector.extract_strided_slice %262 {offsets = [0, 512], sizes = [8, 256], strides = [1, 1]} : vector<8x1024xf32> to vector<8x256xf32>
    %267 = arith.addf %265, %266 : vector<8x256xf32>
    %268 = vector.extract_strided_slice %262 {offsets = [0, 768], sizes = [8, 256], strides = [1, 1]} : vector<8x1024xf32> to vector<8x256xf32>
    %269 = arith.addf %267, %268 : vector<8x256xf32>
    %270 = vector.extract_strided_slice %269 {offsets = [0, 0], sizes = [8, 128], strides = [1, 1]} : vector<8x256xf32> to vector<8x128xf32>
    %cst_47 = arith.constant dense<0.000000e+00> : vector<8xf32>
    %271 = vector.multi_reduction <add>, %270, %cst_47 [1] : vector<8x128xf32> to vector<8xf32>
    %272 = vector.shape_cast %271 : vector<8xf32> to vector<8x1xf32>
    %273 = vector.extract_strided_slice %269 {offsets = [0, 128], sizes = [8, 128], strides = [1, 1]} : vector<8x256xf32> to vector<8x128xf32>
    %cst_48 = arith.constant dense<0.000000e+00> : vector<8xf32>
    %274 = vector.multi_reduction <add>, %273, %cst_48 [1] : vector<8x128xf32> to vector<8xf32>
    %275 = vector.shape_cast %274 : vector<8xf32> to vector<8x1xf32>
    %276 = vector.extract_strided_slice %35 {offsets = [24, 0], sizes = [8, 1], strides = [1, 1]} : vector<64x1xf32> to vector<8x1xf32>
    %277 = arith.addf %276, %272 : vector<8x1xf32>
    %278 = vector.extract_strided_slice %38 {offsets = [24, 0], sizes = [8, 1], strides = [1, 1]} : vector<64x1xf32> to vector<8x1xf32>
    %279 = arith.addf %278, %275 : vector<8x1xf32>
    %280 = arith.maximumf %277, %279 : vector<8x1xf32>
    %281 = arith.subf %277, %280 : vector<8x1xf32>
    %282 = math.exp %281 : vector<8x1xf32>
    %283 = arith.subf %279, %280 : vector<8x1xf32>
    %284 = math.exp %283 : vector<8x1xf32>
    %285 = arith.addf %282, %284 : vector<8x1xf32>
    %286 = arith.divf %282, %285 : vector<8x1xf32>
    %287 = arith.divf %284, %285 : vector<8x1xf32>
    %288 = arith.addf %257, %258 : vector<8x1024xf32>
    %289 = vector.extract_strided_slice %288 {offsets = [0, 0], sizes = [8, 768], strides = [1, 1]} : vector<8x1024xf32> to vector<8x768xf32>
    %290 = arith.negf %289 : vector<8x768xf32>
    %291 = math.exp %290 : vector<8x768xf32>
    %cst_49 = arith.constant 1.000000e+00 : f32
    %292 = vector.broadcast %cst_49 : f32 to vector<8x768xf32>
    %293 = arith.addf %292, %291 : vector<8x768xf32>
    %294 = arith.divf %292, %293 : vector<8x768xf32>
    %295 = vector.extract_strided_slice %288 {offsets = [0, 768], sizes = [8, 256], strides = [1, 1]} : vector<8x1024xf32> to vector<8x256xf32>
    %296 = math.tanh %295 : vector<8x256xf32>
    %cst_50 = arith.constant 0.000000e+00 : f32
    %297 = vector.broadcast %cst_50 : f32 to vector<8x128xf32>
    %cst_51 = arith.constant 0.000000e+00 : f32
    %298 = vector.broadcast %cst_51 : f32 to vector<8x128xf32>
    %299 = vector.extract_strided_slice %294 {offsets = [0, 0], sizes = [8, 128], strides = [1, 1]} : vector<8x768xf32> to vector<8x128xf32>
    %300 = vector.extract_strided_slice %294 {offsets = [0, 256], sizes = [8, 128], strides = [1, 1]} : vector<8x768xf32> to vector<8x128xf32>
    %301 = vector.extract_strided_slice %294 {offsets = [0, 512], sizes = [8, 128], strides = [1, 1]} : vector<8x768xf32> to vector<8x128xf32>
    %302 = vector.extract_strided_slice %296 {offsets = [0, 0], sizes = [8, 128], strides = [1, 1]} : vector<8x256xf32> to vector<8x128xf32>
    %303 = arith.mulf %253, %300 : vector<8x128xf32>
    %304 = arith.mulf %299, %302 : vector<8x128xf32>
    %305 = arith.addf %303, %304 : vector<8x128xf32>
    %306 = math.tanh %305 : vector<8x128xf32>
    %307 = arith.mulf %301, %306 : vector<8x128xf32>
    %308 = vector.broadcast %286 : vector<8x1xf32> to vector<8x128xf32>
    %309 = arith.mulf %305, %308 : vector<8x128xf32>
    %310 = arith.addf %298, %309 : vector<8x128xf32>
    %311 = vector.broadcast %286 : vector<8x1xf32> to vector<8x128xf32>
    %312 = arith.mulf %307, %311 : vector<8x128xf32>
    %313 = arith.addf %297, %312 : vector<8x128xf32>
    %314 = vector.extract_strided_slice %294 {offsets = [0, 128], sizes = [8, 128], strides = [1, 1]} : vector<8x768xf32> to vector<8x128xf32>
    %315 = vector.extract_strided_slice %294 {offsets = [0, 384], sizes = [8, 128], strides = [1, 1]} : vector<8x768xf32> to vector<8x128xf32>
    %316 = vector.extract_strided_slice %294 {offsets = [0, 640], sizes = [8, 128], strides = [1, 1]} : vector<8x768xf32> to vector<8x128xf32>
    %317 = vector.extract_strided_slice %296 {offsets = [0, 128], sizes = [8, 128], strides = [1, 1]} : vector<8x256xf32> to vector<8x128xf32>
    %318 = arith.mulf %253, %315 : vector<8x128xf32>
    %319 = arith.mulf %314, %317 : vector<8x128xf32>
    %320 = arith.addf %318, %319 : vector<8x128xf32>
    %321 = math.tanh %320 : vector<8x128xf32>
    %322 = arith.mulf %316, %321 : vector<8x128xf32>
    %323 = vector.broadcast %287 : vector<8x1xf32> to vector<8x128xf32>
    %324 = arith.mulf %320, %323 : vector<8x128xf32>
    %325 = arith.addf %310, %324 : vector<8x128xf32>
    %326 = vector.broadcast %287 : vector<8x1xf32> to vector<8x128xf32>
    %327 = arith.mulf %322, %326 : vector<8x128xf32>
    %328 = arith.addf %313, %327 : vector<8x128xf32>
    %329 = vector.extract_strided_slice %21 {offsets = [32, 0], sizes = [8, 1024], strides = [1, 1]} : vector<64x1024xf32> to vector<8x1024xf32>
    %cst_52 = arith.constant dense<0.000000e+00> : vector<8x1024xf32>
    %330 = tpu.matmul %328, %9, %cst_52 {dimension_numbers = #tpu.dot_dimension_numbers<[1], [0], [0], [1], [0, 0, 1, 1], [], []>} : vector<8x128xf32>, vector<128x1024xf32>, vector<8x1024xf32> -> vector<8x1024xf32>
    %cst_53 = arith.constant 0.000000e+00 : f32
    %331 = vector.broadcast %cst_53 : f32 to vector<8x1024xf32>
    %332 = arith.maximumf %330, %331 : vector<8x1024xf32>
    %333 = vector.broadcast %11 : vector<1x1024xf32> to vector<8x1024xf32>
    %334 = arith.mulf %332, %333 : vector<8x1024xf32>
    %335 = vector.extract_strided_slice %334 {offsets = [0, 0], sizes = [8, 256], strides = [1, 1]} : vector<8x1024xf32> to vector<8x256xf32>
    %336 = vector.extract_strided_slice %334 {offsets = [0, 256], sizes = [8, 256], strides = [1, 1]} : vector<8x1024xf32> to vector<8x256xf32>
    %337 = arith.addf %335, %336 : vector<8x256xf32>
    %338 = vector.extract_strided_slice %334 {offsets = [0, 512], sizes = [8, 256], strides = [1, 1]} : vector<8x1024xf32> to vector<8x256xf32>
    %339 = arith.addf %337, %338 : vector<8x256xf32>
    %340 = vector.extract_strided_slice %334 {offsets = [0, 768], sizes = [8, 256], strides = [1, 1]} : vector<8x1024xf32> to vector<8x256xf32>
    %341 = arith.addf %339, %340 : vector<8x256xf32>
    %342 = vector.extract_strided_slice %341 {offsets = [0, 0], sizes = [8, 128], strides = [1, 1]} : vector<8x256xf32> to vector<8x128xf32>
    %cst_54 = arith.constant dense<0.000000e+00> : vector<8xf32>
    %343 = vector.multi_reduction <add>, %342, %cst_54 [1] : vector<8x128xf32> to vector<8xf32>
    %344 = vector.shape_cast %343 : vector<8xf32> to vector<8x1xf32>
    %345 = vector.extract_strided_slice %341 {offsets = [0, 128], sizes = [8, 128], strides = [1, 1]} : vector<8x256xf32> to vector<8x128xf32>
    %cst_55 = arith.constant dense<0.000000e+00> : vector<8xf32>
    %346 = vector.multi_reduction <add>, %345, %cst_55 [1] : vector<8x128xf32> to vector<8xf32>
    %347 = vector.shape_cast %346 : vector<8xf32> to vector<8x1xf32>
    %348 = vector.extract_strided_slice %35 {offsets = [32, 0], sizes = [8, 1], strides = [1, 1]} : vector<64x1xf32> to vector<8x1xf32>
    %349 = arith.addf %348, %344 : vector<8x1xf32>
    %350 = vector.extract_strided_slice %38 {offsets = [32, 0], sizes = [8, 1], strides = [1, 1]} : vector<64x1xf32> to vector<8x1xf32>
    %351 = arith.addf %350, %347 : vector<8x1xf32>
    %352 = arith.maximumf %349, %351 : vector<8x1xf32>
    %353 = arith.subf %349, %352 : vector<8x1xf32>
    %354 = math.exp %353 : vector<8x1xf32>
    %355 = arith.subf %351, %352 : vector<8x1xf32>
    %356 = math.exp %355 : vector<8x1xf32>
    %357 = arith.addf %354, %356 : vector<8x1xf32>
    %358 = arith.divf %354, %357 : vector<8x1xf32>
    %359 = arith.divf %356, %357 : vector<8x1xf32>
    %360 = arith.addf %329, %330 : vector<8x1024xf32>
    %361 = vector.extract_strided_slice %360 {offsets = [0, 0], sizes = [8, 768], strides = [1, 1]} : vector<8x1024xf32> to vector<8x768xf32>
    %362 = arith.negf %361 : vector<8x768xf32>
    %363 = math.exp %362 : vector<8x768xf32>
    %cst_56 = arith.constant 1.000000e+00 : f32
    %364 = vector.broadcast %cst_56 : f32 to vector<8x768xf32>
    %365 = arith.addf %364, %363 : vector<8x768xf32>
    %366 = arith.divf %364, %365 : vector<8x768xf32>
    %367 = vector.extract_strided_slice %360 {offsets = [0, 768], sizes = [8, 256], strides = [1, 1]} : vector<8x1024xf32> to vector<8x256xf32>
    %368 = math.tanh %367 : vector<8x256xf32>
    %cst_57 = arith.constant 0.000000e+00 : f32
    %369 = vector.broadcast %cst_57 : f32 to vector<8x128xf32>
    %cst_58 = arith.constant 0.000000e+00 : f32
    %370 = vector.broadcast %cst_58 : f32 to vector<8x128xf32>
    %371 = vector.extract_strided_slice %366 {offsets = [0, 0], sizes = [8, 128], strides = [1, 1]} : vector<8x768xf32> to vector<8x128xf32>
    %372 = vector.extract_strided_slice %366 {offsets = [0, 256], sizes = [8, 128], strides = [1, 1]} : vector<8x768xf32> to vector<8x128xf32>
    %373 = vector.extract_strided_slice %366 {offsets = [0, 512], sizes = [8, 128], strides = [1, 1]} : vector<8x768xf32> to vector<8x128xf32>
    %374 = vector.extract_strided_slice %368 {offsets = [0, 0], sizes = [8, 128], strides = [1, 1]} : vector<8x256xf32> to vector<8x128xf32>
    %375 = arith.mulf %325, %372 : vector<8x128xf32>
    %376 = arith.mulf %371, %374 : vector<8x128xf32>
    %377 = arith.addf %375, %376 : vector<8x128xf32>
    %378 = math.tanh %377 : vector<8x128xf32>
    %379 = arith.mulf %373, %378 : vector<8x128xf32>
    %380 = vector.broadcast %358 : vector<8x1xf32> to vector<8x128xf32>
    %381 = arith.mulf %377, %380 : vector<8x128xf32>
    %382 = arith.addf %370, %381 : vector<8x128xf32>
    %383 = vector.broadcast %358 : vector<8x1xf32> to vector<8x128xf32>
    %384 = arith.mulf %379, %383 : vector<8x128xf32>
    %385 = arith.addf %369, %384 : vector<8x128xf32>
    %386 = vector.extract_strided_slice %366 {offsets = [0, 128], sizes = [8, 128], strides = [1, 1]} : vector<8x768xf32> to vector<8x128xf32>
    %387 = vector.extract_strided_slice %366 {offsets = [0, 384], sizes = [8, 128], strides = [1, 1]} : vector<8x768xf32> to vector<8x128xf32>
    %388 = vector.extract_strided_slice %366 {offsets = [0, 640], sizes = [8, 128], strides = [1, 1]} : vector<8x768xf32> to vector<8x128xf32>
    %389 = vector.extract_strided_slice %368 {offsets = [0, 128], sizes = [8, 128], strides = [1, 1]} : vector<8x256xf32> to vector<8x128xf32>
    %390 = arith.mulf %325, %387 : vector<8x128xf32>
    %391 = arith.mulf %386, %389 : vector<8x128xf32>
    %392 = arith.addf %390, %391 : vector<8x128xf32>
    %393 = math.tanh %392 : vector<8x128xf32>
    %394 = arith.mulf %388, %393 : vector<8x128xf32>
    %395 = vector.broadcast %359 : vector<8x1xf32> to vector<8x128xf32>
    %396 = arith.mulf %392, %395 : vector<8x128xf32>
    %397 = arith.addf %382, %396 : vector<8x128xf32>
    %398 = vector.broadcast %359 : vector<8x1xf32> to vector<8x128xf32>
    %399 = arith.mulf %394, %398 : vector<8x128xf32>
    %400 = arith.addf %385, %399 : vector<8x128xf32>
    %401 = vector.extract_strided_slice %21 {offsets = [40, 0], sizes = [8, 1024], strides = [1, 1]} : vector<64x1024xf32> to vector<8x1024xf32>
    %cst_59 = arith.constant dense<0.000000e+00> : vector<8x1024xf32>
    %402 = tpu.matmul %400, %9, %cst_59 {dimension_numbers = #tpu.dot_dimension_numbers<[1], [0], [0], [1], [0, 0, 1, 1], [], []>} : vector<8x128xf32>, vector<128x1024xf32>, vector<8x1024xf32> -> vector<8x1024xf32>
    %cst_60 = arith.constant 0.000000e+00 : f32
    %403 = vector.broadcast %cst_60 : f32 to vector<8x1024xf32>
    %404 = arith.maximumf %402, %403 : vector<8x1024xf32>
    %405 = vector.broadcast %11 : vector<1x1024xf32> to vector<8x1024xf32>
    %406 = arith.mulf %404, %405 : vector<8x1024xf32>
    %407 = vector.extract_strided_slice %406 {offsets = [0, 0], sizes = [8, 256], strides = [1, 1]} : vector<8x1024xf32> to vector<8x256xf32>
    %408 = vector.extract_strided_slice %406 {offsets = [0, 256], sizes = [8, 256], strides = [1, 1]} : vector<8x1024xf32> to vector<8x256xf32>
    %409 = arith.addf %407, %408 : vector<8x256xf32>
    %410 = vector.extract_strided_slice %406 {offsets = [0, 512], sizes = [8, 256], strides = [1, 1]} : vector<8x1024xf32> to vector<8x256xf32>
    %411 = arith.addf %409, %410 : vector<8x256xf32>
    %412 = vector.extract_strided_slice %406 {offsets = [0, 768], sizes = [8, 256], strides = [1, 1]} : vector<8x1024xf32> to vector<8x256xf32>
    %413 = arith.addf %411, %412 : vector<8x256xf32>
    %414 = vector.extract_strided_slice %413 {offsets = [0, 0], sizes = [8, 128], strides = [1, 1]} : vector<8x256xf32> to vector<8x128xf32>
    %cst_61 = arith.constant dense<0.000000e+00> : vector<8xf32>
    %415 = vector.multi_reduction <add>, %414, %cst_61 [1] : vector<8x128xf32> to vector<8xf32>
    %416 = vector.shape_cast %415 : vector<8xf32> to vector<8x1xf32>
    %417 = vector.extract_strided_slice %413 {offsets = [0, 128], sizes = [8, 128], strides = [1, 1]} : vector<8x256xf32> to vector<8x128xf32>
    %cst_62 = arith.constant dense<0.000000e+00> : vector<8xf32>
    %418 = vector.multi_reduction <add>, %417, %cst_62 [1] : vector<8x128xf32> to vector<8xf32>
    %419 = vector.shape_cast %418 : vector<8xf32> to vector<8x1xf32>
    %420 = vector.extract_strided_slice %35 {offsets = [40, 0], sizes = [8, 1], strides = [1, 1]} : vector<64x1xf32> to vector<8x1xf32>
    %421 = arith.addf %420, %416 : vector<8x1xf32>
    %422 = vector.extract_strided_slice %38 {offsets = [40, 0], sizes = [8, 1], strides = [1, 1]} : vector<64x1xf32> to vector<8x1xf32>
    %423 = arith.addf %422, %419 : vector<8x1xf32>
    %424 = arith.maximumf %421, %423 : vector<8x1xf32>
    %425 = arith.subf %421, %424 : vector<8x1xf32>
    %426 = math.exp %425 : vector<8x1xf32>
    %427 = arith.subf %423, %424 : vector<8x1xf32>
    %428 = math.exp %427 : vector<8x1xf32>
    %429 = arith.addf %426, %428 : vector<8x1xf32>
    %430 = arith.divf %426, %429 : vector<8x1xf32>
    %431 = arith.divf %428, %429 : vector<8x1xf32>
    %432 = arith.addf %401, %402 : vector<8x1024xf32>
    %433 = vector.extract_strided_slice %432 {offsets = [0, 0], sizes = [8, 768], strides = [1, 1]} : vector<8x1024xf32> to vector<8x768xf32>
    %434 = arith.negf %433 : vector<8x768xf32>
    %435 = math.exp %434 : vector<8x768xf32>
    %cst_63 = arith.constant 1.000000e+00 : f32
    %436 = vector.broadcast %cst_63 : f32 to vector<8x768xf32>
    %437 = arith.addf %436, %435 : vector<8x768xf32>
    %438 = arith.divf %436, %437 : vector<8x768xf32>
    %439 = vector.extract_strided_slice %432 {offsets = [0, 768], sizes = [8, 256], strides = [1, 1]} : vector<8x1024xf32> to vector<8x256xf32>
    %440 = math.tanh %439 : vector<8x256xf32>
    %cst_64 = arith.constant 0.000000e+00 : f32
    %441 = vector.broadcast %cst_64 : f32 to vector<8x128xf32>
    %cst_65 = arith.constant 0.000000e+00 : f32
    %442 = vector.broadcast %cst_65 : f32 to vector<8x128xf32>
    %443 = vector.extract_strided_slice %438 {offsets = [0, 0], sizes = [8, 128], strides = [1, 1]} : vector<8x768xf32> to vector<8x128xf32>
    %444 = vector.extract_strided_slice %438 {offsets = [0, 256], sizes = [8, 128], strides = [1, 1]} : vector<8x768xf32> to vector<8x128xf32>
    %445 = vector.extract_strided_slice %438 {offsets = [0, 512], sizes = [8, 128], strides = [1, 1]} : vector<8x768xf32> to vector<8x128xf32>
    %446 = vector.extract_strided_slice %440 {offsets = [0, 0], sizes = [8, 128], strides = [1, 1]} : vector<8x256xf32> to vector<8x128xf32>
    %447 = arith.mulf %397, %444 : vector<8x128xf32>
    %448 = arith.mulf %443, %446 : vector<8x128xf32>
    %449 = arith.addf %447, %448 : vector<8x128xf32>
    %450 = math.tanh %449 : vector<8x128xf32>
    %451 = arith.mulf %445, %450 : vector<8x128xf32>
    %452 = vector.broadcast %430 : vector<8x1xf32> to vector<8x128xf32>
    %453 = arith.mulf %449, %452 : vector<8x128xf32>
    %454 = arith.addf %442, %453 : vector<8x128xf32>
    %455 = vector.broadcast %430 : vector<8x1xf32> to vector<8x128xf32>
    %456 = arith.mulf %451, %455 : vector<8x128xf32>
    %457 = arith.addf %441, %456 : vector<8x128xf32>
    %458 = vector.extract_strided_slice %438 {offsets = [0, 128], sizes = [8, 128], strides = [1, 1]} : vector<8x768xf32> to vector<8x128xf32>
    %459 = vector.extract_strided_slice %438 {offsets = [0, 384], sizes = [8, 128], strides = [1, 1]} : vector<8x768xf32> to vector<8x128xf32>
    %460 = vector.extract_strided_slice %438 {offsets = [0, 640], sizes = [8, 128], strides = [1, 1]} : vector<8x768xf32> to vector<8x128xf32>
    %461 = vector.extract_strided_slice %440 {offsets = [0, 128], sizes = [8, 128], strides = [1, 1]} : vector<8x256xf32> to vector<8x128xf32>
    %462 = arith.mulf %397, %459 : vector<8x128xf32>
    %463 = arith.mulf %458, %461 : vector<8x128xf32>
    %464 = arith.addf %462, %463 : vector<8x128xf32>
    %465 = math.tanh %464 : vector<8x128xf32>
    %466 = arith.mulf %460, %465 : vector<8x128xf32>
    %467 = vector.broadcast %431 : vector<8x1xf32> to vector<8x128xf32>
    %468 = arith.mulf %464, %467 : vector<8x128xf32>
    %469 = arith.addf %454, %468 : vector<8x128xf32>
    %470 = vector.broadcast %431 : vector<8x1xf32> to vector<8x128xf32>
    %471 = arith.mulf %466, %470 : vector<8x128xf32>
    %472 = arith.addf %457, %471 : vector<8x128xf32>
    %473 = vector.extract_strided_slice %21 {offsets = [48, 0], sizes = [8, 1024], strides = [1, 1]} : vector<64x1024xf32> to vector<8x1024xf32>
    %cst_66 = arith.constant dense<0.000000e+00> : vector<8x1024xf32>
    %474 = tpu.matmul %472, %9, %cst_66 {dimension_numbers = #tpu.dot_dimension_numbers<[1], [0], [0], [1], [0, 0, 1, 1], [], []>} : vector<8x128xf32>, vector<128x1024xf32>, vector<8x1024xf32> -> vector<8x1024xf32>
    %cst_67 = arith.constant 0.000000e+00 : f32
    %475 = vector.broadcast %cst_67 : f32 to vector<8x1024xf32>
    %476 = arith.maximumf %474, %475 : vector<8x1024xf32>
    %477 = vector.broadcast %11 : vector<1x1024xf32> to vector<8x1024xf32>
    %478 = arith.mulf %476, %477 : vector<8x1024xf32>
    %479 = vector.extract_strided_slice %478 {offsets = [0, 0], sizes = [8, 256], strides = [1, 1]} : vector<8x1024xf32> to vector<8x256xf32>
    %480 = vector.extract_strided_slice %478 {offsets = [0, 256], sizes = [8, 256], strides = [1, 1]} : vector<8x1024xf32> to vector<8x256xf32>
    %481 = arith.addf %479, %480 : vector<8x256xf32>
    %482 = vector.extract_strided_slice %478 {offsets = [0, 512], sizes = [8, 256], strides = [1, 1]} : vector<8x1024xf32> to vector<8x256xf32>
    %483 = arith.addf %481, %482 : vector<8x256xf32>
    %484 = vector.extract_strided_slice %478 {offsets = [0, 768], sizes = [8, 256], strides = [1, 1]} : vector<8x1024xf32> to vector<8x256xf32>
    %485 = arith.addf %483, %484 : vector<8x256xf32>
    %486 = vector.extract_strided_slice %485 {offsets = [0, 0], sizes = [8, 128], strides = [1, 1]} : vector<8x256xf32> to vector<8x128xf32>
    %cst_68 = arith.constant dense<0.000000e+00> : vector<8xf32>
    %487 = vector.multi_reduction <add>, %486, %cst_68 [1] : vector<8x128xf32> to vector<8xf32>
    %488 = vector.shape_cast %487 : vector<8xf32> to vector<8x1xf32>
    %489 = vector.extract_strided_slice %485 {offsets = [0, 128], sizes = [8, 128], strides = [1, 1]} : vector<8x256xf32> to vector<8x128xf32>
    %cst_69 = arith.constant dense<0.000000e+00> : vector<8xf32>
    %490 = vector.multi_reduction <add>, %489, %cst_69 [1] : vector<8x128xf32> to vector<8xf32>
    %491 = vector.shape_cast %490 : vector<8xf32> to vector<8x1xf32>
    %492 = vector.extract_strided_slice %35 {offsets = [48, 0], sizes = [8, 1], strides = [1, 1]} : vector<64x1xf32> to vector<8x1xf32>
    %493 = arith.addf %492, %488 : vector<8x1xf32>
    %494 = vector.extract_strided_slice %38 {offsets = [48, 0], sizes = [8, 1], strides = [1, 1]} : vector<64x1xf32> to vector<8x1xf32>
    %495 = arith.addf %494, %491 : vector<8x1xf32>
    %496 = arith.maximumf %493, %495 : vector<8x1xf32>
    %497 = arith.subf %493, %496 : vector<8x1xf32>
    %498 = math.exp %497 : vector<8x1xf32>
    %499 = arith.subf %495, %496 : vector<8x1xf32>
    %500 = math.exp %499 : vector<8x1xf32>
    %501 = arith.addf %498, %500 : vector<8x1xf32>
    %502 = arith.divf %498, %501 : vector<8x1xf32>
    %503 = arith.divf %500, %501 : vector<8x1xf32>
    %504 = arith.addf %473, %474 : vector<8x1024xf32>
    %505 = vector.extract_strided_slice %504 {offsets = [0, 0], sizes = [8, 768], strides = [1, 1]} : vector<8x1024xf32> to vector<8x768xf32>
    %506 = arith.negf %505 : vector<8x768xf32>
    %507 = math.exp %506 : vector<8x768xf32>
    %cst_70 = arith.constant 1.000000e+00 : f32
    %508 = vector.broadcast %cst_70 : f32 to vector<8x768xf32>
    %509 = arith.addf %508, %507 : vector<8x768xf32>
    %510 = arith.divf %508, %509 : vector<8x768xf32>
    %511 = vector.extract_strided_slice %504 {offsets = [0, 768], sizes = [8, 256], strides = [1, 1]} : vector<8x1024xf32> to vector<8x256xf32>
    %512 = math.tanh %511 : vector<8x256xf32>
    %cst_71 = arith.constant 0.000000e+00 : f32
    %513 = vector.broadcast %cst_71 : f32 to vector<8x128xf32>
    %cst_72 = arith.constant 0.000000e+00 : f32
    %514 = vector.broadcast %cst_72 : f32 to vector<8x128xf32>
    %515 = vector.extract_strided_slice %510 {offsets = [0, 0], sizes = [8, 128], strides = [1, 1]} : vector<8x768xf32> to vector<8x128xf32>
    %516 = vector.extract_strided_slice %510 {offsets = [0, 256], sizes = [8, 128], strides = [1, 1]} : vector<8x768xf32> to vector<8x128xf32>
    %517 = vector.extract_strided_slice %510 {offsets = [0, 512], sizes = [8, 128], strides = [1, 1]} : vector<8x768xf32> to vector<8x128xf32>
    %518 = vector.extract_strided_slice %512 {offsets = [0, 0], sizes = [8, 128], strides = [1, 1]} : vector<8x256xf32> to vector<8x128xf32>
    %519 = arith.mulf %469, %516 : vector<8x128xf32>
    %520 = arith.mulf %515, %518 : vector<8x128xf32>
    %521 = arith.addf %519, %520 : vector<8x128xf32>
    %522 = math.tanh %521 : vector<8x128xf32>
    %523 = arith.mulf %517, %522 : vector<8x128xf32>
    %524 = vector.broadcast %502 : vector<8x1xf32> to vector<8x128xf32>
    %525 = arith.mulf %521, %524 : vector<8x128xf32>
    %526 = arith.addf %514, %525 : vector<8x128xf32>
    %527 = vector.broadcast %502 : vector<8x1xf32> to vector<8x128xf32>
    %528 = arith.mulf %523, %527 : vector<8x128xf32>
    %529 = arith.addf %513, %528 : vector<8x128xf32>
    %530 = vector.extract_strided_slice %510 {offsets = [0, 128], sizes = [8, 128], strides = [1, 1]} : vector<8x768xf32> to vector<8x128xf32>
    %531 = vector.extract_strided_slice %510 {offsets = [0, 384], sizes = [8, 128], strides = [1, 1]} : vector<8x768xf32> to vector<8x128xf32>
    %532 = vector.extract_strided_slice %510 {offsets = [0, 640], sizes = [8, 128], strides = [1, 1]} : vector<8x768xf32> to vector<8x128xf32>
    %533 = vector.extract_strided_slice %512 {offsets = [0, 128], sizes = [8, 128], strides = [1, 1]} : vector<8x256xf32> to vector<8x128xf32>
    %534 = arith.mulf %469, %531 : vector<8x128xf32>
    %535 = arith.mulf %530, %533 : vector<8x128xf32>
    %536 = arith.addf %534, %535 : vector<8x128xf32>
    %537 = math.tanh %536 : vector<8x128xf32>
    %538 = arith.mulf %532, %537 : vector<8x128xf32>
    %539 = vector.broadcast %503 : vector<8x1xf32> to vector<8x128xf32>
    %540 = arith.mulf %536, %539 : vector<8x128xf32>
    %541 = arith.addf %526, %540 : vector<8x128xf32>
    %542 = vector.broadcast %503 : vector<8x1xf32> to vector<8x128xf32>
    %543 = arith.mulf %538, %542 : vector<8x128xf32>
    %544 = arith.addf %529, %543 : vector<8x128xf32>
    %545 = vector.extract_strided_slice %21 {offsets = [56, 0], sizes = [8, 1024], strides = [1, 1]} : vector<64x1024xf32> to vector<8x1024xf32>
    %cst_73 = arith.constant dense<0.000000e+00> : vector<8x1024xf32>
    %546 = tpu.matmul %544, %9, %cst_73 {dimension_numbers = #tpu.dot_dimension_numbers<[1], [0], [0], [1], [0, 0, 1, 1], [], []>} : vector<8x128xf32>, vector<128x1024xf32>, vector<8x1024xf32> -> vector<8x1024xf32>
    %cst_74 = arith.constant 0.000000e+00 : f32
    %547 = vector.broadcast %cst_74 : f32 to vector<8x1024xf32>
    %548 = arith.maximumf %546, %547 : vector<8x1024xf32>
    %549 = vector.broadcast %11 : vector<1x1024xf32> to vector<8x1024xf32>
    %550 = arith.mulf %548, %549 : vector<8x1024xf32>
    %551 = vector.extract_strided_slice %550 {offsets = [0, 0], sizes = [8, 256], strides = [1, 1]} : vector<8x1024xf32> to vector<8x256xf32>
    %552 = vector.extract_strided_slice %550 {offsets = [0, 256], sizes = [8, 256], strides = [1, 1]} : vector<8x1024xf32> to vector<8x256xf32>
    %553 = arith.addf %551, %552 : vector<8x256xf32>
    %554 = vector.extract_strided_slice %550 {offsets = [0, 512], sizes = [8, 256], strides = [1, 1]} : vector<8x1024xf32> to vector<8x256xf32>
    %555 = arith.addf %553, %554 : vector<8x256xf32>
    %556 = vector.extract_strided_slice %550 {offsets = [0, 768], sizes = [8, 256], strides = [1, 1]} : vector<8x1024xf32> to vector<8x256xf32>
    %557 = arith.addf %555, %556 : vector<8x256xf32>
    %558 = vector.extract_strided_slice %557 {offsets = [0, 0], sizes = [8, 128], strides = [1, 1]} : vector<8x256xf32> to vector<8x128xf32>
    %cst_75 = arith.constant dense<0.000000e+00> : vector<8xf32>
    %559 = vector.multi_reduction <add>, %558, %cst_75 [1] : vector<8x128xf32> to vector<8xf32>
    %560 = vector.shape_cast %559 : vector<8xf32> to vector<8x1xf32>
    %561 = vector.extract_strided_slice %557 {offsets = [0, 128], sizes = [8, 128], strides = [1, 1]} : vector<8x256xf32> to vector<8x128xf32>
    %cst_76 = arith.constant dense<0.000000e+00> : vector<8xf32>
    %562 = vector.multi_reduction <add>, %561, %cst_76 [1] : vector<8x128xf32> to vector<8xf32>
    %563 = vector.shape_cast %562 : vector<8xf32> to vector<8x1xf32>
    %564 = vector.extract_strided_slice %35 {offsets = [56, 0], sizes = [8, 1], strides = [1, 1]} : vector<64x1xf32> to vector<8x1xf32>
    %565 = arith.addf %564, %560 : vector<8x1xf32>
    %566 = vector.extract_strided_slice %38 {offsets = [56, 0], sizes = [8, 1], strides = [1, 1]} : vector<64x1xf32> to vector<8x1xf32>
    %567 = arith.addf %566, %563 : vector<8x1xf32>
    %568 = arith.maximumf %565, %567 : vector<8x1xf32>
    %569 = arith.subf %565, %568 : vector<8x1xf32>
    %570 = math.exp %569 : vector<8x1xf32>
    %571 = arith.subf %567, %568 : vector<8x1xf32>
    %572 = math.exp %571 : vector<8x1xf32>
    %573 = arith.addf %570, %572 : vector<8x1xf32>
    %574 = arith.divf %570, %573 : vector<8x1xf32>
    %575 = arith.divf %572, %573 : vector<8x1xf32>
    %576 = arith.addf %545, %546 : vector<8x1024xf32>
    %577 = vector.extract_strided_slice %576 {offsets = [0, 0], sizes = [8, 768], strides = [1, 1]} : vector<8x1024xf32> to vector<8x768xf32>
    %578 = arith.negf %577 : vector<8x768xf32>
    %579 = math.exp %578 : vector<8x768xf32>
    %cst_77 = arith.constant 1.000000e+00 : f32
    %580 = vector.broadcast %cst_77 : f32 to vector<8x768xf32>
    %581 = arith.addf %580, %579 : vector<8x768xf32>
    %582 = arith.divf %580, %581 : vector<8x768xf32>
    %583 = vector.extract_strided_slice %576 {offsets = [0, 768], sizes = [8, 256], strides = [1, 1]} : vector<8x1024xf32> to vector<8x256xf32>
    %584 = math.tanh %583 : vector<8x256xf32>
    %cst_78 = arith.constant 0.000000e+00 : f32
    %585 = vector.broadcast %cst_78 : f32 to vector<8x128xf32>
    %586 = vector.extract_strided_slice %582 {offsets = [0, 0], sizes = [8, 128], strides = [1, 1]} : vector<8x768xf32> to vector<8x128xf32>
    %587 = vector.extract_strided_slice %582 {offsets = [0, 256], sizes = [8, 128], strides = [1, 1]} : vector<8x768xf32> to vector<8x128xf32>
    %588 = vector.extract_strided_slice %582 {offsets = [0, 512], sizes = [8, 128], strides = [1, 1]} : vector<8x768xf32> to vector<8x128xf32>
    %589 = vector.extract_strided_slice %584 {offsets = [0, 0], sizes = [8, 128], strides = [1, 1]} : vector<8x256xf32> to vector<8x128xf32>
    %590 = arith.mulf %541, %587 : vector<8x128xf32>
    %591 = arith.mulf %586, %589 : vector<8x128xf32>
    %592 = arith.addf %590, %591 : vector<8x128xf32>
    %593 = math.tanh %592 : vector<8x128xf32>
    %594 = arith.mulf %588, %593 : vector<8x128xf32>
    %595 = vector.broadcast %574 : vector<8x1xf32> to vector<8x128xf32>
    %596 = arith.mulf %594, %595 : vector<8x128xf32>
    %597 = arith.addf %585, %596 : vector<8x128xf32>
    %598 = vector.extract_strided_slice %582 {offsets = [0, 128], sizes = [8, 128], strides = [1, 1]} : vector<8x768xf32> to vector<8x128xf32>
    %599 = vector.extract_strided_slice %582 {offsets = [0, 384], sizes = [8, 128], strides = [1, 1]} : vector<8x768xf32> to vector<8x128xf32>
    %600 = vector.extract_strided_slice %582 {offsets = [0, 640], sizes = [8, 128], strides = [1, 1]} : vector<8x768xf32> to vector<8x128xf32>
    %601 = vector.extract_strided_slice %584 {offsets = [0, 128], sizes = [8, 128], strides = [1, 1]} : vector<8x256xf32> to vector<8x128xf32>
    %602 = arith.mulf %541, %599 : vector<8x128xf32>
    %603 = arith.mulf %598, %601 : vector<8x128xf32>
    %604 = arith.addf %602, %603 : vector<8x128xf32>
    %605 = math.tanh %604 : vector<8x128xf32>
    %606 = arith.mulf %600, %605 : vector<8x128xf32>
    %607 = vector.broadcast %575 : vector<8x1xf32> to vector<8x128xf32>
    %608 = arith.mulf %606, %607 : vector<8x128xf32>
    %609 = arith.addf %597, %608 : vector<8x128xf32>
    %610 = tpu.concatenate %112, %184, %256, %328, %400, %472, %544, %609 in 0 : vector<8x128xf32>, vector<8x128xf32>, vector<8x128xf32>, vector<8x128xf32>, vector<8x128xf32>, vector<8x128xf32>, vector<8x128xf32>, vector<8x128xf32> -> vector<64x128xf32>
    %cst_79 = arith.constant dense<0.000000e+00> : vector<64x128xf32>
    %611 = tpu.matmul %610, %6, %cst_79 {dimension_numbers = #tpu.dot_dimension_numbers<[1], [0], [0], [1], [0, 0, 1, 1], [], []>} : vector<64x128xf32>, vector<128x128xf32>, vector<64x128xf32> -> vector<64x128xf32>
    %612 = vector.broadcast %2 : vector<1x128xf32> to vector<64x128xf32>
    %613 = arith.addf %611, %612 : vector<64x128xf32>
    %cst_80 = arith.constant 0.000000e+00 : f32
    %614 = vector.broadcast %cst_80 : f32 to vector<64x128xf32>
    %615 = arith.maximumf %613, %614 : vector<64x128xf32>
    %cst_81 = arith.constant dense<0.000000e+00> : vector<64x4xf32>
    %616 = tpu.matmul %615, %7, %cst_81 {dimension_numbers = #tpu.dot_dimension_numbers<[1], [0], [0], [1], [0, 0, 1, 1], [], []>} : vector<64x128xf32>, vector<128x4xf32>, vector<64x4xf32> -> vector<64x4xf32>
    %617 = vector.broadcast %3 : vector<1x4xf32> to vector<64x4xf32>
    %618 = arith.addf %616, %617 : vector<64x4xf32>
    %c0_82 = arith.constant 0 : index
    %c0_83 = arith.constant 0 : index
    %619 = vector.load %arg3[%c0_82, %c0_83] : memref<64x4xf32, #tpu.memory_space<vmem>>, vector<64x4xf32>
    tpu.vector_store %arg3[%c0_82, %c0_83], %618 {strides = array<i32>} : memref<64x4xf32, #tpu.memory_space<vmem>>, vector<64x4xf32>,
    %620 = tpu.concatenate %70, %142, %214, %286, %358, %430, %502, %574 in 0 : vector<8x1xf32>, vector<8x1xf32>, vector<8x1xf32>, vector<8x1xf32>, vector<8x1xf32>, vector<8x1xf32>, vector<8x1xf32>, vector<8x1xf32> -> vector<64x1xf32>
    %621 = tpu.concatenate %71, %143, %215, %287, %359, %431, %503, %575 in 0 : vector<8x1xf32>, vector<8x1xf32>, vector<8x1xf32>, vector<8x1xf32>, vector<8x1xf32>, vector<8x1xf32>, vector<8x1xf32>, vector<8x1xf32> -> vector<64x1xf32>
    %622 = tpu.concatenate %620, %621 in 1 : vector<64x1xf32>, vector<64x1xf32> -> vector<64x2xf32>
    %c0_84 = arith.constant 0 : index
    %c0_85 = arith.constant 0 : index
    %623 = vector.load %arg4[%c0_84, %c0_85] : memref<64x2xf32, #tpu.memory_space<vmem>>, vector<64x2xf32>
    tpu.vector_store %arg4[%c0_84, %c0_85], %622 {strides = array<i32>} : memref<64x2xf32, #tpu.memory_space<vmem>>, vector<64x2xf32>,
    return
  }
}

</mosaic_0001>

<llo_original>
// kernel: model_forward.1
$region0: #{model_forward.1}
  #allocation0 [shape = 'u32[]', space=smem, size = 0x4, offset = 0x4, fixed_abs, tag = 'smem constant byte address 0x4 - core index']
  #allocation1 [shape = 'u32[144,128]{1,0:T(1,128)}', space=vmem, size = 0x12000, scoped, tag = 'internal scratch']
  %s0 = inlined_call_operand.vmem [shape: f32[64,8], index: 0, kind: input, shape index: {}]
  %s1 = inlined_call_operand.vmem [shape: f32[288,128], index: 1, kind: input, shape index: {}]
  %s2 = inlined_call_operand.vmem [shape: f32[146,1024], index: 2, kind: input, shape index: {}]
  %s3 = inlined_call_operand.vmem [shape: f32[64,4], index: 3, kind: output, shape index: {0}]
  %s4 = inlined_call_operand.vmem [shape: f32[64,2], index: 4, kind: output, shape index: {1}]
  %5 = xla_tuple %s3, %s4
  %s6 = sld [smem:[#allocation0]]
  $region30: #{model_forward.1} parent=0
    _
  %s8 = ssub.s32 1, %s6
  %s9 = scalar_select 0, %s8, %s6
  // Predicated region
  $region2: #{model_forward.1} parent=0 // pred_check
    _
  $region3: #{model_forward.1} parent=0 // pred_check_branch
    %11 = sbr.rel (0) target = $region5
  $region4: #{model_forward.1} parent=0 // pred_region
    _
  $region5: #{model_forward.1} parent=0 // pred_fallthru
    _
  // Predicated region
  $region6: #{model_forward.1} parent=0 // pred_check
    _
  $region7: #{model_forward.1} parent=0 // pred_check_branch
    %13 = sbr.rel (0) target = $region9
  $region8: #{model_forward.1} parent=0 // pred_region
    _
  $region9: #{model_forward.1} parent=0 // pred_fallthru
    _
  // Predicated region
  $region10: #{model_forward.1} parent=0 // pred_check
    _
  $region11: #{model_forward.1} parent=0 // pred_check_branch
    %15 = sbr.rel (0) target = $region13
  $region12: #{model_forward.1} parent=0 // pred_region
    _
  $region13: #{model_forward.1} parent=0 // pred_fallthru
    _
  %v16 = vld [vmem:[%s1] sm:$0x1]
  %v17 = vld [vmem:[%s1 + $0x1] sm:$0x1]
  %v18 = vld [vmem:[%s1 + $0x2] sm:$0x1]
  %v19 = vld [vmem:[%s1 + $0x3] sm:$0x1]
  %v20 = vld [vmem:[%s1 + $0x8] sm:$0xff]
  %v21 = vld [vmem:[%s1 + $0x10] sm:$0xff]
  %v22 = vld [vmem:[%s1 + $0x18] sm:$0xff]
  %v23 = vld [vmem:[%s1 + $0x20] sm:$0xff]
  %v24 = vld [vmem:[%s1 + $0x28] sm:$0xff]
  %v25 = vld [vmem:[%s1 + $0x30] sm:$0xff]
  %v26 = vld [vmem:[%s1 + $0x38] sm:$0xff]
  %v27 = vld [vmem:[%s1 + $0x40] sm:$0xff]
  %v28 = vld [vmem:[%s1 + $0x48] sm:$0xff]
  %v29 = vld [vmem:[%s1 + $0x50] sm:$0xff]
  %v30 = vld [vmem:[%s1 + $0x58] sm:$0xff]
  %v31 = vld [vmem:[%s1 + $0x60] sm:$0xff]
  %v32 = vld [vmem:[%s1 + $0x68] sm:$0xff]
  %v33 = vld [vmem:[%s1 + $0x70] sm:$0xff]
  %v34 = vld [vmem:[%s1 + $0x78] sm:$0xff]
  %v35 = vld [vmem:[%s1 + $0x80] sm:$0xff]
  %v36 = vld [vmem:[%s1 + $0x88] sm:$0xff]
  %v37 = vld [vmem:[%s1 + $0x90] sm:$0xff]
  %v38 = vld [vmem:[%s1 + $0x98] sm:$0xff]
  %v39 = vld [vmem:[%s1 + $0xa0] sm:$0xff]
  %v40 = vld [vmem:[%s1 + $0xa8] sm:$0xff]
  %v41 = vld [vmem:[%s1 + $0xb0] sm:$0xff]
  %v42 = vld [vmem:[%s1 + $0xb8] sm:$0xff]
  %v43 = vld [vmem:[%s1 + $0xc0] sm:$0xff]
  %v44 = vld [vmem:[%s1 + $0xc8] sm:$0xff]
  %v45 = vld [vmem:[%s1 + $0xd0] sm:$0xff]
  %v46 = vld [vmem:[%s1 + $0xd8] sm:$0xff]
  %v47 = vld [vmem:[%s1 + $0xe0] sm:$0xff]
  %v48 = vld [vmem:[%s1 + $0xe8] sm:$0xff]
  %v49 = vld [vmem:[%s1 + $0xf0] sm:$0xff]
  %v50 = vld [vmem:[%s1 + $0xf8] sm:$0xff]
  %v51 = vld [vmem:[%s1 + $0x100] sm:$0xff]
  %v52 = vld [vmem:[%s1 + $0x108] sm:$0xff]
  %v53 = vld [vmem:[%s1 + $0x110] sm:$0xff]
  %v54 = vld [vmem:[%s1 + $0x118] sm:$0xff]
  %v55 = vld [vmem:[%s2] sm:$0xff]
  %v56 = vld [vmem:[%s2 + $0x8] sm:$0xff]
  %v57 = vld [vmem:[%s2 + $0x10] sm:$0xff]
  %v58 = vld [vmem:[%s2 + $0x18] sm:$0xff]
  %v59 = vld [vmem:[%s2 + $0x20] sm:$0xff]
  %v60 = vld [vmem:[%s2 + $0x28] sm:$0xff]
  %v61 = vld [vmem:[%s2 + $0x30] sm:$0xff]
  %v62 = vld [vmem:[%s2 + $0x38] sm:$0xff]
  %v63 = vld [vmem:[%s2 + $0x40] sm:$0xff]
  %v64 = vld [vmem:[%s2 + $0x48] sm:$0xff]
  %v65 = vld [vmem:[%s2 + $0x50] sm:$0xff]
  %v66 = vld [vmem:[%s2 + $0x58] sm:$0xff]
  %v67 = vld [vmem:[%s2 + $0x60] sm:$0xff]
  %v68 = vld [vmem:[%s2 + $0x68] sm:$0xff]
  %v69 = vld [vmem:[%s2 + $0x70] sm:$0xff]
  %v70 = vld [vmem:[%s2 + $0x78] sm:$0xff]
  %v71 = vld [vmem:[%s2 + $0x80] sm:$0xff]
  %v72 = vld [vmem:[%s2 + $0x88] sm:$0xff]
  %v73 = vld [vmem:[%s2 + $0x90] sm:$0xff]
  %v74 = vld [vmem:[%s2 + $0x98] sm:$0xff]
  %v75 = vld [vmem:[%s2 + $0xa0] sm:$0xff]
  %v76 = vld [vmem:[%s2 + $0xa8] sm:$0xff]
  %v77 = vld [vmem:[%s2 + $0xb0] sm:$0xff]
  %v78 = vld [vmem:[%s2 + $0xb8] sm:$0xff]
  %v79 = vld [vmem:[%s2 + $0xc0] sm:$0xff]
  %v80 = vld [vmem:[%s2 + $0xc8] sm:$0xff]
  %v81 = vld [vmem:[%s2 + $0xd0] sm:$0xff]
  %v82 = vld [vmem:[%s2 + $0xd8] sm:$0xff]
  %v83 = vld [vmem:[%s2 + $0xe0] sm:$0xff]
  %v84 = vld [vmem:[%s2 + $0xe8] sm:$0xff]
  %v85 = vld [vmem:[%s2 + $0xf0] sm:$0xff]
  %v86 = vld [vmem:[%s2 + $0xf8] sm:$0xff]
  %v87 = vld [vmem:[%s2 + $0x100] sm:$0xff]
  %v88 = vld [vmem:[%s2 + $0x108] sm:$0xff]
  %v89 = vld [vmem:[%s2 + $0x110] sm:$0xff]
  %v90 = vld [vmem:[%s2 + $0x118] sm:$0xff]
  %v91 = vld [vmem:[%s2 + $0x120] sm:$0xff]
  %v92 = vld [vmem:[%s2 + $0x128] sm:$0xff]
  %v93 = vld [vmem:[%s2 + $0x130] sm:$0xff]
  %v94 = vld [vmem:[%s2 + $0x138] sm:$0xff]
  %v95 = vld [vmem:[%s2 + $0x140] sm:$0xff]
  %v96 = vld [vmem:[%s2 + $0x148] sm:$0xff]
  %v97 = vld [vmem:[%s2 + $0x150] sm:$0xff]
  %v98 = vld [vmem:[%s2 + $0x158] sm:$0xff]
  %v99 = vld [vmem:[%s2 + $0x160] sm:$0xff]
  %v100 = vld [vmem:[%s2 + $0x168] sm:$0xff]
  %v101 = vld [vmem:[%s2 + $0x170] sm:$0xff]
  %v102 = vld [vmem:[%s2 + $0x178] sm:$0xff]
  %v103 = vld [vmem:[%s2 + $0x180] sm:$0xff]
  %v104 = vld [vmem:[%s2 + $0x188] sm:$0xff]
  %v105 = vld [vmem:[%s2 + $0x190] sm:$0xff]
  %v106 = vld [vmem:[%s2 + $0x198] sm:$0xff]
  %v107 = vld [vmem:[%s2 + $0x1a0] sm:$0xff]
  %v108 = vld [vmem:[%s2 + $0x1a8] sm:$0xff]
  %v109 = vld [vmem:[%s2 + $0x1b0] sm:$0xff]
  %v110 = vld [vmem:[%s2 + $0x1b8] sm:$0xff]
  %v111 = vld [vmem:[%s2 + $0x1c0] sm:$0xff]
  %v112 = vld [vmem:[%s2 + $0x1c8] sm:$0xff]
  %v113 = vld [vmem:[%s2 + $0x1d0] sm:$0xff]
  %v114 = vld [vmem:[%s2 + $0x1d8] sm:$0xff]
  %v115 = vld [vmem:[%s2 + $0x1e0] sm:$0xff]
  %v116 = vld [vmem:[%s2 + $0x1e8] sm:$0xff]
  %v117 = vld [vmem:[%s2 + $0x1f0] sm:$0xff]
  %v118 = vld [vmem:[%s2 + $0x1f8] sm:$0xff]
  %v119 = vld [vmem:[%s2 + $0x200] sm:$0xff]
  %v120 = vld [vmem:[%s2 + $0x208] sm:$0xff]
  %v121 = vld [vmem:[%s2 + $0x210] sm:$0xff]
  %v122 = vld [vmem:[%s2 + $0x218] sm:$0xff]
  %v123 = vld [vmem:[%s2 + $0x220] sm:$0xff]
  %v124 = vld [vmem:[%s2 + $0x228] sm:$0xff]
  %v125 = vld [vmem:[%s2 + $0x230] sm:$0xff]
  %v126 = vld [vmem:[%s2 + $0x238] sm:$0xff]
  %v127 = vld [vmem:[%s2 + $0x240] sm:$0xff]
  %v128 = vld [vmem:[%s2 + $0x248] sm:$0xff]
  %v129 = vld [vmem:[%s2 + $0x250] sm:$0xff]
  %v130 = vld [vmem:[%s2 + $0x258] sm:$0xff]
  %v131 = vld [vmem:[%s2 + $0x260] sm:$0xff]
  %v132 = vld [vmem:[%s2 + $0x268] sm:$0xff]
  %v133 = vld [vmem:[%s2 + $0x270] sm:$0xff]
  %v134 = vld [vmem:[%s2 + $0x278] sm:$0xff]
  %v135 = vld [vmem:[%s2 + $0x280] sm:$0xff]
  %v136 = vld [vmem:[%s2 + $0x288] sm:$0xff]
  %v137 = vld [vmem:[%s2 + $0x290] sm:$0xff]
  %v138 = vld [vmem:[%s2 + $0x298] sm:$0xff]
  %v139 = vld [vmem:[%s2 + $0x2a0] sm:$0xff]
  %v140 = vld [vmem:[%s2 + $0x2a8] sm:$0xff]
  %v141 = vld [vmem:[%s2 + $0x2b0] sm:$0xff]
  %v142 = vld [vmem:[%s2 + $0x2b8] sm:$0xff]
  %v143 = vld [vmem:[%s2 + $0x2c0] sm:$0xff]
  %v144 = vld [vmem:[%s2 + $0x2c8] sm:$0xff]
  %v145 = vld [vmem:[%s2 + $0x2d0] sm:$0xff]
  %v146 = vld [vmem:[%s2 + $0x2d8] sm:$0xff]
  %v147 = vld [vmem:[%s2 + $0x2e0] sm:$0xff]
  %v148 = vld [vmem:[%s2 + $0x2e8] sm:$0xff]
  %v149 = vld [vmem:[%s2 + $0x2f0] sm:$0xff]
  %v150 = vld [vmem:[%s2 + $0x2f8] sm:$0xff]
  %v151 = vld [vmem:[%s2 + $0x300] sm:$0xff]
  %v152 = vld [vmem:[%s2 + $0x308] sm:$0xff]
  %v153 = vld [vmem:[%s2 + $0x310] sm:$0xff]
  %v154 = vld [vmem:[%s2 + $0x318] sm:$0xff]
  %v155 = vld [vmem:[%s2 + $0x320] sm:$0xff]
  %v156 = vld [vmem:[%s2 + $0x328] sm:$0xff]
  %v157 = vld [vmem:[%s2 + $0x330] sm:$0xff]
  %v158 = vld [vmem:[%s2 + $0x338] sm:$0xff]
  %v159 = vld [vmem:[%s2 + $0x340] sm:$0xff]
  %v160 = vld [vmem:[%s2 + $0x348] sm:$0xff]
  %v161 = vld [vmem:[%s2 + $0x350] sm:$0xff]
  %v162 = vld [vmem:[%s2 + $0x358] sm:$0xff]
  %v163 = vld [vmem:[%s2 + $0x360] sm:$0xff]
  %v164 = vld [vmem:[%s2 + $0x368] sm:$0xff]
  %v165 = vld [vmem:[%s2 + $0x370] sm:$0xff]
  %v166 = vld [vmem:[%s2 + $0x378] sm:$0xff]
  %v167 = vld [vmem:[%s2 + $0x380] sm:$0xff]
  %v168 = vld [vmem:[%s2 + $0x388] sm:$0xff]
  %v169 = vld [vmem:[%s2 + $0x390] sm:$0xff]
  %v170 = vld [vmem:[%s2 + $0x398] sm:$0xff]
  %v171 = vld [vmem:[%s2 + $0x3a0] sm:$0xff]
  %v172 = vld [vmem:[%s2 + $0x3a8] sm:$0xff]
  %v173 = vld [vmem:[%s2 + $0x3b0] sm:$0xff]
  %v174 = vld [vmem:[%s2 + $0x3b8] sm:$0xff]
  %v175 = vld [vmem:[%s2 + $0x3c0] sm:$0xff]
  %v176 = vld [vmem:[%s2 + $0x3c8] sm:$0xff]
  %v177 = vld [vmem:[%s2 + $0x3d0] sm:$0xff]
  %v178 = vld [vmem:[%s2 + $0x3d8] sm:$0xff]
  %v179 = vld [vmem:[%s2 + $0x3e0] sm:$0xff]
  %v180 = vld [vmem:[%s2 + $0x3e8] sm:$0xff]
  %v181 = vld [vmem:[%s2 + $0x3f0] sm:$0xff]
  %v182 = vld [vmem:[%s2 + $0x3f8] sm:$0xff]
  %v183 = vld [vmem:[%s2 + $0x400] sm:$0xff]
  %v184 = vld [vmem:[%s2 + $0x408] sm:$0xff]
  %v185 = vld [vmem:[%s2 + $0x410] sm:$0xff]
  %v186 = vld [vmem:[%s2 + $0x418] sm:$0xff]
  %v187 = vld [vmem:[%s2 + $0x420] sm:$0xff]
  %v188 = vld [vmem:[%s2 + $0x428] sm:$0xff]
  %v189 = vld [vmem:[%s2 + $0x430] sm:$0xff]
  %v190 = vld [vmem:[%s2 + $0x438] sm:$0xff]
  %v191 = vld [vmem:[%s2 + $0x440] sm:$0xff]
  %v192 = vld [vmem:[%s2 + $0x448] sm:$0xff]
  %v193 = vld [vmem:[%s2 + $0x450] sm:$0xff]
  %v194 = vld [vmem:[%s2 + $0x458] sm:$0xff]
  %v195 = vld [vmem:[%s2 + $0x460] sm:$0xff]
  %v196 = vld [vmem:[%s2 + $0x468] sm:$0xff]
  %v197 = vld [vmem:[%s2 + $0x470] sm:$0xff]
  %v198 = vld [vmem:[%s2 + $0x478] sm:$0xff]
  %s199 = scalar_lea.vmem %s2, 1152
  %v200 = vld [vmem:[%s199] ss:$8 sm:$0xf]
  %v201 = vld [vmem:[%s199] ss:$8 sm:$0xf0]
  %v202 = vor.u32 %v200, %v201
  %s203 = scalar_lea.vmem %s2, 1153
  %v204 = vld [vmem:[%s203] ss:$8 sm:$0xf]
  %v205 = vld [vmem:[%s203] ss:$8 sm:$0xf0]
  %v206 = vor.u32 %v204, %v205
  %v207 = vld [vmem:[%s0] sm:$0xff]
  %v208 = vld [vmem:[%s0 + $0x8] sm:$0xff]
  %v209 = vld [vmem:[%s0 + $0x10] sm:$0xff]
  %v210 = vld [vmem:[%s0 + $0x18] sm:$0xff]
  %v211 = vld [vmem:[%s0 + $0x20] sm:$0xff]
  %v212 = vld [vmem:[%s0 + $0x28] sm:$0xff]
  %v213 = vld [vmem:[%s0 + $0x30] sm:$0xff]
  %v214 = vld [vmem:[%s0 + $0x38] sm:$0xff]
  %v215 = vlaneseq
  %v216 = vshrl.u32 %v215, 7
  %v217 = vsub.s32 0, %v216
  %v218 = vrot.slane %v16, %v217
  %vm219 = vcmask 64512
  %v221 = vsel %vm219, %v207, 0
  %v224 = vsel %vm219, %v208, 0
  %v227 = vsel %vm219, %v209, 0
  %v230 = vsel %vm219, %v210, 0
  %v233 = vsel %vm219, %v211, 0
  %v236 = vsel %vm219, %v212, 0
  %v239 = vsel %vm219, %v213, 0
  %v242 = vsel %vm219, %v214, 0
  %244 = vmatprep.subr.mxu0 0.0
  %245 = vmatpush1.msra.mxu0 0.0
  %246 = vmatprep.subr.mxu0 0.0
  %247 = vmatpush1.msra.mxu0 0.0
  %248 = vmatprep.subr.mxu0 0.0
  %249 = vmatpush1.msra.mxu0 0.0
  %250 = vmatprep.subr.mxu0 0.0
  %251 = vmatpush1.msra.mxu0 0.0
  %252 = vmatprep.subr.mxu0 0.0
  %253 = vmatpush1.msra.mxu0 0.0
  %254 = vmatprep.subr.mxu0 0.0
  %255 = vmatpush1.msra.mxu0 0.0
  %256 = vmatprep.subr.mxu0 0.0
  %257 = vmatpush1.msra.mxu0 0.0
  %258 = vmatprep.subr.mxu0 0.0
  %259 = vmatpush1.msra.mxu0 0.0
  %260 = vmatprep.subr.mxu0 0.0
  %261 = vmatpush1.msra.mxu0 0.0
  %262 = vmatprep.subr.mxu0 0.0
  %263 = vmatpush1.msra.mxu0 0.0
  %264 = vmatprep.subr.mxu0 0.0
  %265 = vmatpush1.msra.mxu0 0.0
  %266 = vmatprep.subr.mxu0 0.0
  %267 = vmatpush1.msra.mxu0 0.0
  %268 = vmatprep.subr.mxu0 0.0
  %269 = vmatpush1.msra.mxu0 0.0
  %270 = vmatprep.subr.mxu0 0.0
  %271 = vmatpush1.msra.mxu0 0.0
  %272 = vmatprep.subr.mxu0 0.0
  %273 = vmatpush1.msra.mxu0 0.0
  %274 = vmatprep.subr.mxu0 0.0
  %275 = vmatpush1.msra.mxu0 %v20
  %276 = vmatprep.subr.mxu0 0.0
  %277 = vmatpush2.msra.mxu0 0.0
  %278 = vmatprep.subr.mxu0 0.0
  %279 = vmatpush2.msra.mxu0 0.0
  %280 = vmatprep.subr.mxu0 0.0
  %281 = vmatpush2.msra.mxu0 0.0
  %282 = vmatprep.subr.mxu0 0.0
  %283 = vmatpush2.msra.mxu0 0.0
  %284 = vmatprep.subr.mxu0 0.0
  %285 = vmatpush2.msra.mxu0 0.0
  %286 = vmatprep.subr.mxu0 0.0
  %287 = vmatpush2.msra.mxu0 0.0
  %288 = vmatprep.subr.mxu0 0.0
  %289 = vmatpush2.msra.mxu0 0.0
  %290 = vmatprep.subr.mxu0 0.0
  %291 = vmatpush2.msra.mxu0 0.0
  %292 = vmatprep.subr.mxu0 0.0
  %293 = vmatpush2.msra.mxu0 0.0
  %294 = vmatprep.subr.mxu0 0.0
  %295 = vmatpush2.msra.mxu0 0.0
  %296 = vmatprep.subr.mxu0 0.0
  %297 = vmatpush2.msra.mxu0 0.0
  %298 = vmatprep.subr.mxu0 0.0
  %299 = vmatpush2.msra.mxu0 0.0
  %300 = vmatprep.subr.mxu0 0.0
  %301 = vmatpush2.msra.mxu0 0.0
  %302 = vmatprep.subr.mxu0 0.0
  %303 = vmatpush2.msra.mxu0 0.0
  %304 = vmatprep.subr.mxu0 0.0
  %305 = vmatpush2.msra.mxu0 0.0
  %306 = vmatprep.subr.mxu0 0.0
  %307 = vmatpush2.msra.mxu0 0.0
  %308 = vmatprep.mubr.f32.mxu0 0.0
  %309 = vmatmul.mubr.f32.gmra.mxu0 %v221
  %v310 = vpop.f32.mrf.mxu0
  %v311 = vadd.f32 %v218, %v310
  %v312 = vpop.f32.mrf.mxu0
  %313 = vmatprep.mubr.f32.mxu0 0.0
  %314 = vmatmul.mubr.f32.gmra.mxu0 %v224
  %v315 = vpop.f32.mrf.mxu0
  %v316 = vadd.f32 %v218, %v315
  %v317 = vpop.f32.mrf.mxu0
  %318 = vmatprep.mubr.f32.mxu0 0.0
  %319 = vmatmul.mubr.f32.gmra.mxu0 %v227
  %v320 = vpop.f32.mrf.mxu0
  %v321 = vadd.f32 %v218, %v320
  %v322 = vpop.f32.mrf.mxu0
  %323 = vmatprep.mubr.f32.mxu0 0.0
  %324 = vmatmul.mubr.f32.gmra.mxu0 %v230
  %v325 = vpop.f32.mrf.mxu0
  %v326 = vadd.f32 %v218, %v325
  %v327 = vpop.f32.mrf.mxu0
  %328 = vmatprep.mubr.f32.mxu0 0.0
  %329 = vmatmul.mubr.f32.gmra.mxu0 %v233
  %v330 = vpop.f32.mrf.mxu0
  %v331 = vadd.f32 %v218, %v330
  %v332 = vpop.f32.mrf.mxu0
  %333 = vmatprep.mubr.f32.mxu0 0.0
  %334 = vmatmul.mubr.f32.gmra.mxu0 %v236
  %v335 = vpop.f32.mrf.mxu0
  %v336 = vadd.f32 %v218, %v335
  %v337 = vpop.f32.mrf.mxu0
  %338 = vmatprep.mubr.f32.mxu0 0.0
  %339 = vmatmul.mubr.f32.gmra.mxu0 %v239
  %v340 = vpop.f32.mrf.mxu0
  %v341 = vadd.f32 %v218, %v340
  %v342 = vpop.f32.mrf.mxu0
  %343 = vmatprep.mubr.f32.mxu0 0.0
  %344 = vmatmul.mubr.f32.gmra.mxu0 %v242
  %v345 = vpop.f32.mrf.mxu0
  %v346 = vadd.f32 %v218, %v345
  %v347 = vpop.f32.mrf.mxu0
  %348 = vdwg.mxu0
  %v349 = vmax.f32 %v311, 0.0
  %v350 = vmax.f32 %v316, 0.0
  %v351 = vmax.f32 %v321, 0.0
  %v352 = vmax.f32 %v326, 0.0
  %v353 = vmax.f32 %v331, 0.0
  %v354 = vmax.f32 %v336, 0.0
  %v355 = vmax.f32 %v341, 0.0
  %v356 = vmax.f32 %v346, 0.0
  %v357 = vlaneseq
  %v358 = vshrl.u32 %v357, 7
  %v359 = vsub.s32 0, %v358
  %v360 = vrot.slane %v17, %v359
  %vm361 = vcmask 130048
  %v363 = vsel %vm361, %v349, 0
  %v366 = vsel %vm361, %v350, 0
  %v369 = vsel %vm361, %v351, 0
  %v372 = vsel %vm361, %v352, 0
  %v375 = vsel %vm361, %v353, 0
  %v378 = vsel %vm361, %v354, 0
  %v381 = vsel %vm361, %v355, 0
  %v384 = vsel %vm361, %v356, 0
  %386 = vmatprep.subr.mxu0 0.0
  %387 = vmatpush1.msra.mxu0 0.0
  %388 = vmatprep.subr.mxu0 0.0
  %389 = vmatpush1.msra.mxu0 0.0
  %390 = vmatprep.subr.mxu0 0.0
  %391 = vmatpush1.msra.mxu0 0.0
  %392 = vmatprep.subr.mxu0 0.0
  %393 = vmatpush1.msra.mxu0 0.0
  %394 = vmatprep.subr.mxu0 0.0
  %395 = vmatpush1.msra.mxu0 0.0
  %396 = vmatprep.subr.mxu0 0.0
  %397 = vmatpush1.msra.mxu0 0.0
  %398 = vmatprep.subr.mxu0 0.0
  %399 = vmatpush1.msra.mxu0 0.0
  %400 = vmatprep.subr.mxu0 0.0
  %401 = vmatpush1.msra.mxu0 0.0
  %402 = vmatprep.subr.mxu0 0.0
  %403 = vmatpush1.msra.mxu0 0.0
  %404 = vmatprep.subr.mxu0 0.0
  %405 = vmatpush1.msra.mxu0 0.0
  %406 = vmatprep.subr.mxu0 0.0
  %407 = vmatpush1.msra.mxu0 0.0
  %408 = vmatprep.subr.mxu0 0.0
  %409 = vmatpush1.msra.mxu0 0.0
  %410 = vmatprep.subr.mxu0 0.0
  %411 = vmatpush1.msra.mxu0 0.0
  %412 = vmatprep.subr.mxu0 0.0
  %413 = vmatpush1.msra.mxu0 0.0
  %414 = vmatprep.subr.mxu0 0.0
  %415 = vmatpush1.msra.mxu0 %v22
  %416 = vmatprep.subr.mxu0 0.0
  %417 = vmatpush1.msra.mxu0 %v21
  %418 = vmatprep.subr.mxu0 0.0
  %419 = vmatpush2.msra.mxu0 0.0
  %420 = vmatprep.subr.mxu0 0.0
  %421 = vmatpush2.msra.mxu0 0.0
  %422 = vmatprep.subr.mxu0 0.0
  %423 = vmatpush2.msra.mxu0 0.0
  %424 = vmatprep.subr.mxu0 0.0
  %425 = vmatpush2.msra.mxu0 0.0
  %426 = vmatprep.subr.mxu0 0.0
  %427 = vmatpush2.msra.mxu0 0.0
  %428 = vmatprep.subr.mxu0 0.0
  %429 = vmatpush2.msra.mxu0 0.0
  %430 = vmatprep.subr.mxu0 0.0
  %431 = vmatpush2.msra.mxu0 0.0
  %432 = vmatprep.subr.mxu0 0.0
  %433 = vmatpush2.msra.mxu0 0.0
  %434 = vmatprep.subr.mxu0 0.0
  %435 = vmatpush2.msra.mxu0 0.0
  %436 = vmatprep.subr.mxu0 0.0
  %437 = vmatpush2.msra.mxu0 0.0
  %438 = vmatprep.subr.mxu0 0.0
  %439 = vmatpush2.msra.mxu0 0.0
  %440 = vmatprep.subr.mxu0 0.0
  %441 = vmatpush2.msra.mxu0 0.0
  %442 = vmatprep.subr.mxu0 0.0
  %443 = vmatpush2.msra.mxu0 0.0
  %444 = vmatprep.subr.mxu0 0.0
  %445 = vmatpush2.msra.mxu0 0.0
  %446 = vmatprep.subr.mxu0 0.0
  %447 = vmatpush2.msra.mxu0 0.0
  %448 = vmatprep.subr.mxu0 0.0
  %449 = vmatpush2.msra.mxu0 0.0
  %450 = vmatprep.mubr.f32.mxu0 0.0
  %451 = vmatmul.mubr.f32.gmra.mxu0 %v363
  %v452 = vpop.f32.mrf.mxu0
  %v453 = vadd.f32 %v360, %v452
  %v454 = vpop.f32.mrf.mxu0
  %455 = vmatprep.mubr.f32.mxu0 0.0
  %456 = vmatmul.mubr.f32.gmra.mxu0 %v366
  %v457 = vpop.f32.mrf.mxu0
  %v458 = vadd.f32 %v360, %v457
  %v459 = vpop.f32.mrf.mxu0
  %460 = vmatprep.mubr.f32.mxu0 0.0
  %461 = vmatmul.mubr.f32.gmra.mxu0 %v369
  %v462 = vpop.f32.mrf.mxu0
  %v463 = vadd.f32 %v360, %v462
  %v464 = vpop.f32.mrf.mxu0
  %465 = vmatprep.mubr.f32.mxu0 0.0
  %466 = vmatmul.mubr.f32.gmra.mxu0 %v372
  %v467 = vpop.f32.mrf.mxu0
  %v468 = vadd.f32 %v360, %v467
  %v469 = vpop.f32.mrf.mxu0
  %470 = vmatprep.mubr.f32.mxu0 0.0
  %471 = vmatmul.mubr.f32.gmra.mxu0 %v375
  %v472 = vpop.f32.mrf.mxu0
  %v473 = vadd.f32 %v360, %v472
  %v474 = vpop.f32.mrf.mxu0
  %475 = vmatprep.mubr.f32.mxu0 0.0
  %476 = vmatmul.mubr.f32.gmra.mxu0 %v378
  %v477 = vpop.f32.mrf.mxu0
  %v478 = vadd.f32 %v360, %v477
  %v479 = vpop.f32.mrf.mxu0
  %480 = vmatprep.mubr.f32.mxu0 0.0
  %481 = vmatmul.mubr.f32.gmra.mxu0 %v381
  %v482 = vpop.f32.mrf.mxu0
  %v483 = vadd.f32 %v360, %v482
  %v484 = vpop.f32.mrf.mxu0
  %485 = vmatprep.mubr.f32.mxu0 0.0
  %486 = vmatmul.mubr.f32.gmra.mxu0 %v384
  %v487 = vpop.f32.mrf.mxu0
  %v488 = vadd.f32 %v360, %v487
  %v489 = vpop.f32.mrf.mxu0
  %490 = vdwg.mxu0
  %v492 = vsel %vm361, %v453, 0
  %v495 = vsel %vm361, %v458, 0
  %v498 = vsel %vm361, %v463, 0
  %v501 = vsel %vm361, %v468, 0
  %v504 = vsel %vm361, %v473, 0
  %v507 = vsel %vm361, %v478, 0
  %v510 = vsel %vm361, %v483, 0
  %v513 = vsel %vm361, %v488, 0
  %515 = vmatprep.subr.mxu0 0.0
  %516 = vmatpush1.msra.mxu0 0.0
  %517 = vmatprep.subr.mxu0 0.0
  %518 = vmatpush1.msra.mxu0 0.0
  %519 = vmatprep.subr.mxu0 0.0
  %520 = vmatpush1.msra.mxu0 0.0
  %521 = vmatprep.subr.mxu0 0.0
  %522 = vmatpush1.msra.mxu0 0.0
  %523 = vmatprep.subr.mxu0 0.0
  %524 = vmatpush1.msra.mxu0 0.0
  %525 = vmatprep.subr.mxu0 0.0
  %526 = vmatpush1.msra.mxu0 0.0
  %527 = vmatprep.subr.mxu0 0.0
  %528 = vmatpush1.msra.mxu0 0.0
  %529 = vmatprep.subr.mxu0 0.0
  %530 = vmatpush1.msra.mxu0 0.0
  %531 = vmatprep.subr.mxu0 0.0
  %532 = vmatpush1.msra.mxu0 0.0
  %533 = vmatprep.subr.mxu0 0.0
  %534 = vmatpush1.msra.mxu0 0.0
  %535 = vmatprep.subr.mxu0 0.0
  %536 = vmatpush1.msra.mxu0 0.0
  %537 = vmatprep.subr.mxu0 0.0
  %538 = vmatpush1.msra.mxu0 0.0
  %539 = vmatprep.subr.mxu0 0.0
  %540 = vmatpush1.msra.mxu0 0.0
  %541 = vmatprep.subr.mxu0 0.0
  %542 = vmatpush1.msra.mxu0 0.0
  %543 = vmatprep.subr.mxu0 %v64
  %544 = vmatpush1.msra.mxu0 %v63
  %545 = vmatprep.subr.mxu0 %v56
  %546 = vmatpush1.msra.mxu0 %v55
  %547 = vmatprep.subr.mxu0 0.0
  %548 = vmatpush2.msra.mxu0 0.0
  %549 = vmatprep.subr.mxu0 0.0
  %550 = vmatpush2.msra.mxu0 0.0
  %551 = vmatprep.subr.mxu0 0.0
  %552 = vmatpush2.msra.mxu0 0.0
  %553 = vmatprep.subr.mxu0 0.0
  %554 = vmatpush2.msra.mxu0 0.0
  %555 = vmatprep.subr.mxu0 0.0
  %556 = vmatpush2.msra.mxu0 0.0
  %557 = vmatprep.subr.mxu0 0.0
  %558 = vmatpush2.msra.mxu0 0.0
  %559 = vmatprep.subr.mxu0 0.0
  %560 = vmatpush2.msra.mxu0 0.0
  %561 = vmatprep.subr.mxu0 0.0
  %562 = vmatpush2.msra.mxu0 0.0
  %563 = vmatprep.subr.mxu0 0.0
  %564 = vmatpush2.msra.mxu0 0.0
  %565 = vmatprep.subr.mxu0 0.0
  %566 = vmatpush2.msra.mxu0 0.0
  %567 = vmatprep.subr.mxu0 0.0
  %568 = vmatpush2.msra.mxu0 0.0
  %569 = vmatprep.subr.mxu0 0.0
  %570 = vmatpush2.msra.mxu0 0.0
  %571 = vmatprep.subr.mxu0 0.0
  %572 = vmatpush2.msra.mxu0 0.0
  %573 = vmatprep.subr.mxu0 0.0
  %574 = vmatpush2.msra.mxu0 0.0
  %575 = vmatprep.subr.mxu0 0.0
  %576 = vmatpush2.msra.mxu0 0.0
  %577 = vmatprep.subr.mxu0 0.0
  %578 = vmatpush2.msra.mxu0 0.0
  %579 = vmatprep.mubr.f32.mxu0 0.0
  %580 = vmatmul.mubr.f32.gmra.mxu0 %v492
  %v581 = vpop.f32.mrf.mxu0
  %v582 = vadd.f32 0.0, %v581
  %v583 = vpop.f32.mrf.mxu0
  %v584 = vadd.f32 0.0, %v583
  %585 = vmatprep.mubr.f32.mxu0 0.0
  %586 = vmatmul.mubr.f32.gmra.mxu0 %v495
  %v587 = vpop.f32.mrf.mxu0
  %v588 = vadd.f32 0.0, %v587
  %v589 = vpop.f32.mrf.mxu0
  %v590 = vadd.f32 0.0, %v589
  %591 = vmatprep.mubr.f32.mxu0 0.0
  %592 = vmatmul.mubr.f32.gmra.mxu0 %v498
  %v593 = vpop.f32.mrf.mxu0
  %v594 = vadd.f32 0.0, %v593
  %v595 = vpop.f32.mrf.mxu0
  %v596 = vadd.f32 0.0, %v595
  %597 = vmatprep.mubr.f32.mxu0 0.0
  %598 = vmatmul.mubr.f32.gmra.mxu0 %v501
  %v599 = vpop.f32.mrf.mxu0
  %v600 = vadd.f32 0.0, %v599
  %v601 = vpop.f32.mrf.mxu0
  %v602 = vadd.f32 0.0, %v601
  %603 = vmatprep.mubr.f32.mxu0 0.0
  %604 = vmatmul.mubr.f32.gmra.mxu0 %v504
  %v605 = vpop.f32.mrf.mxu0
  %v606 = vadd.f32 0.0, %v605
  %v607 = vpop.f32.mrf.mxu0
  %v608 = vadd.f32 0.0, %v607
  %609 = vmatprep.mubr.f32.mxu0 0.0
  %610 = vmatmul.mubr.f32.gmra.mxu0 %v507
  %v611 = vpop.f32.mrf.mxu0
  %v612 = vadd.f32 0.0, %v611
  %v613 = vpop.f32.mrf.mxu0
  %v614 = vadd.f32 0.0, %v613
  %615 = vmatprep.mubr.f32.mxu0 0.0
  %616 = vmatmul.mubr.f32.gmra.mxu0 %v510
  %v617 = vpop.f32.mrf.mxu0
  %v618 = vadd.f32 0.0, %v617
  %v619 = vpop.f32.mrf.mxu0
  %v620 = vadd.f32 0.0, %v619
  %621 = vmatprep.mubr.f32.mxu0 0.0
  %622 = vmatmul.mubr.f32.gmra.mxu0 %v513
  %v623 = vpop.f32.mrf.mxu0
  %v624 = vadd.f32 0.0, %v623
  %v625 = vpop.f32.mrf.mxu0
  %v626 = vadd.f32 0.0, %v625
  %627 = vdwg.mxu0
  %628 = vmatprep.subr.mxu0 0.0
  %629 = vmatpush1.msra.mxu0 0.0
  %630 = vmatprep.subr.mxu0 0.0
  %631 = vmatpush1.msra.mxu0 0.0
  %632 = vmatprep.subr.mxu0 0.0
  %633 = vmatpush1.msra.mxu0 0.0
  %634 = vmatprep.subr.mxu0 0.0
  %635 = vmatpush1.msra.mxu0 0.0
  %636 = vmatprep.subr.mxu0 0.0
  %637 = vmatpush1.msra.mxu0 0.0
  %638 = vmatprep.subr.mxu0 0.0
  %639 = vmatpush1.msra.mxu0 0.0
  %640 = vmatprep.subr.mxu0 0.0
  %641 = vmatpush1.msra.mxu0 0.0
  %642 = vmatprep.subr.mxu0 0.0
  %643 = vmatpush1.msra.mxu0 0.0
  %644 = vmatprep.subr.mxu0 0.0
  %645 = vmatpush1.msra.mxu0 0.0
  %646 = vmatprep.subr.mxu0 0.0
  %647 = vmatpush1.msra.mxu0 0.0
  %648 = vmatprep.subr.mxu0 0.0
  %649 = vmatpush1.msra.mxu0 0.0
  %650 = vmatprep.subr.mxu0 0.0
  %651 = vmatpush1.msra.mxu0 0.0
  %652 = vmatprep.subr.mxu0 0.0
  %653 = vmatpush1.msra.mxu0 0.0
  %654 = vmatprep.subr.mxu0 0.0
  %655 = vmatpush1.msra.mxu0 0.0
  %656 = vmatprep.subr.mxu0 %v66
  %657 = vmatpush1.msra.mxu0 %v65
  %658 = vmatprep.subr.mxu0 %v58
  %659 = vmatpush1.msra.mxu0 %v57
  %660 = vmatprep.subr.mxu0 0.0
  %661 = vmatpush2.msra.mxu0 0.0
  %662 = vmatprep.subr.mxu0 0.0
  %663 = vmatpush2.msra.mxu0 0.0
  %664 = vmatprep.subr.mxu0 0.0
  %665 = vmatpush2.msra.mxu0 0.0
  %666 = vmatprep.subr.mxu0 0.0
  %667 = vmatpush2.msra.mxu0 0.0
  %668 = vmatprep.subr.mxu0 0.0
  %669 = vmatpush2.msra.mxu0 0.0
  %670 = vmatprep.subr.mxu0 0.0
  %671 = vmatpush2.msra.mxu0 0.0
  %672 = vmatprep.subr.mxu0 0.0
  %673 = vmatpush2.msra.mxu0 0.0
  %674 = vmatprep.subr.mxu0 0.0
  %675 = vmatpush2.msra.mxu0 0.0
  %676 = vmatprep.subr.mxu0 0.0
  %677 = vmatpush2.msra.mxu0 0.0
  %678 = vmatprep.subr.mxu0 0.0
  %679 = vmatpush2.msra.mxu0 0.0
  %680 = vmatprep.subr.mxu0 0.0
  %681 = vmatpush2.msra.mxu0 0.0
  %682 = vmatprep.subr.mxu0 0.0
  %683 = vmatpush2.msra.mxu0 0.0
  %684 = vmatprep.subr.mxu0 0.0
  %685 = vmatpush2.msra.mxu0 0.0
  %686 = vmatprep.subr.mxu0 0.0
  %687 = vmatpush2.msra.mxu0 0.0
  %688 = vmatprep.subr.mxu0 0.0
  %689 = vmatpush2.msra.mxu0 0.0
  %690 = vmatprep.subr.mxu0 0.0
  %691 = vmatpush2.msra.mxu0 0.0
  %692 = vmatprep.mubr.f32.mxu0 0.0
  %693 = vmatmul.mubr.f32.gmra.mxu0 %v492
  %v694 = vpop.f32.mrf.mxu0
  %v695 = vadd.f32 0.0, %v694
  %v696 = vpop.f32.mrf.mxu0
  %v697 = vadd.f32 0.0, %v696
  %698 = vmatprep.mubr.f32.mxu0 0.0
  %699 = vmatmul.mubr.f32.gmra.mxu0 %v495
  %v700 = vpop.f32.mrf.mxu0
  %v701 = vadd.f32 0.0, %v700
  %v702 = vpop.f32.mrf.mxu0
  %v703 = vadd.f32 0.0, %v702
  %704 = vmatprep.mubr.f32.mxu0 0.0
  %705 = vmatmul.mubr.f32.gmra.mxu0 %v498
  %v706 = vpop.f32.mrf.mxu0
  %v707 = vadd.f32 0.0, %v706
  %v708 = vpop.f32.mrf.mxu0
  %v709 = vadd.f32 0.0, %v708
  %710 = vmatprep.mubr.f32.mxu0 0.0
  %711 = vmatmul.mubr.f32.gmra.mxu0 %v501
  %v712 = vpop.f32.mrf.mxu0
  %v713 = vadd.f32 0.0, %v712
  %v714 = vpop.f32.mrf.mxu0
  %v715 = vadd.f32 0.0, %v714
  %716 = vmatprep.mubr.f32.mxu0 0.0
  %717 = vmatmul.mubr.f32.gmra.mxu0 %v504
  %v718 = vpop.f32.mrf.mxu0
  %v719 = vadd.f32 0.0, %v718
  %v720 = vpop.f32.mrf.mxu0
  %v721 = vadd.f32 0.0, %v720
  %722 = vmatprep.mubr.f32.mxu0 0.0
  %723 = vmatmul.mubr.f32.gmra.mxu0 %v507
  %v724 = vpop.f32.mrf.mxu0
  %v725 = vadd.f32 0.0, %v724
  %v726 = vpop.f32.mrf.mxu0
  %v727 = vadd.f32 0.0, %v726
  %728 = vmatprep.mubr.f32.mxu0 0.0
  %729 = vmatmul.mubr.f32.gmra.mxu0 %v510
  %v730 = vpop.f32.mrf.mxu0
  %v731 = vadd.f32 0.0, %v730
  %v732 = vpop.f32.mrf.mxu0
  %v733 = vadd.f32 0.0, %v732
  %734 = vmatprep.mubr.f32.mxu0 0.0
  %735 = vmatmul.mubr.f32.gmra.mxu0 %v513
  %v736 = vpop.f32.mrf.mxu0
  %v737 = vadd.f32 0.0, %v736
  %v738 = vpop.f32.mrf.mxu0
  %v739 = vadd.f32 0.0, %v738
  %740 = vdwg.mxu0
  %741 = vmatprep.subr.mxu0 0.0
  %742 = vmatpush1.msra.mxu0 0.0
  %743 = vmatprep.subr.mxu0 0.0
  %744 = vmatpush1.msra.mxu0 0.0
  %745 = vmatprep.subr.mxu0 0.0
  %746 = vmatpush1.msra.mxu0 0.0
  %747 = vmatprep.subr.mxu0 0.0
  %748 = vmatpush1.msra.mxu0 0.0
  %749 = vmatprep.subr.mxu0 0.0
  %750 = vmatpush1.msra.mxu0 0.0
  %751 = vmatprep.subr.mxu0 0.0
  %752 = vmatpush1.msra.mxu0 0.0
  %753 = vmatprep.subr.mxu0 0.0
  %754 = vmatpush1.msra.mxu0 0.0
  %755 = vmatprep.subr.mxu0 0.0
  %756 = vmatpush1.msra.mxu0 0.0
  %757 = vmatprep.subr.mxu0 0.0
  %758 = vmatpush1.msra.mxu0 0.0
  %759 = vmatprep.subr.mxu0 0.0
  %760 = vmatpush1.msra.mxu0 0.0
  %761 = vmatprep.subr.mxu0 0.0
  %762 = vmatpush1.msra.mxu0 0.0
  %763 = vmatprep.subr.mxu0 0.0
  %764 = vmatpush1.msra.mxu0 0.0
  %765 = vmatprep.subr.mxu0 0.0
  %766 = vmatpush1.msra.mxu0 0.0
  %767 = vmatprep.subr.mxu0 0.0
  %768 = vmatpush1.msra.mxu0 0.0
  %769 = vmatprep.subr.mxu0 %v68
  %770 = vmatpush1.msra.mxu0 %v67
  %771 = vmatprep.subr.mxu0 %v60
  %772 = vmatpush1.msra.mxu0 %v59
  %773 = vmatprep.subr.mxu0 0.0
  %774 = vmatpush2.msra.mxu0 0.0
  %775 = vmatprep.subr.mxu0 0.0
  %776 = vmatpush2.msra.mxu0 0.0
  %777 = vmatprep.subr.mxu0 0.0
  %778 = vmatpush2.msra.mxu0 0.0
  %779 = vmatprep.subr.mxu0 0.0
  %780 = vmatpush2.msra.mxu0 0.0
  %781 = vmatprep.subr.mxu0 0.0
  %782 = vmatpush2.msra.mxu0 0.0
  %783 = vmatprep.subr.mxu0 0.0
  %784 = vmatpush2.msra.mxu0 0.0
  %785 = vmatprep.subr.mxu0 0.0
  %786 = vmatpush2.msra.mxu0 0.0
  %787 = vmatprep.subr.mxu0 0.0
  %788 = vmatpush2.msra.mxu0 0.0
  %789 = vmatprep.subr.mxu0 0.0
  %790 = vmatpush2.msra.mxu0 0.0
  %791 = vmatprep.subr.mxu0 0.0
  %792 = vmatpush2.msra.mxu0 0.0
  %793 = vmatprep.subr.mxu0 0.0
  %794 = vmatpush2.msra.mxu0 0.0
  %795 = vmatprep.subr.mxu0 0.0
  %796 = vmatpush2.msra.mxu0 0.0
  %797 = vmatprep.subr.mxu0 0.0
  %798 = vmatpush2.msra.mxu0 0.0
  %799 = vmatprep.subr.mxu0 0.0
  %800 = vmatpush2.msra.mxu0 0.0
  %801 = vmatprep.subr.mxu0 0.0
  %802 = vmatpush2.msra.mxu0 0.0
  %803 = vmatprep.subr.mxu0 0.0
  %804 = vmatpush2.msra.mxu0 0.0
  %805 = vmatprep.mubr.f32.mxu0 0.0
  %806 = vmatmul.mubr.f32.gmra.mxu0 %v492
  %v807 = vpop.f32.mrf.mxu0
  %v808 = vadd.f32 0.0, %v807
  %v809 = vpop.f32.mrf.mxu0
  %v810 = vadd.f32 0.0, %v809
  %811 = vmatprep.mubr.f32.mxu0 0.0
  %812 = vmatmul.mubr.f32.gmra.mxu0 %v495
  %v813 = vpop.f32.mrf.mxu0
  %v814 = vadd.f32 0.0, %v813
  %v815 = vpop.f32.mrf.mxu0
  %v816 = vadd.f32 0.0, %v815
  %817 = vmatprep.mubr.f32.mxu0 0.0
  %818 = vmatmul.mubr.f32.gmra.mxu0 %v498
  %v819 = vpop.f32.mrf.mxu0
  %v820 = vadd.f32 0.0, %v819
  %v821 = vpop.f32.mrf.mxu0
  %v822 = vadd.f32 0.0, %v821
  %823 = vmatprep.mubr.f32.mxu0 0.0
  %824 = vmatmul.mubr.f32.gmra.mxu0 %v501
  %v825 = vpop.f32.mrf.mxu0
  %v826 = vadd.f32 0.0, %v825
  %v827 = vpop.f32.mrf.mxu0
  %v828 = vadd.f32 0.0, %v827
  %829 = vmatprep.mubr.f32.mxu0 0.0
  %830 = vmatmul.mubr.f32.gmra.mxu0 %v504
  %v831 = vpop.f32.mrf.mxu0
  %v832 = vadd.f32 0.0, %v831
  %v833 = vpop.f32.mrf.mxu0
  %v834 = vadd.f32 0.0, %v833
  %835 = vmatprep.mubr.f32.mxu0 0.0
  %836 = vmatmul.mubr.f32.gmra.mxu0 %v507
  %v837 = vpop.f32.mrf.mxu0
  %v838 = vadd.f32 0.0, %v837
  %v839 = vpop.f32.mrf.mxu0
  %v840 = vadd.f32 0.0, %v839
  %841 = vmatprep.mubr.f32.mxu0 0.0
  %842 = vmatmul.mubr.f32.gmra.mxu0 %v510
  %v843 = vpop.f32.mrf.mxu0
  %v844 = vadd.f32 0.0, %v843
  %v845 = vpop.f32.mrf.mxu0
  %v846 = vadd.f32 0.0, %v845
  %847 = vmatprep.mubr.f32.mxu0 0.0
  %848 = vmatmul.mubr.f32.gmra.mxu0 %v513
  %v849 = vpop.f32.mrf.mxu0
  %v850 = vadd.f32 0.0, %v849
  %v851 = vpop.f32.mrf.mxu0
  %v852 = vadd.f32 0.0, %v851
  %853 = vdwg.mxu0
  %854 = vmatprep.subr.mxu0 0.0
  %855 = vmatpush1.msra.mxu0 0.0
  %856 = vmatprep.subr.mxu0 0.0
  %857 = vmatpush1.msra.mxu0 0.0
  %858 = vmatprep.subr.mxu0 0.0
  %859 = vmatpush1.msra.mxu0 0.0
  %860 = vmatprep.subr.mxu0 0.0
  %861 = vmatpush1.msra.mxu0 0.0
  %862 = vmatprep.subr.mxu0 0.0
  %863 = vmatpush1.msra.mxu0 0.0
  %864 = vmatprep.subr.mxu0 0.0
  %865 = vmatpush1.msra.mxu0 0.0
  %866 = vmatprep.subr.mxu0 0.0
  %867 = vmatpush1.msra.mxu0 0.0
  %868 = vmatprep.subr.mxu0 0.0
  %869 = vmatpush1.msra.mxu0 0.0
  %870 = vmatprep.subr.mxu0 0.0
  %871 = vmatpush1.msra.mxu0 0.0
  %872 = vmatprep.subr.mxu0 0.0
  %873 = vmatpush1.msra.mxu0 0.0
  %874 = vmatprep.subr.mxu0 0.0
  %875 = vmatpush1.msra.mxu0 0.0
  %876 = vmatprep.subr.mxu0 0.0
  %877 = vmatpush1.msra.mxu0 0.0
  %878 = vmatprep.subr.mxu0 0.0
  %879 = vmatpush1.msra.mxu0 0.0
  %880 = vmatprep.subr.mxu0 0.0
  %881 = vmatpush1.msra.mxu0 0.0
  %882 = vmatprep.subr.mxu0 %v70
  %883 = vmatpush1.msra.mxu0 %v69
  %884 = vmatprep.subr.mxu0 %v62
  %885 = vmatpush1.msra.mxu0 %v61
  %886 = vmatprep.subr.mxu0 0.0
  %887 = vmatpush2.msra.mxu0 0.0
  %888 = vmatprep.subr.mxu0 0.0
  %889 = vmatpush2.msra.mxu0 0.0
  %890 = vmatprep.subr.mxu0 0.0
  %891 = vmatpush2.msra.mxu0 0.0
  %892 = vmatprep.subr.mxu0 0.0
  %893 = vmatpush2.msra.mxu0 0.0
  %894 = vmatprep.subr.mxu0 0.0
  %895 = vmatpush2.msra.mxu0 0.0
  %896 = vmatprep.subr.mxu0 0.0
  %897 = vmatpush2.msra.mxu0 0.0
  %898 = vmatprep.subr.mxu0 0.0
  %899 = vmatpush2.msra.mxu0 0.0
  %900 = vmatprep.subr.mxu0 0.0
  %901 = vmatpush2.msra.mxu0 0.0
  %902 = vmatprep.subr.mxu0 0.0
  %903 = vmatpush2.msra.mxu0 0.0
  %904 = vmatprep.subr.mxu0 0.0
  %905 = vmatpush2.msra.mxu0 0.0
  %906 = vmatprep.subr.mxu0 0.0
  %907 = vmatpush2.msra.mxu0 0.0
  %908 = vmatprep.subr.mxu0 0.0
  %909 = vmatpush2.msra.mxu0 0.0
  %910 = vmatprep.subr.mxu0 0.0
  %911 = vmatpush2.msra.mxu0 0.0
  %912 = vmatprep.subr.mxu0 0.0
  %913 = vmatpush2.msra.mxu0 0.0
  %914 = vmatprep.subr.mxu0 0.0
  %915 = vmatpush2.msra.mxu0 0.0
  %916 = vmatprep.subr.mxu0 0.0
  %917 = vmatpush2.msra.mxu0 0.0
  %918 = vmatprep.mubr.f32.mxu0 0.0
  %919 = vmatmul.mubr.f32.gmra.mxu0 %v492
  %v920 = vpop.f32.mrf.mxu0
  %v921 = vadd.f32 0.0, %v920
  %v922 = vpop.f32.mrf.mxu0
  %v923 = vadd.f32 0.0, %v922
  %924 = vmatprep.mubr.f32.mxu0 0.0
  %925 = vmatmul.mubr.f32.gmra.mxu0 %v495
  %v926 = vpop.f32.mrf.mxu0
  %v927 = vadd.f32 0.0, %v926
  %v928 = vpop.f32.mrf.mxu0
  %v929 = vadd.f32 0.0, %v928
  %930 = vmatprep.mubr.f32.mxu0 0.0
  %931 = vmatmul.mubr.f32.gmra.mxu0 %v498
  %v932 = vpop.f32.mrf.mxu0
  %v933 = vadd.f32 0.0, %v932
  %v934 = vpop.f32.mrf.mxu0
  %v935 = vadd.f32 0.0, %v934
  %936 = vmatprep.mubr.f32.mxu0 0.0
  %937 = vmatmul.mubr.f32.gmra.mxu0 %v501
  %v938 = vpop.f32.mrf.mxu0
  %v939 = vadd.f32 0.0, %v938
  %v940 = vpop.f32.mrf.mxu0
  %v941 = vadd.f32 0.0, %v940
  %942 = vmatprep.mubr.f32.mxu0 0.0
  %943 = vmatmul.mubr.f32.gmra.mxu0 %v504
  %v944 = vpop.f32.mrf.mxu0
  %v945 = vadd.f32 0.0, %v944
  %v946 = vpop.f32.mrf.mxu0
  %v947 = vadd.f32 0.0, %v946
  %948 = vmatprep.mubr.f32.mxu0 0.0
  %949 = vmatmul.mubr.f32.gmra.mxu0 %v507
  %v950 = vpop.f32.mrf.mxu0
  %v951 = vadd.f32 0.0, %v950
  %v952 = vpop.f32.mrf.mxu0
  %v953 = vadd.f32 0.0, %v952
  %954 = vmatprep.mubr.f32.mxu0 0.0
  %955 = vmatmul.mubr.f32.gmra.mxu0 %v510
  %v956 = vpop.f32.mrf.mxu0
  %v957 = vadd.f32 0.0, %v956
  %v958 = vpop.f32.mrf.mxu0
  %v959 = vadd.f32 0.0, %v958
  %960 = vmatprep.mubr.f32.mxu0 0.0
  %961 = vmatmul.mubr.f32.gmra.mxu0 %v513
  %v962 = vpop.f32.mrf.mxu0
  %v963 = vadd.f32 0.0, %v962
  %v964 = vpop.f32.mrf.mxu0
  %v965 = vadd.f32 0.0, %v964
  %966 = vdwg.mxu0
  %v967 = vmax.f32 %v582, 0.0
  %v968 = vmax.f32 %v584, 0.0
  %v969 = vmax.f32 %v695, 0.0
  %v970 = vmax.f32 %v697, 0.0
  %v971 = vmax.f32 %v808, 0.0
  %v972 = vmax.f32 %v810, 0.0
  %v973 = vmax.f32 %v921, 0.0
  %v974 = vmax.f32 %v923, 0.0
  %v975 = vmax.f32 %v588, 0.0
  %v976 = vmax.f32 %v590, 0.0
  %v977 = vmax.f32 %v701, 0.0
  %v978 = vmax.f32 %v703, 0.0
  %v979 = vmax.f32 %v814, 0.0
  %v980 = vmax.f32 %v816, 0.0
  %v981 = vmax.f32 %v927, 0.0
  %v982 = vmax.f32 %v929, 0.0
  %v983 = vmax.f32 %v594, 0.0
  %v984 = vmax.f32 %v596, 0.0
  %v985 = vmax.f32 %v707, 0.0
  %v986 = vmax.f32 %v709, 0.0
  %v987 = vmax.f32 %v820, 0.0
  %v988 = vmax.f32 %v822, 0.0
  %v989 = vmax.f32 %v933, 0.0
  %v990 = vmax.f32 %v935, 0.0
  %v991 = vmax.f32 %v600, 0.0
  %v992 = vmax.f32 %v602, 0.0
  %v993 = vmax.f32 %v713, 0.0
  %v994 = vmax.f32 %v715, 0.0
  %v995 = vmax.f32 %v826, 0.0
  %v996 = vmax.f32 %v828, 0.0
  %v997 = vmax.f32 %v939, 0.0
  %v998 = vmax.f32 %v941, 0.0
  %v999 = vmax.f32 %v606, 0.0
  %v1000 = vmax.f32 %v608, 0.0
  %v1001 = vmax.f32 %v719, 0.0
  %v1002 = vmax.f32 %v721, 0.0
  %v1003 = vmax.f32 %v832, 0.0
  %v1004 = vmax.f32 %v834, 0.0
  %v1005 = vmax.f32 %v945, 0.0
  %v1006 = vmax.f32 %v947, 0.0
  %v1007 = vmax.f32 %v612, 0.0
  %v1008 = vmax.f32 %v614, 0.0
  %v1009 = vmax.f32 %v725, 0.0
  %v1010 = vmax.f32 %v727, 0.0
  %v1011 = vmax.f32 %v838, 0.0
  %v1012 = vmax.f32 %v840, 0.0
  %v1013 = vmax.f32 %v951, 0.0
  %v1014 = vmax.f32 %v953, 0.0
  %v1015 = vmax.f32 %v618, 0.0
  %v1016 = vmax.f32 %v620, 0.0
  %v1017 = vmax.f32 %v731, 0.0
  %v1018 = vmax.f32 %v733, 0.0
  %v1019 = vmax.f32 %v844, 0.0
  %v1020 = vmax.f32 %v846, 0.0
  %v1021 = vmax.f32 %v957, 0.0
  %v1022 = vmax.f32 %v959, 0.0
  %v1023 = vmax.f32 %v624, 0.0
  %v1024 = vmax.f32 %v626, 0.0
  %v1025 = vmax.f32 %v737, 0.0
  %v1026 = vmax.f32 %v739, 0.0
  %v1027 = vmax.f32 %v850, 0.0
  %v1028 = vmax.f32 %v852, 0.0
  %v1029 = vmax.f32 %v963, 0.0
  %v1030 = vmax.f32 %v965, 0.0
  %v1032 = vlaneseq
  %v1033 = vshrl.u32 %v1032, 7
  %v1034 = vsub.s32 0, %v1033
  %v1035 = vrot.slane %v202, %v1034
  %v1036 = vlaneseq
  %v1037 = vshrl.u32 %v1036, 7
  %v1038 = vsub.s32 1, %v1037
  %v1039 = vrot.slane %v202, %v1038
  %v1040 = vlaneseq
  %v1041 = vshrl.u32 %v1040, 7
  %v1042 = vsub.s32 2, %v1041
  %v1043 = vrot.slane %v202, %v1042
  %v1044 = vlaneseq
  %v1045 = vshrl.u32 %v1044, 7
  %v1046 = vsub.s32 3, %v1045
  %v1047 = vrot.slane %v202, %v1046
  %v1048 = vlaneseq
  %v1049 = vshrl.u32 %v1048, 7
  %v1050 = vsub.s32 4, %v1049
  %v1051 = vrot.slane %v202, %v1050
  %v1052 = vlaneseq
  %v1053 = vshrl.u32 %v1052, 7
  %v1054 = vsub.s32 5, %v1053
  %v1055 = vrot.slane %v202, %v1054
  %v1056 = vlaneseq
  %v1057 = vshrl.u32 %v1056, 7
  %v1058 = vsub.s32 6, %v1057
  %v1059 = vrot.slane %v202, %v1058
  %v1060 = vlaneseq
  %v1061 = vshrl.u32 %v1060, 7
  %v1062 = vsub.s32 7, %v1061
  %v1063 = vrot.slane %v202, %v1062
  %v1072 = vmul.f32 %v967, %v1035
  %v1073 = vmul.f32 %v968, %v1039
  %v1074 = vmul.f32 %v969, %v1043
  %v1075 = vmul.f32 %v970, %v1047
  %v1076 = vmul.f32 %v971, %v1051
  %v1077 = vmul.f32 %v972, %v1055
  %v1078 = vmul.f32 %v973, %v1059
  %v1079 = vmul.f32 %v974, %v1063
  %v1080 = vmul.f32 %v975, %v1035
  %v1081 = vmul.f32 %v976, %v1039
  %v1082 = vmul.f32 %v977, %v1043
  %v1083 = vmul.f32 %v978, %v1047
  %v1084 = vmul.f32 %v979, %v1051
  %v1085 = vmul.f32 %v980, %v1055
  %v1086 = vmul.f32 %v981, %v1059
  %v1087 = vmul.f32 %v982, %v1063
  %v1088 = vmul.f32 %v983, %v1035
  %v1089 = vmul.f32 %v984, %v1039
  %v1090 = vmul.f32 %v985, %v1043
  %v1091 = vmul.f32 %v986, %v1047
  %v1092 = vmul.f32 %v987, %v1051
  %v1093 = vmul.f32 %v988, %v1055
  %v1094 = vmul.f32 %v989, %v1059
  %v1095 = vmul.f32 %v990, %v1063
  %v1096 = vmul.f32 %v991, %v1035
  %v1097 = vmul.f32 %v992, %v1039
  %v1098 = vmul.f32 %v993, %v1043
  %v1099 = vmul.f32 %v994, %v1047
  %v1100 = vmul.f32 %v995, %v1051
  %v1101 = vmul.f32 %v996, %v1055
  %v1102 = vmul.f32 %v997, %v1059
  %v1103 = vmul.f32 %v998, %v1063
  %v1104 = vmul.f32 %v999, %v1035
  %v1105 = vmul.f32 %v1000, %v1039
  %v1106 = vmul.f32 %v1001, %v1043
  %v1107 = vmul.f32 %v1002, %v1047
  %v1108 = vmul.f32 %v1003, %v1051
  %v1109 = vmul.f32 %v1004, %v1055
  %v1110 = vmul.f32 %v1005, %v1059
  %v1111 = vmul.f32 %v1006, %v1063
  %v1112 = vmul.f32 %v1007, %v1035
  %v1113 = vmul.f32 %v1008, %v1039
  %v1114 = vmul.f32 %v1009, %v1043
  %v1115 = vmul.f32 %v1010, %v1047
  %v1116 = vmul.f32 %v1011, %v1051
  %v1117 = vmul.f32 %v1012, %v1055
  %v1118 = vmul.f32 %v1013, %v1059
  %v1119 = vmul.f32 %v1014, %v1063
  %v1120 = vmul.f32 %v1015, %v1035
  %v1121 = vmul.f32 %v1016, %v1039
  %v1122 = vmul.f32 %v1017, %v1043
  %v1123 = vmul.f32 %v1018, %v1047
  %v1124 = vmul.f32 %v1019, %v1051
  %v1125 = vmul.f32 %v1020, %v1055
  %v1126 = vmul.f32 %v1021, %v1059
  %v1127 = vmul.f32 %v1022, %v1063
  %v1128 = vmul.f32 %v1023, %v1035
  %v1129 = vmul.f32 %v1024, %v1039
  %v1130 = vmul.f32 %v1025, %v1043
  %v1131 = vmul.f32 %v1026, %v1047
  %v1132 = vmul.f32 %v1027, %v1051
  %v1133 = vmul.f32 %v1028, %v1055
  %v1134 = vmul.f32 %v1029, %v1059
  %v1135 = vmul.f32 %v1030, %v1063
  %v1136 = vadd.f32 %v1072, %v1074
  %v1137 = vadd.f32 %v1073, %v1075
  %v1138 = vadd.f32 %v1080, %v1082
  %v1139 = vadd.f32 %v1081, %v1083
  %v1140 = vadd.f32 %v1088, %v1090
  %v1141 = vadd.f32 %v1089, %v1091
  %v1142 = vadd.f32 %v1096, %v1098
  %v1143 = vadd.f32 %v1097, %v1099
  %v1144 = vadd.f32 %v1104, %v1106
  %v1145 = vadd.f32 %v1105, %v1107
  %v1146 = vadd.f32 %v1112, %v1114
  %v1147 = vadd.f32 %v1113, %v1115
  %v1148 = vadd.f32 %v1120, %v1122
  %v1149 = vadd.f32 %v1121, %v1123
  %v1150 = vadd.f32 %v1128, %v1130
  %v1151 = vadd.f32 %v1129, %v1131
  %v1152 = vadd.f32 %v1136, %v1076
  %v1153 = vadd.f32 %v1137, %v1077
  %v1154 = vadd.f32 %v1138, %v1084
  %v1155 = vadd.f32 %v1139, %v1085
  %v1156 = vadd.f32 %v1140, %v1092
  %v1157 = vadd.f32 %v1141, %v1093
  %v1158 = vadd.f32 %v1142, %v1100
  %v1159 = vadd.f32 %v1143, %v1101
  %v1160 = vadd.f32 %v1144, %v1108
  %v1161 = vadd.f32 %v1145, %v1109
  %v1162 = vadd.f32 %v1146, %v1116
  %v1163 = vadd.f32 %v1147, %v1117
  %v1164 = vadd.f32 %v1148, %v1124
  %v1165 = vadd.f32 %v1149, %v1125
  %v1166 = vadd.f32 %v1150, %v1132
  %v1167 = vadd.f32 %v1151, %v1133
  %v1168 = vadd.f32 %v1152, %v1078
  %v1169 = vadd.f32 %v1153, %v1079
  %v1170 = vadd.f32 %v1154, %v1086
  %v1171 = vadd.f32 %v1155, %v1087
  %v1172 = vadd.f32 %v1156, %v1094
  %v1173 = vadd.f32 %v1157, %v1095
  %v1174 = vadd.f32 %v1158, %v1102
  %v1175 = vadd.f32 %v1159, %v1103
  %v1176 = vadd.f32 %v1160, %v1110
  %v1177 = vadd.f32 %v1161, %v1111
  %v1178 = vadd.f32 %v1162, %v1118
  %v1179 = vadd.f32 %v1163, %v1119
  %v1180 = vadd.f32 %v1164, %v1126
  %v1181 = vadd.f32 %v1165, %v1127
  %v1182 = vadd.f32 %v1166, %v1134
  %v1183 = vadd.f32 %v1167, %v1135
  %1184 = vadd.xlane.f32.xlu0 %v1168
  %v1185 = vpop.xlane.xlu0 %1184
  %1186 = vadd.xlane.f32.xlu0 %v1170
  %v1187 = vpop.xlane.xlu0 %1186
  %1188 = vadd.xlane.f32.xlu0 %v1172
  %v1189 = vpop.xlane.xlu0 %1188
  %1190 = vadd.xlane.f32.xlu0 %v1174
  %v1191 = vpop.xlane.xlu0 %1190
  %1192 = vadd.xlane.f32.xlu0 %v1176
  %v1193 = vpop.xlane.xlu0 %1192
  %1194 = vadd.xlane.f32.xlu0 %v1178
  %v1195 = vpop.xlane.xlu0 %1194
  %1196 = vadd.xlane.f32.xlu0 %v1180
  %v1197 = vpop.xlane.xlu0 %1196
  %1198 = vadd.xlane.f32.xlu0 %v1182
  %v1199 = vpop.xlane.xlu0 %1198
  %1200 = vadd.xlane.f32.xlu0 %v1169
  %v1201 = vpop.xlane.xlu0 %1200
  %1202 = vadd.xlane.f32.xlu0 %v1171
  %v1203 = vpop.xlane.xlu0 %1202
  %1204 = vadd.xlane.f32.xlu0 %v1173
  %v1205 = vpop.xlane.xlu0 %1204
  %1206 = vadd.xlane.f32.xlu0 %v1175
  %v1207 = vpop.xlane.xlu0 %1206
  %1208 = vadd.xlane.f32.xlu0 %v1177
  %v1209 = vpop.xlane.xlu0 %1208
  %1210 = vadd.xlane.f32.xlu0 %v1179
  %v1211 = vpop.xlane.xlu0 %1210
  %1212 = vadd.xlane.f32.xlu0 %v1181
  %v1213 = vpop.xlane.xlu0 %1212
  %1214 = vadd.xlane.f32.xlu0 %v1183
  %v1215 = vpop.xlane.xlu0 %1214
  %1216 = vmatprep.subr.mxu0 %v192
  %1217 = vmatpush1.msra.mxu0 %v191
  %1218 = vmatprep.subr.mxu0 %v184
  %1219 = vmatpush1.msra.mxu0 %v183
  %1220 = vmatprep.subr.mxu0 %v176
  %1221 = vmatpush1.msra.mxu0 %v175
  %1222 = vmatprep.subr.mxu0 %v168
  %1223 = vmatpush1.msra.mxu0 %v167
  %1224 = vmatprep.subr.mxu0 %v160
  %1225 = vmatpush1.msra.mxu0 %v159
  %1226 = vmatprep.subr.mxu0 %v152
  %1227 = vmatpush1.msra.mxu0 %v151
  %1228 = vmatprep.subr.mxu0 %v144
  %1229 = vmatpush1.msra.mxu0 %v143
  %1230 = vmatprep.subr.mxu0 %v136
  %1231 = vmatpush1.msra.mxu0 %v135
  %1232 = vmatprep.subr.mxu0 %v128
  %1233 = vmatpush1.msra.mxu0 %v127
  %1234 = vmatprep.subr.mxu0 %v120
  %1235 = vmatpush1.msra.mxu0 %v119
  %1236 = vmatprep.subr.mxu0 %v112
  %1237 = vmatpush1.msra.mxu0 %v111
  %1238 = vmatprep.subr.mxu0 %v104
  %1239 = vmatpush1.msra.mxu0 %v103
  %1240 = vmatprep.subr.mxu0 %v96
  %1241 = vmatpush1.msra.mxu0 %v95
  %1242 = vmatprep.subr.mxu0 %v88
  %1243 = vmatpush1.msra.mxu0 %v87
  %1244 = vmatprep.subr.mxu0 %v80
  %1245 = vmatpush1.msra.mxu0 %v79
  %1246 = vmatprep.subr.mxu0 %v72
  %1247 = vmatpush1.msra.mxu0 %v71
  %1248 = vmatprep.subr.mxu0 0.0
  %1249 = vmatpush2.msra.mxu0 0.0
  %1250 = vmatprep.subr.mxu0 0.0
  %1251 = vmatpush2.msra.mxu0 0.0
  %1252 = vmatprep.subr.mxu0 0.0
  %1253 = vmatpush2.msra.mxu0 0.0
  %1254 = vmatprep.subr.mxu0 0.0
  %1255 = vmatpush2.msra.mxu0 0.0
  %1256 = vmatprep.subr.mxu0 0.0
  %1257 = vmatpush2.msra.mxu0 0.0
  %1258 = vmatprep.subr.mxu0 0.0
  %1259 = vmatpush2.msra.mxu0 0.0
  %1260 = vmatprep.subr.mxu0 0.0
  %1261 = vmatpush2.msra.mxu0 0.0
  %1262 = vmatprep.subr.mxu0 0.0
  %1263 = vmatpush2.msra.mxu0 0.0
  %1264 = vmatprep.subr.mxu0 0.0
  %1265 = vmatpush2.msra.mxu0 0.0
  %1266 = vmatprep.subr.mxu0 0.0
  %1267 = vmatpush2.msra.mxu0 0.0
  %1268 = vmatprep.subr.mxu0 0.0
  %1269 = vmatpush2.msra.mxu0 0.0
  %1270 = vmatprep.subr.mxu0 0.0
  %1271 = vmatpush2.msra.mxu0 0.0
  %1272 = vmatprep.subr.mxu0 0.0
  %1273 = vmatpush2.msra.mxu0 0.0
  %1274 = vmatprep.subr.mxu0 0.0
  %1275 = vmatpush2.msra.mxu0 0.0
  %1276 = vmatprep.subr.mxu0 0.0
  %1277 = vmatpush2.msra.mxu0 0.0
  %1278 = vmatprep.subr.mxu0 0.0
  %1279 = vmatpush2.msra.mxu0 0.0
  %1280 = vmatprep.mubr.f32.mxu0 0.0
  %1281 = vmatmul.mubr.f32.gmra.mxu0 0.0
  %v1282 = vpop.f32.mrf.mxu0
  %v1283 = vadd.f32 0.0, %v1282
  %v1284 = vpop.f32.mrf.mxu0
  %v1285 = vadd.f32 0.0, %v1284
  %1286 = vdwg.mxu0
  %1287 = vmatprep.subr.mxu0 %v194
  %1288 = vmatpush1.msra.mxu0 %v193
  %1289 = vmatprep.subr.mxu0 %v186
  %1290 = vmatpush1.msra.mxu0 %v185
  %1291 = vmatprep.subr.mxu0 %v178
  %1292 = vmatpush1.msra.mxu0 %v177
  %1293 = vmatprep.subr.mxu0 %v170
  %1294 = vmatpush1.msra.mxu0 %v169
  %1295 = vmatprep.subr.mxu0 %v162
  %1296 = vmatpush1.msra.mxu0 %v161
  %1297 = vmatprep.subr.mxu0 %v154
  %1298 = vmatpush1.msra.mxu0 %v153
  %1299 = vmatprep.subr.mxu0 %v146
  %1300 = vmatpush1.msra.mxu0 %v145
  %1301 = vmatprep.subr.mxu0 %v138
  %1302 = vmatpush1.msra.mxu0 %v137
  %1303 = vmatprep.subr.mxu0 %v130
  %1304 = vmatpush1.msra.mxu0 %v129
  %1305 = vmatprep.subr.mxu0 %v122
  %1306 = vmatpush1.msra.mxu0 %v121
  %1307 = vmatprep.subr.mxu0 %v114
  %1308 = vmatpush1.msra.mxu0 %v113
  %1309 = vmatprep.subr.mxu0 %v106
  %1310 = vmatpush1.msra.mxu0 %v105
  %1311 = vmatprep.subr.mxu0 %v98
  %1312 = vmatpush1.msra.mxu0 %v97
  %1313 = vmatprep.subr.mxu0 %v90
  %1314 = vmatpush1.msra.mxu0 %v89
  %1315 = vmatprep.subr.mxu0 %v82
  %1316 = vmatpush1.msra.mxu0 %v81
  %1317 = vmatprep.subr.mxu0 %v74
  %1318 = vmatpush1.msra.mxu0 %v73
  %1319 = vmatprep.subr.mxu0 0.0
  %1320 = vmatpush2.msra.mxu0 0.0
  %1321 = vmatprep.subr.mxu0 0.0
  %1322 = vmatpush2.msra.mxu0 0.0
  %1323 = vmatprep.subr.mxu0 0.0
  %1324 = vmatpush2.msra.mxu0 0.0
  %1325 = vmatprep.subr.mxu0 0.0
  %1326 = vmatpush2.msra.mxu0 0.0
  %1327 = vmatprep.subr.mxu0 0.0
  %1328 = vmatpush2.msra.mxu0 0.0
  %1329 = vmatprep.subr.mxu0 0.0
  %1330 = vmatpush2.msra.mxu0 0.0
  %1331 = vmatprep.subr.mxu0 0.0
  %1332 = vmatpush2.msra.mxu0 0.0
  %1333 = vmatprep.subr.mxu0 0.0
  %1334 = vmatpush2.msra.mxu0 0.0
  %1335 = vmatprep.subr.mxu0 0.0
  %1336 = vmatpush2.msra.mxu0 0.0
  %1337 = vmatprep.subr.mxu0 0.0
  %1338 = vmatpush2.msra.mxu0 0.0
  %1339 = vmatprep.subr.mxu0 0.0
  %1340 = vmatpush2.msra.mxu0 0.0
  %1341 = vmatprep.subr.mxu0 0.0
  %1342 = vmatpush2.msra.mxu0 0.0
  %1343 = vmatprep.subr.mxu0 0.0
  %1344 = vmatpush2.msra.mxu0 0.0
  %1345 = vmatprep.subr.mxu0 0.0
  %1346 = vmatpush2.msra.mxu0 0.0
  %1347 = vmatprep.subr.mxu0 0.0
  %1348 = vmatpush2.msra.mxu0 0.0
  %1349 = vmatprep.subr.mxu0 0.0
  %1350 = vmatpush2.msra.mxu0 0.0
  %1351 = vmatprep.mubr.f32.mxu0 0.0
  %1352 = vmatmul.mubr.f32.gmra.mxu0 0.0
  %v1353 = vpop.f32.mrf.mxu0
  %v1354 = vadd.f32 0.0, %v1353
  %v1355 = vpop.f32.mrf.mxu0
  %v1356 = vadd.f32 0.0, %v1355
  %1357 = vdwg.mxu0
  %1358 = vmatprep.subr.mxu0 %v196
  %1359 = vmatpush1.msra.mxu0 %v195
  %1360 = vmatprep.subr.mxu0 %v188
  %1361 = vmatpush1.msra.mxu0 %v187
  %1362 = vmatprep.subr.mxu0 %v180
  %1363 = vmatpush1.msra.mxu0 %v179
  %1364 = vmatprep.subr.mxu0 %v172
  %1365 = vmatpush1.msra.mxu0 %v171
  %1366 = vmatprep.subr.mxu0 %v164
  %1367 = vmatpush1.msra.mxu0 %v163
  %1368 = vmatprep.subr.mxu0 %v156
  %1369 = vmatpush1.msra.mxu0 %v155
  %1370 = vmatprep.subr.mxu0 %v148
  %1371 = vmatpush1.msra.mxu0 %v147
  %1372 = vmatprep.subr.mxu0 %v140
  %1373 = vmatpush1.msra.mxu0 %v139
  %1374 = vmatprep.subr.mxu0 %v132
  %1375 = vmatpush1.msra.mxu0 %v131
  %1376 = vmatprep.subr.mxu0 %v124
  %1377 = vmatpush1.msra.mxu0 %v123
  %1378 = vmatprep.subr.mxu0 %v116
  %1379 = vmatpush1.msra.mxu0 %v115
  %1380 = vmatprep.subr.mxu0 %v108
  %1381 = vmatpush1.msra.mxu0 %v107
  %1382 = vmatprep.subr.mxu0 %v100
  %1383 = vmatpush1.msra.mxu0 %v99
  %1384 = vmatprep.subr.mxu0 %v92
  %1385 = vmatpush1.msra.mxu0 %v91
  %1386 = vmatprep.subr.mxu0 %v84
  %1387 = vmatpush1.msra.mxu0 %v83
  %1388 = vmatprep.subr.mxu0 %v76
  %1389 = vmatpush1.msra.mxu0 %v75
  %1390 = vmatprep.subr.mxu0 0.0
  %1391 = vmatpush2.msra.mxu0 0.0
  %1392 = vmatprep.subr.mxu0 0.0
  %1393 = vmatpush2.msra.mxu0 0.0
  %1394 = vmatprep.subr.mxu0 0.0
  %1395 = vmatpush2.msra.mxu0 0.0
  %1396 = vmatprep.subr.mxu0 0.0
  %1397 = vmatpush2.msra.mxu0 0.0
  %1398 = vmatprep.subr.mxu0 0.0
  %1399 = vmatpush2.msra.mxu0 0.0
  %1400 = vmatprep.subr.mxu0 0.0
  %1401 = vmatpush2.msra.mxu0 0.0
  %1402 = vmatprep.subr.mxu0 0.0
  %1403 = vmatpush2.msra.mxu0 0.0
  %1404 = vmatprep.subr.mxu0 0.0
  %1405 = vmatpush2.msra.mxu0 0.0
  %1406 = vmatprep.subr.mxu0 0.0
  %1407 = vmatpush2.msra.mxu0 0.0
  %1408 = vmatprep.subr.mxu0 0.0
  %1409 = vmatpush2.msra.mxu0 0.0
  %1410 = vmatprep.subr.mxu0 0.0
  %1411 = vmatpush2.msra.mxu0 0.0
  %1412 = vmatprep.subr.mxu0 0.0
  %1413 = vmatpush2.msra.mxu0 0.0
  %1414 = vmatprep.subr.mxu0 0.0
  %1415 = vmatpush2.msra.mxu0 0.0
  %1416 = vmatprep.subr.mxu0 0.0
  %1417 = vmatpush2.msra.mxu0 0.0
  %1418 = vmatprep.subr.mxu0 0.0
  %1419 = vmatpush2.msra.mxu0 0.0
  %1420 = vmatprep.subr.mxu0 0.0
  %1421 = vmatpush2.msra.mxu0 0.0
  %1422 = vmatprep.mubr.f32.mxu0 0.0
  %1423 = vmatmul.mubr.f32.gmra.mxu0 0.0
  %v1424 = vpop.f32.mrf.mxu0
  %v1425 = vadd.f32 0.0, %v1424
  %v1426 = vpop.f32.mrf.mxu0
  %v1427 = vadd.f32 0.0, %v1426
  %1428 = vdwg.mxu0
  %1429 = vmatprep.subr.mxu0 %v198
  %1430 = vmatpush1.msra.mxu0 %v197
  %1431 = vmatprep.subr.mxu0 %v190
  %1432 = vmatpush1.msra.mxu0 %v189
  %1433 = vmatprep.subr.mxu0 %v182
  %1434 = vmatpush1.msra.mxu0 %v181
  %1435 = vmatprep.subr.mxu0 %v174
  %1436 = vmatpush1.msra.mxu0 %v173
  %1437 = vmatprep.subr.mxu0 %v166
  %1438 = vmatpush1.msra.mxu0 %v165
  %1439 = vmatprep.subr.mxu0 %v158
  %1440 = vmatpush1.msra.mxu0 %v157
  %1441 = vmatprep.subr.mxu0 %v150
  %1442 = vmatpush1.msra.mxu0 %v149
  %1443 = vmatprep.subr.mxu0 %v142
  %1444 = vmatpush1.msra.mxu0 %v141
  %1445 = vmatprep.subr.mxu0 %v134
  %1446 = vmatpush1.msra.mxu0 %v133
  %1447 = vmatprep.subr.mxu0 %v126
  %1448 = vmatpush1.msra.mxu0 %v125
  %1449 = vmatprep.subr.mxu0 %v118
  %1450 = vmatpush1.msra.mxu0 %v117
  %1451 = vmatprep.subr.mxu0 %v110
  %1452 = vmatpush1.msra.mxu0 %v109
  %1453 = vmatprep.subr.mxu0 %v102
  %1454 = vmatpush1.msra.mxu0 %v101
  %1455 = vmatprep.subr.mxu0 %v94
  %1456 = vmatpush1.msra.mxu0 %v93
  %1457 = vmatprep.subr.mxu0 %v86
  %1458 = vmatpush1.msra.mxu0 %v85
  %1459 = vmatprep.subr.mxu0 %v78
  %1460 = vmatpush1.msra.mxu0 %v77
  %1461 = vmatprep.subr.mxu0 0.0
  %1462 = vmatpush2.msra.mxu0 0.0
  %1463 = vmatprep.subr.mxu0 0.0
  %1464 = vmatpush2.msra.mxu0 0.0
  %1465 = vmatprep.subr.mxu0 0.0
  %1466 = vmatpush2.msra.mxu0 0.0
  %1467 = vmatprep.subr.mxu0 0.0
  %1468 = vmatpush2.msra.mxu0 0.0
  %1469 = vmatprep.subr.mxu0 0.0
  %1470 = vmatpush2.msra.mxu0 0.0
  %1471 = vmatprep.subr.mxu0 0.0
  %1472 = vmatpush2.msra.mxu0 0.0
  %1473 = vmatprep.subr.mxu0 0.0
  %1474 = vmatpush2.msra.mxu0 0.0
  %1475 = vmatprep.subr.mxu0 0.0
  %1476 = vmatpush2.msra.mxu0 0.0
  %1477 = vmatprep.subr.mxu0 0.0
  %1478 = vmatpush2.msra.mxu0 0.0
  %1479 = vmatprep.subr.mxu0 0.0
  %1480 = vmatpush2.msra.mxu0 0.0
  %1481 = vmatprep.subr.mxu0 0.0
  %1482 = vmatpush2.msra.mxu0 0.0
  %1483 = vmatprep.subr.mxu0 0.0
  %1484 = vmatpush2.msra.mxu0 0.0
  %1485 = vmatprep.subr.mxu0 0.0
  %1486 = vmatpush2.msra.mxu0 0.0
  %1487 = vmatprep.subr.mxu0 0.0
  %1488 = vmatpush2.msra.mxu0 0.0
  %1489 = vmatprep.subr.mxu0 0.0
  %1490 = vmatpush2.msra.mxu0 0.0
  %1491 = vmatprep.subr.mxu0 0.0
  %1492 = vmatpush2.msra.mxu0 0.0
  %1493 = vmatprep.mubr.f32.mxu0 0.0
  %1494 = vmatmul.mubr.f32.gmra.mxu0 0.0
  %v1495 = vpop.f32.mrf.mxu0
  %v1496 = vadd.f32 0.0, %v1495
  %v1497 = vpop.f32.mrf.mxu0
  %v1498 = vadd.f32 0.0, %v1497
  %1499 = vdwg.mxu0
  %v1500 = vmax.f32 %v1283, 0.0
  %v1501 = vmax.f32 %v1285, 0.0
  %v1502 = vmax.f32 %v1354, 0.0
  %v1503 = vmax.f32 %v1356, 0.0
  %v1504 = vmax.f32 %v1425, 0.0
  %v1505 = vmax.f32 %v1427, 0.0
  %v1506 = vmax.f32 %v1496, 0.0
  %v1507 = vmax.f32 %v1498, 0.0
  %v1509 = vlaneseq
  %v1510 = vshrl.u32 %v1509, 7
  %v1511 = vsub.s32 0, %v1510
  %v1512 = vrot.slane %v206, %v1511
  %v1513 = vlaneseq
  %v1514 = vshrl.u32 %v1513, 7
  %v1515 = vsub.s32 1, %v1514
  %v1516 = vrot.slane %v206, %v1515
  %v1517 = vlaneseq
  %v1518 = vshrl.u32 %v1517, 7
  %v1519 = vsub.s32 2, %v1518
  %v1520 = vrot.slane %v206, %v1519
  %v1521 = vlaneseq
  %v1522 = vshrl.u32 %v1521, 7
  %v1523 = vsub.s32 3, %v1522
  %v1524 = vrot.slane %v206, %v1523
  %v1525 = vlaneseq
  %v1526 = vshrl.u32 %v1525, 7
  %v1527 = vsub.s32 4, %v1526
  %v1528 = vrot.slane %v206, %v1527
  %v1529 = vlaneseq
  %v1530 = vshrl.u32 %v1529, 7
  %v1531 = vsub.s32 5, %v1530
  %v1532 = vrot.slane %v206, %v1531
  %v1533 = vlaneseq
  %v1534 = vshrl.u32 %v1533, 7
  %v1535 = vsub.s32 6, %v1534
  %v1536 = vrot.slane %v206, %v1535
  %v1537 = vlaneseq
  %v1538 = vshrl.u32 %v1537, 7
  %v1539 = vsub.s32 7, %v1538
  %v1540 = vrot.slane %v206, %v1539
  %v1549 = vmul.f32 %v1500, %v1512
  %v1550 = vmul.f32 %v1501, %v1516
  %v1551 = vmul.f32 %v1502, %v1520
  %v1552 = vmul.f32 %v1503, %v1524
  %v1553 = vmul.f32 %v1504, %v1528
  %v1554 = vmul.f32 %v1505, %v1532
  %v1555 = vmul.f32 %v1506, %v1536
  %v1556 = vmul.f32 %v1507, %v1540
  %v1557 = vadd.f32 %v1549, %v1551
  %v1558 = vadd.f32 %v1550, %v1552
  %v1559 = vadd.f32 %v1557, %v1553
  %v1560 = vadd.f32 %v1558, %v1554
  %v1561 = vadd.f32 %v1559, %v1555
  %v1562 = vadd.f32 %v1560, %v1556
  %1563 = vadd.xlane.f32.xlu0 %v1561
  %v1564 = vpop.xlane.xlu0 %1563
  %1565 = vadd.xlane.f32.xlu0 %v1562
  %v1566 = vpop.xlane.xlu0 %1565
  %v1567 = vadd.f32 %v1185, %v1564
  %v1568 = vadd.f32 %v1201, %v1566
  %v1569 = vmax.f32 %v1567, %v1568
  %v1570 = vsub.f32 %v1567, %v1569
  %v1571 = vmul.f32 %v1570, 1.442695
  %v1572 = vpow.pop %v1571
  %v1573 = vsub.f32 %v1568, %v1569
  %v1574 = vmul.f32 %v1573, 1.442695
  %v1575 = vpow.pop %v1574
  %v1576 = vadd.f32 %v1572, %v1575
  %v1577 = vrcp.pop %v1576
  %v1578 = vmul.f32 %v1572, %v1577
  %v1579 = vmul.f32 %v1575, %v1577
  %v1580 = vadd.f32 %v582, %v1283
  %v1581 = vadd.f32 %v584, %v1285
  %v1582 = vadd.f32 %v695, %v1354
  %v1583 = vadd.f32 %v697, %v1356
  %v1584 = vadd.f32 %v808, %v1425
  %v1585 = vadd.f32 %v810, %v1427
  %v1586 = vadd.f32 %v921, %v1496
  %v1587 = vadd.f32 %v923, %v1498
  %v1588 = vxor.u32 %v1580, 2147483648
  %v1589 = vxor.u32 %v1581, 2147483648
  %v1590 = vxor.u32 %v1582, 2147483648
  %v1591 = vxor.u32 %v1583, 2147483648
  %v1592 = vxor.u32 %v1584, 2147483648
  %v1593 = vxor.u32 %v1585, 2147483648
  %v1594 = vmul.f32 %v1588, 1.442695
  %v1595 = vpow.pop %v1594
  %v1596 = vmul.f32 %v1589, 1.442695
  %v1597 = vpow.pop %v1596
  %v1598 = vmul.f32 %v1590, 1.442695
  %v1599 = vpow.pop %v1598
  %v1600 = vmul.f32 %v1591, 1.442695
  %v1601 = vpow.pop %v1600
  %v1602 = vmul.f32 %v1592, 1.442695
  %v1603 = vpow.pop %v1602
  %v1604 = vmul.f32 %v1593, 1.442695
  %v1605 = vpow.pop %v1604
  %v1606 = vadd.f32 %v1595, 1.0
  %v1607 = vadd.f32 %v1597, 1.0
  %v1608 = vadd.f32 %v1599, 1.0
  %v1609 = vadd.f32 %v1601, 1.0
  %v1610 = vadd.f32 %v1603, 1.0
  %v1611 = vadd.f32 %v1605, 1.0
  %v1612 = vrcp.pop %v1606
  %v1613 = vmul.f32 1.0, %v1612
  %v1614 = vrcp.pop %v1607
  %v1615 = vmul.f32 1.0, %v1614
  %v1616 = vrcp.pop %v1608
  %v1617 = vmul.f32 1.0, %v1616
  %v1618 = vrcp.pop %v1609
  %v1619 = vmul.f32 1.0, %v1618
  %v1620 = vrcp.pop %v1610
  %v1621 = vmul.f32 1.0, %v1620
  %v1622 = vrcp.pop %v1611
  %v1623 = vmul.f32 1.0, %v1622
  %v1624 = vtanh.pop %v1586
  %v1625 = vtanh.pop %v1587
  %v1626 = vmul.f32 %v1617, 0.0
  %v1627 = vmul.f32 %v1613, %v1624
  %v1628 = vadd.f32 %v1626, %v1627
  %v1629 = vtanh.pop %v1628
  %v1630 = vmul.f32 %v1621, %v1629
  %v1631 = vmul.f32 %v1628, %v1578
  %v1632 = vadd.f32 %v1631, 0.0
  %v1633 = vmul.f32 %v1630, %v1578
  %v1634 = vadd.f32 %v1633, 0.0
  %v1635 = vmul.f32 %v1619, 0.0
  %v1636 = vmul.f32 %v1615, %v1625
  %v1637 = vadd.f32 %v1635, %v1636
  %v1638 = vtanh.pop %v1637
  %v1639 = vmul.f32 %v1623, %v1638
  %v1640 = vmul.f32 %v1637, %v1579
  %v1641 = vadd.f32 %v1632, %v1640
  %v1642 = vmul.f32 %v1639, %v1579
  %v1643 = vadd.f32 %v1634, %v1642
  %1644 = vmatprep.subr.mxu0 %v192
  %1645 = vmatpush1.msra.mxu0 %v191
  %1646 = vmatprep.subr.mxu0 %v184
  %1647 = vmatpush1.msra.mxu0 %v183
  %1648 = vmatprep.subr.mxu0 %v176
  %1649 = vmatpush1.msra.mxu0 %v175
  %1650 = vmatprep.subr.mxu0 %v168
  %1651 = vmatpush1.msra.mxu0 %v167
  %1652 = vmatprep.subr.mxu0 %v160
  %1653 = vmatpush1.msra.mxu0 %v159
  %1654 = vmatprep.subr.mxu0 %v152
  %1655 = vmatpush1.msra.mxu0 %v151
  %1656 = vmatprep.subr.mxu0 %v144
  %1657 = vmatpush1.msra.mxu0 %v143
  %1658 = vmatprep.subr.mxu0 %v136
  %1659 = vmatpush1.msra.mxu0 %v135
  %1660 = vmatprep.subr.mxu0 %v128
  %1661 = vmatpush1.msra.mxu0 %v127
  %1662 = vmatprep.subr.mxu0 %v120
  %1663 = vmatpush1.msra.mxu0 %v119
  %1664 = vmatprep.subr.mxu0 %v112
  %1665 = vmatpush1.msra.mxu0 %v111
  %1666 = vmatprep.subr.mxu0 %v104
  %1667 = vmatpush1.msra.mxu0 %v103
  %1668 = vmatprep.subr.mxu0 %v96
  %1669 = vmatpush1.msra.mxu0 %v95
  %1670 = vmatprep.subr.mxu0 %v88
  %1671 = vmatpush1.msra.mxu0 %v87
  %1672 = vmatprep.subr.mxu0 %v80
  %1673 = vmatpush1.msra.mxu0 %v79
  %1674 = vmatprep.subr.mxu0 %v72
  %1675 = vmatpush1.msra.mxu0 %v71
  %1676 = vmatprep.subr.mxu0 0.0
  %1677 = vmatpush2.msra.mxu0 0.0
  %1678 = vmatprep.subr.mxu0 0.0
  %1679 = vmatpush2.msra.mxu0 0.0
  %1680 = vmatprep.subr.mxu0 0.0
  %1681 = vmatpush2.msra.mxu0 0.0
  %1682 = vmatprep.subr.mxu0 0.0
  %1683 = vmatpush2.msra.mxu0 0.0
  %1684 = vmatprep.subr.mxu0 0.0
  %1685 = vmatpush2.msra.mxu0 0.0
  %1686 = vmatprep.subr.mxu0 0.0
  %1687 = vmatpush2.msra.mxu0 0.0
  %1688 = vmatprep.subr.mxu0 0.0
  %1689 = vmatpush2.msra.mxu0 0.0
  %1690 = vmatprep.subr.mxu0 0.0
  %1691 = vmatpush2.msra.mxu0 0.0
  %1692 = vmatprep.subr.mxu0 0.0
  %1693 = vmatpush2.msra.mxu0 0.0
  %1694 = vmatprep.subr.mxu0 0.0
  %1695 = vmatpush2.msra.mxu0 0.0
  %1696 = vmatprep.subr.mxu0 0.0
  %1697 = vmatpush2.msra.mxu0 0.0
  %1698 = vmatprep.subr.mxu0 0.0
  %1699 = vmatpush2.msra.mxu0 0.0
  %1700 = vmatprep.subr.mxu0 0.0
  %1701 = vmatpush2.msra.mxu0 0.0
  %1702 = vmatprep.subr.mxu0 0.0
  %1703 = vmatpush2.msra.mxu0 0.0
  %1704 = vmatprep.subr.mxu0 0.0
  %1705 = vmatpush2.msra.mxu0 0.0
  %1706 = vmatprep.subr.mxu0 0.0
  %1707 = vmatpush2.msra.mxu0 0.0
  %1708 = vmatprep.mubr.f32.mxu0 0.0
  %1709 = vmatmul.mubr.f32.gmra.mxu0 %v1643
  %v1710 = vpop.f32.mrf.mxu0
  %v1711 = vadd.f32 0.0, %v1710
  %v1712 = vpop.f32.mrf.mxu0
  %v1713 = vadd.f32 0.0, %v1712
  %1714 = vdwg.mxu0
  %1715 = vmatprep.subr.mxu0 %v194
  %1716 = vmatpush1.msra.mxu0 %v193
  %1717 = vmatprep.subr.mxu0 %v186
  %1718 = vmatpush1.msra.mxu0 %v185
  %1719 = vmatprep.subr.mxu0 %v178
  %1720 = vmatpush1.msra.mxu0 %v177
  %1721 = vmatprep.subr.mxu0 %v170
  %1722 = vmatpush1.msra.mxu0 %v169
  %1723 = vmatprep.subr.mxu0 %v162
  %1724 = vmatpush1.msra.mxu0 %v161
  %1725 = vmatprep.subr.mxu0 %v154
  %1726 = vmatpush1.msra.mxu0 %v153
  %1727 = vmatprep.subr.mxu0 %v146
  %1728 = vmatpush1.msra.mxu0 %v145
  %1729 = vmatprep.subr.mxu0 %v138
  %1730 = vmatpush1.msra.mxu0 %v137
  %1731 = vmatprep.subr.mxu0 %v130
  %1732 = vmatpush1.msra.mxu0 %v129
  %1733 = vmatprep.subr.mxu0 %v122
  %1734 = vmatpush1.msra.mxu0 %v121
  %1735 = vmatprep.subr.mxu0 %v114
  %1736 = vmatpush1.msra.mxu0 %v113
  %1737 = vmatprep.subr.mxu0 %v106
  %1738 = vmatpush1.msra.mxu0 %v105
  %1739 = vmatprep.subr.mxu0 %v98
  %1740 = vmatpush1.msra.mxu0 %v97
  %1741 = vmatprep.subr.mxu0 %v90
  %1742 = vmatpush1.msra.mxu0 %v89
  %1743 = vmatprep.subr.mxu0 %v82
  %1744 = vmatpush1.msra.mxu0 %v81
  %1745 = vmatprep.subr.mxu0 %v74
  %1746 = vmatpush1.msra.mxu0 %v73
  %1747 = vmatprep.subr.mxu0 0.0
  %1748 = vmatpush2.msra.mxu0 0.0
  %1749 = vmatprep.subr.mxu0 0.0
  %1750 = vmatpush2.msra.mxu0 0.0
  %1751 = vmatprep.subr.mxu0 0.0
  %1752 = vmatpush2.msra.mxu0 0.0
  %1753 = vmatprep.subr.mxu0 0.0
  %1754 = vmatpush2.msra.mxu0 0.0
  %1755 = vmatprep.subr.mxu0 0.0
  %1756 = vmatpush2.msra.mxu0 0.0
  %1757 = vmatprep.subr.mxu0 0.0
  %1758 = vmatpush2.msra.mxu0 0.0
  %1759 = vmatprep.subr.mxu0 0.0
  %1760 = vmatpush2.msra.mxu0 0.0
  %1761 = vmatprep.subr.mxu0 0.0
  %1762 = vmatpush2.msra.mxu0 0.0
  %1763 = vmatprep.subr.mxu0 0.0
  %1764 = vmatpush2.msra.mxu0 0.0
  %1765 = vmatprep.subr.mxu0 0.0
  %1766 = vmatpush2.msra.mxu0 0.0
  %1767 = vmatprep.subr.mxu0 0.0
  %1768 = vmatpush2.msra.mxu0 0.0
  %1769 = vmatprep.subr.mxu0 0.0
  %1770 = vmatpush2.msra.mxu0 0.0
  %1771 = vmatprep.subr.mxu0 0.0
  %1772 = vmatpush2.msra.mxu0 0.0
  %1773 = vmatprep.subr.mxu0 0.0
  %1774 = vmatpush2.msra.mxu0 0.0
  %1775 = vmatprep.subr.mxu0 0.0
  %1776 = vmatpush2.msra.mxu0 0.0
  %1777 = vmatprep.subr.mxu0 0.0
  %1778 = vmatpush2.msra.mxu0 0.0
  %1779 = vmatprep.mubr.f32.mxu0 0.0
  %1780 = vmatmul.mubr.f32.gmra.mxu0 %v1643
  %v1781 = vpop.f32.mrf.mxu0
  %v1782 = vadd.f32 0.0, %v1781
  %v1783 = vpop.f32.mrf.mxu0
  %v1784 = vadd.f32 0.0, %v1783
  %1785 = vdwg.mxu0
  %1786 = vmatprep.subr.mxu0 %v196
  %1787 = vmatpush1.msra.mxu0 %v195
  %1788 = vmatprep.subr.mxu0 %v188
  %1789 = vmatpush1.msra.mxu0 %v187
  %1790 = vmatprep.subr.mxu0 %v180
  %1791 = vmatpush1.msra.mxu0 %v179
  %1792 = vmatprep.subr.mxu0 %v172
  %1793 = vmatpush1.msra.mxu0 %v171
  %1794 = vmatprep.subr.mxu0 %v164
  %1795 = vmatpush1.msra.mxu0 %v163
  %1796 = vmatprep.subr.mxu0 %v156
  %1797 = vmatpush1.msra.mxu0 %v155
  %1798 = vmatprep.subr.mxu0 %v148
  %1799 = vmatpush1.msra.mxu0 %v147
  %1800 = vmatprep.subr.mxu0 %v140
  %1801 = vmatpush1.msra.mxu0 %v139
  %1802 = vmatprep.subr.mxu0 %v132
  %1803 = vmatpush1.msra.mxu0 %v131
  %1804 = vmatprep.subr.mxu0 %v124
  %1805 = vmatpush1.msra.mxu0 %v123
  %1806 = vmatprep.subr.mxu0 %v116
  %1807 = vmatpush1.msra.mxu0 %v115
  %1808 = vmatprep.subr.mxu0 %v108
  %1809 = vmatpush1.msra.mxu0 %v107
  %1810 = vmatprep.subr.mxu0 %v100
  %1811 = vmatpush1.msra.mxu0 %v99
  %1812 = vmatprep.subr.mxu0 %v92
  %1813 = vmatpush1.msra.mxu0 %v91
  %1814 = vmatprep.subr.mxu0 %v84
  %1815 = vmatpush1.msra.mxu0 %v83
  %1816 = vmatprep.subr.mxu0 %v76
  %1817 = vmatpush1.msra.mxu0 %v75
  %1818 = vmatprep.subr.mxu0 0.0
  %1819 = vmatpush2.msra.mxu0 0.0
  %1820 = vmatprep.subr.mxu0 0.0
  %1821 = vmatpush2.msra.mxu0 0.0
  %1822 = vmatprep.subr.mxu0 0.0
  %1823 = vmatpush2.msra.mxu0 0.0
  %1824 = vmatprep.subr.mxu0 0.0
  %1825 = vmatpush2.msra.mxu0 0.0
  %1826 = vmatprep.subr.mxu0 0.0
  %1827 = vmatpush2.msra.mxu0 0.0
  %1828 = vmatprep.subr.mxu0 0.0
  %1829 = vmatpush2.msra.mxu0 0.0
  %1830 = vmatprep.subr.mxu0 0.0
  %1831 = vmatpush2.msra.mxu0 0.0
  %1832 = vmatprep.subr.mxu0 0.0
  %1833 = vmatpush2.msra.mxu0 0.0
  %1834 = vmatprep.subr.mxu0 0.0
  %1835 = vmatpush2.msra.mxu0 0.0
  %1836 = vmatprep.subr.mxu0 0.0
  %1837 = vmatpush2.msra.mxu0 0.0
  %1838 = vmatprep.subr.mxu0 0.0
  %1839 = vmatpush2.msra.mxu0 0.0
  %1840 = vmatprep.subr.mxu0 0.0
  %1841 = vmatpush2.msra.mxu0 0.0
  %1842 = vmatprep.subr.mxu0 0.0
  %1843 = vmatpush2.msra.mxu0 0.0
  %1844 = vmatprep.subr.mxu0 0.0
  %1845 = vmatpush2.msra.mxu0 0.0
  %1846 = vmatprep.subr.mxu0 0.0
  %1847 = vmatpush2.msra.mxu0 0.0
  %1848 = vmatprep.subr.mxu0 0.0
  %1849 = vmatpush2.msra.mxu0 0.0
  %1850 = vmatprep.mubr.f32.mxu0 0.0
  %1851 = vmatmul.mubr.f32.gmra.mxu0 %v1643
  %v1852 = vpop.f32.mrf.mxu0
  %v1853 = vadd.f32 0.0, %v1852
  %v1854 = vpop.f32.mrf.mxu0
  %v1855 = vadd.f32 0.0, %v1854
  %1856 = vdwg.mxu0
  %1857 = vmatprep.subr.mxu0 %v198
  %1858 = vmatpush1.msra.mxu0 %v197
  %1859 = vmatprep.subr.mxu0 %v190
  %1860 = vmatpush1.msra.mxu0 %v189
  %1861 = vmatprep.subr.mxu0 %v182
  %1862 = vmatpush1.msra.mxu0 %v181
  %1863 = vmatprep.subr.mxu0 %v174
  %1864 = vmatpush1.msra.mxu0 %v173
  %1865 = vmatprep.subr.mxu0 %v166
  %1866 = vmatpush1.msra.mxu0 %v165
  %1867 = vmatprep.subr.mxu0 %v158
  %1868 = vmatpush1.msra.mxu0 %v157
  %1869 = vmatprep.subr.mxu0 %v150
  %1870 = vmatpush1.msra.mxu0 %v149
  %1871 = vmatprep.subr.mxu0 %v142
  %1872 = vmatpush1.msra.mxu0 %v141
  %1873 = vmatprep.subr.mxu0 %v134
  %1874 = vmatpush1.msra.mxu0 %v133
  %1875 = vmatprep.subr.mxu0 %v126
  %1876 = vmatpush1.msra.mxu0 %v125
  %1877 = vmatprep.subr.mxu0 %v118
  %1878 = vmatpush1.msra.mxu0 %v117
  %1879 = vmatprep.subr.mxu0 %v110
  %1880 = vmatpush1.msra.mxu0 %v109
  %1881 = vmatprep.subr.mxu0 %v102
  %1882 = vmatpush1.msra.mxu0 %v101
  %1883 = vmatprep.subr.mxu0 %v94
  %1884 = vmatpush1.msra.mxu0 %v93
  %1885 = vmatprep.subr.mxu0 %v86
  %1886 = vmatpush1.msra.mxu0 %v85
  %1887 = vmatprep.subr.mxu0 %v78
  %1888 = vmatpush1.msra.mxu0 %v77
  %1889 = vmatprep.subr.mxu0 0.0
  %1890 = vmatpush2.msra.mxu0 0.0
  %1891 = vmatprep.subr.mxu0 0.0
  %1892 = vmatpush2.msra.mxu0 0.0
  %1893 = vmatprep.subr.mxu0 0.0
  %1894 = vmatpush2.msra.mxu0 0.0
  %1895 = vmatprep.subr.mxu0 0.0
  %1896 = vmatpush2.msra.mxu0 0.0
  %1897 = vmatprep.subr.mxu0 0.0
  %1898 = vmatpush2.msra.mxu0 0.0
  %1899 = vmatprep.subr.mxu0 0.0
  %1900 = vmatpush2.msra.mxu0 0.0
  %1901 = vmatprep.subr.mxu0 0.0
  %1902 = vmatpush2.msra.mxu0 0.0
  %1903 = vmatprep.subr.mxu0 0.0
  %1904 = vmatpush2.msra.mxu0 0.0
  %1905 = vmatprep.subr.mxu0 0.0
  %1906 = vmatpush2.msra.mxu0 0.0
  %1907 = vmatprep.subr.mxu0 0.0
  %1908 = vmatpush2.msra.mxu0 0.0
  %1909 = vmatprep.subr.mxu0 0.0
  %1910 = vmatpush2.msra.mxu0 0.0
  %1911 = vmatprep.subr.mxu0 0.0
  %1912 = vmatpush2.msra.mxu0 0.0
  %1913 = vmatprep.subr.mxu0 0.0
  %1914 = vmatpush2.msra.mxu0 0.0
  %1915 = vmatprep.subr.mxu0 0.0
  %1916 = vmatpush2.msra.mxu0 0.0
  %1917 = vmatprep.subr.mxu0 0.0
  %1918 = vmatpush2.msra.mxu0 0.0
  %1919 = vmatprep.subr.mxu0 0.0
  %1920 = vmatpush2.msra.mxu0 0.0
  %1921 = vmatprep.mubr.f32.mxu0 0.0
  %1922 = vmatmul.mubr.f32.gmra.mxu0 %v1643
  %v1923 = vpop.f32.mrf.mxu0
  %v1924 = vadd.f32 0.0, %v1923
  %v1925 = vpop.f32.mrf.mxu0
  %v1926 = vadd.f32 0.0, %v1925
  %1927 = vdwg.mxu0
  %v1928 = vmax.f32 %v1711, 0.0
  %v1929 = vmax.f32 %v1713, 0.0
  %v1930 = vmax.f32 %v1782, 0.0
  %v1931 = vmax.f32 %v1784, 0.0
  %v1932 = vmax.f32 %v1853, 0.0
  %v1933 = vmax.f32 %v1855, 0.0
  %v1934 = vmax.f32 %v1924, 0.0
  %v1935 = vmax.f32 %v1926, 0.0
  %v1936 = vmul.f32 %v1928, %v1512
  %v1937 = vmul.f32 %v1929, %v1516
  %v1938 = vmul.f32 %v1930, %v1520
  %v1939 = vmul.f32 %v1931, %v1524
  %v1940 = vmul.f32 %v1932, %v1528
  %v1941 = vmul.f32 %v1933, %v1532
  %v1942 = vmul.f32 %v1934, %v1536
  %v1943 = vmul.f32 %v1935, %v1540
  %v1944 = vadd.f32 %v1936, %v1938
  %v1945 = vadd.f32 %v1937, %v1939
  %v1946 = vadd.f32 %v1944, %v1940
  %v1947 = vadd.f32 %v1945, %v1941
  %v1948 = vadd.f32 %v1946, %v1942
  %v1949 = vadd.f32 %v1947, %v1943
  %1950 = vadd.xlane.f32.xlu0 %v1948
  %v1951 = vpop.xlane.xlu0 %1950
  %1952 = vadd.xlane.f32.xlu0 %v1949
  %v1953 = vpop.xlane.xlu0 %1952
  %v1954 = vadd.f32 %v1187, %v1951
  %v1955 = vadd.f32 %v1203, %v1953
  %v1956 = vmax.f32 %v1954, %v1955
  %v1957 = vsub.f32 %v1954, %v1956
  %v1958 = vmul.f32 %v1957, 1.442695
  %v1959 = vpow.pop %v1958
  %v1960 = vsub.f32 %v1955, %v1956
  %v1961 = vmul.f32 %v1960, 1.442695
  %v1962 = vpow.pop %v1961
  %v1963 = vadd.f32 %v1959, %v1962
  %v1964 = vrcp.pop %v1963
  %v1965 = vmul.f32 %v1959, %v1964
  %v1966 = vmul.f32 %v1962, %v1964
  %v1967 = vadd.f32 %v588, %v1711
  %v1968 = vadd.f32 %v590, %v1713
  %v1969 = vadd.f32 %v701, %v1782
  %v1970 = vadd.f32 %v703, %v1784
  %v1971 = vadd.f32 %v814, %v1853
  %v1972 = vadd.f32 %v816, %v1855
  %v1973 = vadd.f32 %v927, %v1924
  %v1974 = vadd.f32 %v929, %v1926
  %v1975 = vxor.u32 %v1967, 2147483648
  %v1976 = vxor.u32 %v1968, 2147483648
  %v1977 = vxor.u32 %v1969, 2147483648
  %v1978 = vxor.u32 %v1970, 2147483648
  %v1979 = vxor.u32 %v1971, 2147483648
  %v1980 = vxor.u32 %v1972, 2147483648
  %v1981 = vmul.f32 %v1975, 1.442695
  %v1982 = vpow.pop %v1981
  %v1983 = vmul.f32 %v1976, 1.442695
  %v1984 = vpow.pop %v1983
  %v1985 = vmul.f32 %v1977, 1.442695
  %v1986 = vpow.pop %v1985
  %v1987 = vmul.f32 %v1978, 1.442695
  %v1988 = vpow.pop %v1987
  %v1989 = vmul.f32 %v1979, 1.442695
  %v1990 = vpow.pop %v1989
  %v1991 = vmul.f32 %v1980, 1.442695
  %v1992 = vpow.pop %v1991
  %v1993 = vadd.f32 %v1982, 1.0
  %v1994 = vadd.f32 %v1984, 1.0
  %v1995 = vadd.f32 %v1986, 1.0
  %v1996 = vadd.f32 %v1988, 1.0
  %v1997 = vadd.f32 %v1990, 1.0
  %v1998 = vadd.f32 %v1992, 1.0
  %v1999 = vrcp.pop %v1993
  %v2000 = vmul.f32 1.0, %v1999
  %v2001 = vrcp.pop %v1994
  %v2002 = vmul.f32 1.0, %v2001
  %v2003 = vrcp.pop %v1995
  %v2004 = vmul.f32 1.0, %v2003
  %v2005 = vrcp.pop %v1996
  %v2006 = vmul.f32 1.0, %v2005
  %v2007 = vrcp.pop %v1997
  %v2008 = vmul.f32 1.0, %v2007
  %v2009 = vrcp.pop %v1998
  %v2010 = vmul.f32 1.0, %v2009
  %v2011 = vtanh.pop %v1973
  %v2012 = vtanh.pop %v1974
  %v2013 = vmul.f32 %v1641, %v2004
  %v2014 = vmul.f32 %v2000, %v2011
  %v2015 = vadd.f32 %v2013, %v2014
  %v2016 = vtanh.pop %v2015
  %v2017 = vmul.f32 %v2008, %v2016
  %v2018 = vmul.f32 %v2015, %v1965
  %v2019 = vadd.f32 %v2018, 0.0
  %v2020 = vmul.f32 %v2017, %v1965
  %v2021 = vadd.f32 %v2020, 0.0
  %v2022 = vmul.f32 %v1641, %v2006
  %v2023 = vmul.f32 %v2002, %v2012
  %v2024 = vadd.f32 %v2022, %v2023
  %v2025 = vtanh.pop %v2024
  %v2026 = vmul.f32 %v2010, %v2025
  %v2027 = vmul.f32 %v2024, %v1966
  %v2028 = vadd.f32 %v2019, %v2027
  %v2029 = vmul.f32 %v2026, %v1966
  %v2030 = vadd.f32 %v2021, %v2029
  %2031 = vmatprep.subr.mxu0 %v192
  %2032 = vmatpush1.msra.mxu0 %v191
  %2033 = vmatprep.subr.mxu0 %v184
  %2034 = vmatpush1.msra.mxu0 %v183
  %2035 = vmatprep.subr.mxu0 %v176
  %2036 = vmatpush1.msra.mxu0 %v175
  %2037 = vmatprep.subr.mxu0 %v168
  %2038 = vmatpush1.msra.mxu0 %v167
  %2039 = vmatprep.subr.mxu0 %v160
  %2040 = vmatpush1.msra.mxu0 %v159
  %2041 = vmatprep.subr.mxu0 %v152
  %2042 = vmatpush1.msra.mxu0 %v151
  %2043 = vmatprep.subr.mxu0 %v144
  %2044 = vmatpush1.msra.mxu0 %v143
  %2045 = vmatprep.subr.mxu0 %v136
  %2046 = vmatpush1.msra.mxu0 %v135
  %2047 = vmatprep.subr.mxu0 %v128
  %2048 = vmatpush1.msra.mxu0 %v127
  %2049 = vmatprep.subr.mxu0 %v120
  %2050 = vmatpush1.msra.mxu0 %v119
  %2051 = vmatprep.subr.mxu0 %v112
  %2052 = vmatpush1.msra.mxu0 %v111
  %2053 = vmatprep.subr.mxu0 %v104
  %2054 = vmatpush1.msra.mxu0 %v103
  %2055 = vmatprep.subr.mxu0 %v96
  %2056 = vmatpush1.msra.mxu0 %v95
  %2057 = vmatprep.subr.mxu0 %v88
  %2058 = vmatpush1.msra.mxu0 %v87
  %2059 = vmatprep.subr.mxu0 %v80
  %2060 = vmatpush1.msra.mxu0 %v79
  %2061 = vmatprep.subr.mxu0 %v72
  %2062 = vmatpush1.msra.mxu0 %v71
  %2063 = vmatprep.subr.mxu0 0.0
  %2064 = vmatpush2.msra.mxu0 0.0
  %2065 = vmatprep.subr.mxu0 0.0
  %2066 = vmatpush2.msra.mxu0 0.0
  %2067 = vmatprep.subr.mxu0 0.0
  %2068 = vmatpush2.msra.mxu0 0.0
  %2069 = vmatprep.subr.mxu0 0.0
  %2070 = vmatpush2.msra.mxu0 0.0
  %2071 = vmatprep.subr.mxu0 0.0
  %2072 = vmatpush2.msra.mxu0 0.0
  %2073 = vmatprep.subr.mxu0 0.0
  %2074 = vmatpush2.msra.mxu0 0.0
  %2075 = vmatprep.subr.mxu0 0.0
  %2076 = vmatpush2.msra.mxu0 0.0
  %2077 = vmatprep.subr.mxu0 0.0
  %2078 = vmatpush2.msra.mxu0 0.0
  %2079 = vmatprep.subr.mxu0 0.0
  %2080 = vmatpush2.msra.mxu0 0.0
  %2081 = vmatprep.subr.mxu0 0.0
  %2082 = vmatpush2.msra.mxu0 0.0
  %2083 = vmatprep.subr.mxu0 0.0
  %2084 = vmatpush2.msra.mxu0 0.0
  %2085 = vmatprep.subr.mxu0 0.0
  %2086 = vmatpush2.msra.mxu0 0.0
  %2087 = vmatprep.subr.mxu0 0.0
  %2088 = vmatpush2.msra.mxu0 0.0
  %2089 = vmatprep.subr.mxu0 0.0
  %2090 = vmatpush2.msra.mxu0 0.0
  %2091 = vmatprep.subr.mxu0 0.0
  %2092 = vmatpush2.msra.mxu0 0.0
  %2093 = vmatprep.subr.mxu0 0.0
  %2094 = vmatpush2.msra.mxu0 0.0
  %2095 = vmatprep.mubr.f32.mxu0 0.0
  %2096 = vmatmul.mubr.f32.gmra.mxu0 %v2030
  %v2097 = vpop.f32.mrf.mxu0
  %v2098 = vadd.f32 0.0, %v2097
  %v2099 = vpop.f32.mrf.mxu0
  %v2100 = vadd.f32 0.0, %v2099
  %2101 = vdwg.mxu0
  %2102 = vmatprep.subr.mxu0 %v194
  %2103 = vmatpush1.msra.mxu0 %v193
  %2104 = vmatprep.subr.mxu0 %v186
  %2105 = vmatpush1.msra.mxu0 %v185
  %2106 = vmatprep.subr.mxu0 %v178
  %2107 = vmatpush1.msra.mxu0 %v177
  %2108 = vmatprep.subr.mxu0 %v170
  %2109 = vmatpush1.msra.mxu0 %v169
  %2110 = vmatprep.subr.mxu0 %v162
  %2111 = vmatpush1.msra.mxu0 %v161
  %2112 = vmatprep.subr.mxu0 %v154
  %2113 = vmatpush1.msra.mxu0 %v153
  %2114 = vmatprep.subr.mxu0 %v146
  %2115 = vmatpush1.msra.mxu0 %v145
  %2116 = vmatprep.subr.mxu0 %v138
  %2117 = vmatpush1.msra.mxu0 %v137
  %2118 = vmatprep.subr.mxu0 %v130
  %2119 = vmatpush1.msra.mxu0 %v129
  %2120 = vmatprep.subr.mxu0 %v122
  %2121 = vmatpush1.msra.mxu0 %v121
  %2122 = vmatprep.subr.mxu0 %v114
  %2123 = vmatpush1.msra.mxu0 %v113
  %2124 = vmatprep.subr.mxu0 %v106
  %2125 = vmatpush1.msra.mxu0 %v105
  %2126 = vmatprep.subr.mxu0 %v98
  %2127 = vmatpush1.msra.mxu0 %v97
  %2128 = vmatprep.subr.mxu0 %v90
  %2129 = vmatpush1.msra.mxu0 %v89
  %2130 = vmatprep.subr.mxu0 %v82
  %2131 = vmatpush1.msra.mxu0 %v81
  %2132 = vmatprep.subr.mxu0 %v74
  %2133 = vmatpush1.msra.mxu0 %v73
  %2134 = vmatprep.subr.mxu0 0.0
  %2135 = vmatpush2.msra.mxu0 0.0
  %2136 = vmatprep.subr.mxu0 0.0
  %2137 = vmatpush2.msra.mxu0 0.0
  %2138 = vmatprep.subr.mxu0 0.0
  %2139 = vmatpush2.msra.mxu0 0.0
  %2140 = vmatprep.subr.mxu0 0.0
  %2141 = vmatpush2.msra.mxu0 0.0
  %2142 = vmatprep.subr.mxu0 0.0
  %2143 = vmatpush2.msra.mxu0 0.0
  %2144 = vmatprep.subr.mxu0 0.0
  %2145 = vmatpush2.msra.mxu0 0.0
  %2146 = vmatprep.subr.mxu0 0.0
  %2147 = vmatpush2.msra.mxu0 0.0
  %2148 = vmatprep.subr.mxu0 0.0
  %2149 = vmatpush2.msra.mxu0 0.0
  %2150 = vmatprep.subr.mxu0 0.0
  %2151 = vmatpush2.msra.mxu0 0.0
  %2152 = vmatprep.subr.mxu0 0.0
  %2153 = vmatpush2.msra.mxu0 0.0
  %2154 = vmatprep.subr.mxu0 0.0
  %2155 = vmatpush2.msra.mxu0 0.0
  %2156 = vmatprep.subr.mxu0 0.0
  %2157 = vmatpush2.msra.mxu0 0.0
  %2158 = vmatprep.subr.mxu0 0.0
  %2159 = vmatpush2.msra.mxu0 0.0
  %2160 = vmatprep.subr.mxu0 0.0
  %2161 = vmatpush2.msra.mxu0 0.0
  %2162 = vmatprep.subr.mxu0 0.0
  %2163 = vmatpush2.msra.mxu0 0.0
  %2164 = vmatprep.subr.mxu0 0.0
  %2165 = vmatpush2.msra.mxu0 0.0
  %2166 = vmatprep.mubr.f32.mxu0 0.0
  %2167 = vmatmul.mubr.f32.gmra.mxu0 %v2030
  %v2168 = vpop.f32.mrf.mxu0
  %v2169 = vadd.f32 0.0, %v2168
  %v2170 = vpop.f32.mrf.mxu0
  %v2171 = vadd.f32 0.0, %v2170
  %2172 = vdwg.mxu0
  %2173 = vmatprep.subr.mxu0 %v196
  %2174 = vmatpush1.msra.mxu0 %v195
  %2175 = vmatprep.subr.mxu0 %v188
  %2176 = vmatpush1.msra.mxu0 %v187
  %2177 = vmatprep.subr.mxu0 %v180
  %2178 = vmatpush1.msra.mxu0 %v179
  %2179 = vmatprep.subr.mxu0 %v172
  %2180 = vmatpush1.msra.mxu0 %v171
  %2181 = vmatprep.subr.mxu0 %v164
  %2182 = vmatpush1.msra.mxu0 %v163
  %2183 = vmatprep.subr.mxu0 %v156
  %2184 = vmatpush1.msra.mxu0 %v155
  %2185 = vmatprep.subr.mxu0 %v148
  %2186 = vmatpush1.msra.mxu0 %v147
  %2187 = vmatprep.subr.mxu0 %v140
  %2188 = vmatpush1.msra.mxu0 %v139
  %2189 = vmatprep.subr.mxu0 %v132
  %2190 = vmatpush1.msra.mxu0 %v131
  %2191 = vmatprep.subr.mxu0 %v124
  %2192 = vmatpush1.msra.mxu0 %v123
  %2193 = vmatprep.subr.mxu0 %v116
  %2194 = vmatpush1.msra.mxu0 %v115
  %2195 = vmatprep.subr.mxu0 %v108
  %2196 = vmatpush1.msra.mxu0 %v107
  %2197 = vmatprep.subr.mxu0 %v100
  %2198 = vmatpush1.msra.mxu0 %v99
  %2199 = vmatprep.subr.mxu0 %v92
  %2200 = vmatpush1.msra.mxu0 %v91
  %2201 = vmatprep.subr.mxu0 %v84
  %2202 = vmatpush1.msra.mxu0 %v83
  %2203 = vmatprep.subr.mxu0 %v76
  %2204 = vmatpush1.msra.mxu0 %v75
  %2205 = vmatprep.subr.mxu0 0.0
  %2206 = vmatpush2.msra.mxu0 0.0
  %2207 = vmatprep.subr.mxu0 0.0
  %2208 = vmatpush2.msra.mxu0 0.0
  %2209 = vmatprep.subr.mxu0 0.0
  %2210 = vmatpush2.msra.mxu0 0.0
  %2211 = vmatprep.subr.mxu0 0.0
  %2212 = vmatpush2.msra.mxu0 0.0
  %2213 = vmatprep.subr.mxu0 0.0
  %2214 = vmatpush2.msra.mxu0 0.0
  %2215 = vmatprep.subr.mxu0 0.0
  %2216 = vmatpush2.msra.mxu0 0.0
  %2217 = vmatprep.subr.mxu0 0.0
  %2218 = vmatpush2.msra.mxu0 0.0
  %2219 = vmatprep.subr.mxu0 0.0
  %2220 = vmatpush2.msra.mxu0 0.0
  %2221 = vmatprep.subr.mxu0 0.0
  %2222 = vmatpush2.msra.mxu0 0.0
  %2223 = vmatprep.subr.mxu0 0.0
  %2224 = vmatpush2.msra.mxu0 0.0
  %2225 = vmatprep.subr.mxu0 0.0
  %2226 = vmatpush2.msra.mxu0 0.0
  %2227 = vmatprep.subr.mxu0 0.0
  %2228 = vmatpush2.msra.mxu0 0.0
  %2229 = vmatprep.subr.mxu0 0.0
  %2230 = vmatpush2.msra.mxu0 0.0
  %2231 = vmatprep.subr.mxu0 0.0
  %2232 = vmatpush2.msra.mxu0 0.0
  %2233 = vmatprep.subr.mxu0 0.0
  %2234 = vmatpush2.msra.mxu0 0.0
  %2235 = vmatprep.subr.mxu0 0.0
  %2236 = vmatpush2.msra.mxu0 0.0
  %2237 = vmatprep.mubr.f32.mxu0 0.0
  %2238 = vmatmul.mubr.f32.gmra.mxu0 %v2030
  %v2239 = vpop.f32.mrf.mxu0
  %v2240 = vadd.f32 0.0, %v2239
  %v2241 = vpop.f32.mrf.mxu0
  %v2242 = vadd.f32 0.0, %v2241
  %2243 = vdwg.mxu0
  %2244 = vmatprep.subr.mxu0 %v198
  %2245 = vmatpush1.msra.mxu0 %v197
  %2246 = vmatprep.subr.mxu0 %v190
  %2247 = vmatpush1.msra.mxu0 %v189
  %2248 = vmatprep.subr.mxu0 %v182
  %2249 = vmatpush1.msra.mxu0 %v181
  %2250 = vmatprep.subr.mxu0 %v174
  %2251 = vmatpush1.msra.mxu0 %v173
  %2252 = vmatprep.subr.mxu0 %v166
  %2253 = vmatpush1.msra.mxu0 %v165
  %2254 = vmatprep.subr.mxu0 %v158
  %2255 = vmatpush1.msra.mxu0 %v157
  %2256 = vmatprep.subr.mxu0 %v150
  %2257 = vmatpush1.msra.mxu0 %v149
  %2258 = vmatprep.subr.mxu0 %v142
  %2259 = vmatpush1.msra.mxu0 %v141
  %2260 = vmatprep.subr.mxu0 %v134
  %2261 = vmatpush1.msra.mxu0 %v133
  %2262 = vmatprep.subr.mxu0 %v126
  %2263 = vmatpush1.msra.mxu0 %v125
  %2264 = vmatprep.subr.mxu0 %v118
  %2265 = vmatpush1.msra.mxu0 %v117
  %2266 = vmatprep.subr.mxu0 %v110
  %2267 = vmatpush1.msra.mxu0 %v109
  %2268 = vmatprep.subr.mxu0 %v102
  %2269 = vmatpush1.msra.mxu0 %v101
  %2270 = vmatprep.subr.mxu0 %v94
  %2271 = vmatpush1.msra.mxu0 %v93
  %2272 = vmatprep.subr.mxu0 %v86
  %2273 = vmatpush1.msra.mxu0 %v85
  %2274 = vmatprep.subr.mxu0 %v78
  %2275 = vmatpush1.msra.mxu0 %v77
  %2276 = vmatprep.subr.mxu0 0.0
  %2277 = vmatpush2.msra.mxu0 0.0
  %2278 = vmatprep.subr.mxu0 0.0
  %2279 = vmatpush2.msra.mxu0 0.0
  %2280 = vmatprep.subr.mxu0 0.0
  %2281 = vmatpush2.msra.mxu0 0.0
  %2282 = vmatprep.subr.mxu0 0.0
  %2283 = vmatpush2.msra.mxu0 0.0
  %2284 = vmatprep.subr.mxu0 0.0
  %2285 = vmatpush2.msra.mxu0 0.0
  %2286 = vmatprep.subr.mxu0 0.0
  %2287 = vmatpush2.msra.mxu0 0.0
  %2288 = vmatprep.subr.mxu0 0.0
  %2289 = vmatpush2.msra.mxu0 0.0
  %2290 = vmatprep.subr.mxu0 0.0
  %2291 = vmatpush2.msra.mxu0 0.0
  %2292 = vmatprep.subr.mxu0 0.0
  %2293 = vmatpush2.msra.mxu0 0.0
  %2294 = vmatprep.subr.mxu0 0.0
  %2295 = vmatpush2.msra.mxu0 0.0
  %2296 = vmatprep.subr.mxu0 0.0
  %2297 = vmatpush2.msra.mxu0 0.0
  %2298 = vmatprep.subr.mxu0 0.0
  %2299 = vmatpush2.msra.mxu0 0.0
  %2300 = vmatprep.subr.mxu0 0.0
  %2301 = vmatpush2.msra.mxu0 0.0
  %2302 = vmatprep.subr.mxu0 0.0
  %2303 = vmatpush2.msra.mxu0 0.0
  %2304 = vmatprep.subr.mxu0 0.0
  %2305 = vmatpush2.msra.mxu0 0.0
  %2306 = vmatprep.subr.mxu0 0.0
  %2307 = vmatpush2.msra.mxu0 0.0
  %2308 = vmatprep.mubr.f32.mxu0 0.0
  %2309 = vmatmul.mubr.f32.gmra.mxu0 %v2030
  %v2310 = vpop.f32.mrf.mxu0
  %v2311 = vadd.f32 0.0, %v2310
  %v2312 = vpop.f32.mrf.mxu0
  %v2313 = vadd.f32 0.0, %v2312
  %2314 = vdwg.mxu0
  %v2315 = vmax.f32 %v2098, 0.0
  %v2316 = vmax.f32 %v2100, 0.0
  %v2317 = vmax.f32 %v2169, 0.0
  %v2318 = vmax.f32 %v2171, 0.0
  %v2319 = vmax.f32 %v2240, 0.0
  %v2320 = vmax.f32 %v2242, 0.0
  %v2321 = vmax.f32 %v2311, 0.0
  %v2322 = vmax.f32 %v2313, 0.0
  %v2323 = vmul.f32 %v2315, %v1512
  %v2324 = vmul.f32 %v2316, %v1516
  %v2325 = vmul.f32 %v2317, %v1520
  %v2326 = vmul.f32 %v2318, %v1524
  %v2327 = vmul.f32 %v2319, %v1528
  %v2328 = vmul.f32 %v2320, %v1532
  %v2329 = vmul.f32 %v2321, %v1536
  %v2330 = vmul.f32 %v2322, %v1540
  %v2331 = vadd.f32 %v2323, %v2325
  %v2332 = vadd.f32 %v2324, %v2326
  %v2333 = vadd.f32 %v2331, %v2327
  %v2334 = vadd.f32 %v2332, %v2328
  %v2335 = vadd.f32 %v2333, %v2329
  %v2336 = vadd.f32 %v2334, %v2330
  %2337 = vadd.xlane.f32.xlu0 %v2335
  %v2338 = vpop.xlane.xlu0 %2337
  %2339 = vadd.xlane.f32.xlu0 %v2336
  %v2340 = vpop.xlane.xlu0 %2339
  %v2341 = vadd.f32 %v1189, %v2338
  %v2342 = vadd.f32 %v1205, %v2340
  %v2343 = vmax.f32 %v2341, %v2342
  %v2344 = vsub.f32 %v2341, %v2343
  %v2345 = vmul.f32 %v2344, 1.442695
  %v2346 = vpow.pop %v2345
  %v2347 = vsub.f32 %v2342, %v2343
  %v2348 = vmul.f32 %v2347, 1.442695
  %v2349 = vpow.pop %v2348
  %v2350 = vadd.f32 %v2346, %v2349
  %v2351 = vrcp.pop %v2350
  %v2352 = vmul.f32 %v2346, %v2351
  %v2353 = vmul.f32 %v2349, %v2351
  %v2354 = vadd.f32 %v594, %v2098
  %v2355 = vadd.f32 %v596, %v2100
  %v2356 = vadd.f32 %v707, %v2169
  %v2357 = vadd.f32 %v709, %v2171
  %v2358 = vadd.f32 %v820, %v2240
  %v2359 = vadd.f32 %v822, %v2242
  %v2360 = vadd.f32 %v933, %v2311
  %v2361 = vadd.f32 %v935, %v2313
  %v2362 = vxor.u32 %v2354, 2147483648
  %v2363 = vxor.u32 %v2355, 2147483648
  %v2364 = vxor.u32 %v2356, 2147483648
  %v2365 = vxor.u32 %v2357, 2147483648
  %v2366 = vxor.u32 %v2358, 2147483648
  %v2367 = vxor.u32 %v2359, 2147483648
  %v2368 = vmul.f32 %v2362, 1.442695
  %v2369 = vpow.pop %v2368
  %v2370 = vmul.f32 %v2363, 1.442695
  %v2371 = vpow.pop %v2370
  %v2372 = vmul.f32 %v2364, 1.442695
  %v2373 = vpow.pop %v2372
  %v2374 = vmul.f32 %v2365, 1.442695
  %v2375 = vpow.pop %v2374
  %v2376 = vmul.f32 %v2366, 1.442695
  %v2377 = vpow.pop %v2376
  %v2378 = vmul.f32 %v2367, 1.442695
  %v2379 = vpow.pop %v2378
  %v2380 = vadd.f32 %v2369, 1.0
  %v2381 = vadd.f32 %v2371, 1.0
  %v2382 = vadd.f32 %v2373, 1.0
  %v2383 = vadd.f32 %v2375, 1.0
  %v2384 = vadd.f32 %v2377, 1.0
  %v2385 = vadd.f32 %v2379, 1.0
  %v2386 = vrcp.pop %v2380
  %v2387 = vmul.f32 1.0, %v2386
  %v2388 = vrcp.pop %v2381
  %v2389 = vmul.f32 1.0, %v2388
  %v2390 = vrcp.pop %v2382
  %v2391 = vmul.f32 1.0, %v2390
  %v2392 = vrcp.pop %v2383
  %v2393 = vmul.f32 1.0, %v2392
  %v2394 = vrcp.pop %v2384
  %v2395 = vmul.f32 1.0, %v2394
  %v2396 = vrcp.pop %v2385
  %v2397 = vmul.f32 1.0, %v2396
  %v2398 = vtanh.pop %v2360
  %v2399 = vtanh.pop %v2361
  %v2400 = vmul.f32 %v2028, %v2391
  %v2401 = vmul.f32 %v2387, %v2398
  %v2402 = vadd.f32 %v2400, %v2401
  %v2403 = vtanh.pop %v2402
  %v2404 = vmul.f32 %v2395, %v2403
  %v2405 = vmul.f32 %v2402, %v2352
  %v2406 = vadd.f32 %v2405, 0.0
  %v2407 = vmul.f32 %v2404, %v2352
  %v2408 = vadd.f32 %v2407, 0.0
  %v2409 = vmul.f32 %v2028, %v2393
  %v2410 = vmul.f32 %v2389, %v2399
  %v2411 = vadd.f32 %v2409, %v2410
  %v2412 = vtanh.pop %v2411
  %v2413 = vmul.f32 %v2397, %v2412
  %v2414 = vmul.f32 %v2411, %v2353
  %v2415 = vadd.f32 %v2406, %v2414
  %v2416 = vmul.f32 %v2413, %v2353
  %v2417 = vadd.f32 %v2408, %v2416
  %2418 = vmatprep.subr.mxu0 %v192
  %2419 = vmatpush1.msra.mxu0 %v191
  %2420 = vmatprep.subr.mxu0 %v184
  %2421 = vmatpush1.msra.mxu0 %v183
  %2422 = vmatprep.subr.mxu0 %v176
  %2423 = vmatpush1.msra.mxu0 %v175
  %2424 = vmatprep.subr.mxu0 %v168
  %2425 = vmatpush1.msra.mxu0 %v167
  %2426 = vmatprep.subr.mxu0 %v160
  %2427 = vmatpush1.msra.mxu0 %v159
  %2428 = vmatprep.subr.mxu0 %v152
  %2429 = vmatpush1.msra.mxu0 %v151
  %2430 = vmatprep.subr.mxu0 %v144
  %2431 = vmatpush1.msra.mxu0 %v143
  %2432 = vmatprep.subr.mxu0 %v136
  %2433 = vmatpush1.msra.mxu0 %v135
  %2434 = vmatprep.subr.mxu0 %v128
  %2435 = vmatpush1.msra.mxu0 %v127
  %2436 = vmatprep.subr.mxu0 %v120
  %2437 = vmatpush1.msra.mxu0 %v119
  %2438 = vmatprep.subr.mxu0 %v112
  %2439 = vmatpush1.msra.mxu0 %v111
  %2440 = vmatprep.subr.mxu0 %v104
  %2441 = vmatpush1.msra.mxu0 %v103
  %2442 = vmatprep.subr.mxu0 %v96
  %2443 = vmatpush1.msra.mxu0 %v95
  %2444 = vmatprep.subr.mxu0 %v88
  %2445 = vmatpush1.msra.mxu0 %v87
  %2446 = vmatprep.subr.mxu0 %v80
  %2447 = vmatpush1.msra.mxu0 %v79
  %2448 = vmatprep.subr.mxu0 %v72
  %2449 = vmatpush1.msra.mxu0 %v71
  %2450 = vmatprep.subr.mxu0 0.0
  %2451 = vmatpush2.msra.mxu0 0.0
  %2452 = vmatprep.subr.mxu0 0.0
  %2453 = vmatpush2.msra.mxu0 0.0
  %2454 = vmatprep.subr.mxu0 0.0
  %2455 = vmatpush2.msra.mxu0 0.0
  %2456 = vmatprep.subr.mxu0 0.0
  %2457 = vmatpush2.msra.mxu0 0.0
  %2458 = vmatprep.subr.mxu0 0.0
  %2459 = vmatpush2.msra.mxu0 0.0
  %2460 = vmatprep.subr.mxu0 0.0
  %2461 = vmatpush2.msra.mxu0 0.0
  %2462 = vmatprep.subr.mxu0 0.0
  %2463 = vmatpush2.msra.mxu0 0.0
  %2464 = vmatprep.subr.mxu0 0.0
  %2465 = vmatpush2.msra.mxu0 0.0
  %2466 = vmatprep.subr.mxu0 0.0
  %2467 = vmatpush2.msra.mxu0 0.0
  %2468 = vmatprep.subr.mxu0 0.0
  %2469 = vmatpush2.msra.mxu0 0.0
  %2470 = vmatprep.subr.mxu0 0.0
  %2471 = vmatpush2.msra.mxu0 0.0
  %2472 = vmatprep.subr.mxu0 0.0
  %2473 = vmatpush2.msra.mxu0 0.0
  %2474 = vmatprep.subr.mxu0 0.0
  %2475 = vmatpush2.msra.mxu0 0.0
  %2476 = vmatprep.subr.mxu0 0.0
  %2477 = vmatpush2.msra.mxu0 0.0
  %2478 = vmatprep.subr.mxu0 0.0
  %2479 = vmatpush2.msra.mxu0 0.0
  %2480 = vmatprep.subr.mxu0 0.0
  %2481 = vmatpush2.msra.mxu0 0.0
  %2482 = vmatprep.mubr.f32.mxu0 0.0
  %2483 = vmatmul.mubr.f32.gmra.mxu0 %v2417
  %v2484 = vpop.f32.mrf.mxu0
  %v2485 = vadd.f32 0.0, %v2484
  %v2486 = vpop.f32.mrf.mxu0
  %v2487 = vadd.f32 0.0, %v2486
  %2488 = vdwg.mxu0
  %2489 = vmatprep.subr.mxu0 %v194
  %2490 = vmatpush1.msra.mxu0 %v193
  %2491 = vmatprep.subr.mxu0 %v186
  %2492 = vmatpush1.msra.mxu0 %v185
  %2493 = vmatprep.subr.mxu0 %v178
  %2494 = vmatpush1.msra.mxu0 %v177
  %2495 = vmatprep.subr.mxu0 %v170
  %2496 = vmatpush1.msra.mxu0 %v169
  %2497 = vmatprep.subr.mxu0 %v162
  %2498 = vmatpush1.msra.mxu0 %v161
  %2499 = vmatprep.subr.mxu0 %v154
  %2500 = vmatpush1.msra.mxu0 %v153
  %2501 = vmatprep.subr.mxu0 %v146
  %2502 = vmatpush1.msra.mxu0 %v145
  %2503 = vmatprep.subr.mxu0 %v138
  %2504 = vmatpush1.msra.mxu0 %v137
  %2505 = vmatprep.subr.mxu0 %v130
  %2506 = vmatpush1.msra.mxu0 %v129
  %2507 = vmatprep.subr.mxu0 %v122
  %2508 = vmatpush1.msra.mxu0 %v121
  %2509 = vmatprep.subr.mxu0 %v114
  %2510 = vmatpush1.msra.mxu0 %v113
  %2511 = vmatprep.subr.mxu0 %v106
  %2512 = vmatpush1.msra.mxu0 %v105
  %2513 = vmatprep.subr.mxu0 %v98
  %2514 = vmatpush1.msra.mxu0 %v97
  %2515 = vmatprep.subr.mxu0 %v90
  %2516 = vmatpush1.msra.mxu0 %v89
  %2517 = vmatprep.subr.mxu0 %v82
  %2518 = vmatpush1.msra.mxu0 %v81
  %2519 = vmatprep.subr.mxu0 %v74
  %2520 = vmatpush1.msra.mxu0 %v73
  %2521 = vmatprep.subr.mxu0 0.0
  %2522 = vmatpush2.msra.mxu0 0.0
  %2523 = vmatprep.subr.mxu0 0.0
  %2524 = vmatpush2.msra.mxu0 0.0
  %2525 = vmatprep.subr.mxu0 0.0
  %2526 = vmatpush2.msra.mxu0 0.0
  %2527 = vmatprep.subr.mxu0 0.0
  %2528 = vmatpush2.msra.mxu0 0.0
  %2529 = vmatprep.subr.mxu0 0.0
  %2530 = vmatpush2.msra.mxu0 0.0
  %2531 = vmatprep.subr.mxu0 0.0
  %2532 = vmatpush2.msra.mxu0 0.0
  %2533 = vmatprep.subr.mxu0 0.0
  %2534 = vmatpush2.msra.mxu0 0.0
  %2535 = vmatprep.subr.mxu0 0.0
  %2536 = vmatpush2.msra.mxu0 0.0
  %2537 = vmatprep.subr.mxu0 0.0
  %2538 = vmatpush2.msra.mxu0 0.0
  %2539 = vmatprep.subr.mxu0 0.0
  %2540 = vmatpush2.msra.mxu0 0.0
  %2541 = vmatprep.subr.mxu0 0.0
  %2542 = vmatpush2.msra.mxu0 0.0
  %2543 = vmatprep.subr.mxu0 0.0
  %2544 = vmatpush2.msra.mxu0 0.0
  %2545 = vmatprep.subr.mxu0 0.0
  %2546 = vmatpush2.msra.mxu0 0.0
  %2547 = vmatprep.subr.mxu0 0.0
  %2548 = vmatpush2.msra.mxu0 0.0
  %2549 = vmatprep.subr.mxu0 0.0
  %2550 = vmatpush2.msra.mxu0 0.0
  %2551 = vmatprep.subr.mxu0 0.0
  %2552 = vmatpush2.msra.mxu0 0.0
  %2553 = vmatprep.mubr.f32.mxu0 0.0
  %2554 = vmatmul.mubr.f32.gmra.mxu0 %v2417
  %v2555 = vpop.f32.mrf.mxu0
  %v2556 = vadd.f32 0.0, %v2555
  %v2557 = vpop.f32.mrf.mxu0
  %v2558 = vadd.f32 0.0, %v2557
  %2559 = vdwg.mxu0
  %2560 = vmatprep.subr.mxu0 %v196
  %2561 = vmatpush1.msra.mxu0 %v195
  %2562 = vmatprep.subr.mxu0 %v188
  %2563 = vmatpush1.msra.mxu0 %v187
  %2564 = vmatprep.subr.mxu0 %v180
  %2565 = vmatpush1.msra.mxu0 %v179
  %2566 = vmatprep.subr.mxu0 %v172
  %2567 = vmatpush1.msra.mxu0 %v171
  %2568 = vmatprep.subr.mxu0 %v164
  %2569 = vmatpush1.msra.mxu0 %v163
  %2570 = vmatprep.subr.mxu0 %v156
  %2571 = vmatpush1.msra.mxu0 %v155
  %2572 = vmatprep.subr.mxu0 %v148
  %2573 = vmatpush1.msra.mxu0 %v147
  %2574 = vmatprep.subr.mxu0 %v140
  %2575 = vmatpush1.msra.mxu0 %v139
  %2576 = vmatprep.subr.mxu0 %v132
  %2577 = vmatpush1.msra.mxu0 %v131
  %2578 = vmatprep.subr.mxu0 %v124
  %2579 = vmatpush1.msra.mxu0 %v123
  %2580 = vmatprep.subr.mxu0 %v116
  %2581 = vmatpush1.msra.mxu0 %v115
  %2582 = vmatprep.subr.mxu0 %v108
  %2583 = vmatpush1.msra.mxu0 %v107
  %2584 = vmatprep.subr.mxu0 %v100
  %2585 = vmatpush1.msra.mxu0 %v99
  %2586 = vmatprep.subr.mxu0 %v92
  %2587 = vmatpush1.msra.mxu0 %v91
  %2588 = vmatprep.subr.mxu0 %v84
  %2589 = vmatpush1.msra.mxu0 %v83
  %2590 = vmatprep.subr.mxu0 %v76
  %2591 = vmatpush1.msra.mxu0 %v75
  %2592 = vmatprep.subr.mxu0 0.0
  %2593 = vmatpush2.msra.mxu0 0.0
  %2594 = vmatprep.subr.mxu0 0.0
  %2595 = vmatpush2.msra.mxu0 0.0
  %2596 = vmatprep.subr.mxu0 0.0
  %2597 = vmatpush2.msra.mxu0 0.0
  %2598 = vmatprep.subr.mxu0 0.0
  %2599 = vmatpush2.msra.mxu0 0.0
  %2600 = vmatprep.subr.mxu0 0.0
  %2601 = vmatpush2.msra.mxu0 0.0
  %2602 = vmatprep.subr.mxu0 0.0
  %2603 = vmatpush2.msra.mxu0 0.0
  %2604 = vmatprep.subr.mxu0 0.0
  %2605 = vmatpush2.msra.mxu0 0.0
  %2606 = vmatprep.subr.mxu0 0.0
  %2607 = vmatpush2.msra.mxu0 0.0
  %2608 = vmatprep.subr.mxu0 0.0
  %2609 = vmatpush2.msra.mxu0 0.0
  %2610 = vmatprep.subr.mxu0 0.0
  %2611 = vmatpush2.msra.mxu0 0.0
  %2612 = vmatprep.subr.mxu0 0.0
  %2613 = vmatpush2.msra.mxu0 0.0
  %2614 = vmatprep.subr.mxu0 0.0
  %2615 = vmatpush2.msra.mxu0 0.0
  %2616 = vmatprep.subr.mxu0 0.0
  %2617 = vmatpush2.msra.mxu0 0.0
  %2618 = vmatprep.subr.mxu0 0.0
  %2619 = vmatpush2.msra.mxu0 0.0
  %2620 = vmatprep.subr.mxu0 0.0
  %2621 = vmatpush2.msra.mxu0 0.0
  %2622 = vmatprep.subr.mxu0 0.0
  %2623 = vmatpush2.msra.mxu0 0.0
  %2624 = vmatprep.mubr.f32.mxu0 0.0
  %2625 = vmatmul.mubr.f32.gmra.mxu0 %v2417
  %v2626 = vpop.f32.mrf.mxu0
  %v2627 = vadd.f32 0.0, %v2626
  %v2628 = vpop.f32.mrf.mxu0
  %v2629 = vadd.f32 0.0, %v2628
  %2630 = vdwg.mxu0
  %2631 = vmatprep.subr.mxu0 %v198
  %2632 = vmatpush1.msra.mxu0 %v197
  %2633 = vmatprep.subr.mxu0 %v190
  %2634 = vmatpush1.msra.mxu0 %v189
  %2635 = vmatprep.subr.mxu0 %v182
  %2636 = vmatpush1.msra.mxu0 %v181
  %2637 = vmatprep.subr.mxu0 %v174
  %2638 = vmatpush1.msra.mxu0 %v173
  %2639 = vmatprep.subr.mxu0 %v166
  %2640 = vmatpush1.msra.mxu0 %v165
  %2641 = vmatprep.subr.mxu0 %v158
  %2642 = vmatpush1.msra.mxu0 %v157
  %2643 = vmatprep.subr.mxu0 %v150
  %2644 = vmatpush1.msra.mxu0 %v149
  %2645 = vmatprep.subr.mxu0 %v142
  %2646 = vmatpush1.msra.mxu0 %v141
  %2647 = vmatprep.subr.mxu0 %v134
  %2648 = vmatpush1.msra.mxu0 %v133
  %2649 = vmatprep.subr.mxu0 %v126
  %2650 = vmatpush1.msra.mxu0 %v125
  %2651 = vmatprep.subr.mxu0 %v118
  %2652 = vmatpush1.msra.mxu0 %v117
  %2653 = vmatprep.subr.mxu0 %v110
  %2654 = vmatpush1.msra.mxu0 %v109
  %2655 = vmatprep.subr.mxu0 %v102
  %2656 = vmatpush1.msra.mxu0 %v101
  %2657 = vmatprep.subr.mxu0 %v94
  %2658 = vmatpush1.msra.mxu0 %v93
  %2659 = vmatprep.subr.mxu0 %v86
  %2660 = vmatpush1.msra.mxu0 %v85
  %2661 = vmatprep.subr.mxu0 %v78
  %2662 = vmatpush1.msra.mxu0 %v77
  %2663 = vmatprep.subr.mxu0 0.0
  %2664 = vmatpush2.msra.mxu0 0.0
  %2665 = vmatprep.subr.mxu0 0.0
  %2666 = vmatpush2.msra.mxu0 0.0
  %2667 = vmatprep.subr.mxu0 0.0
  %2668 = vmatpush2.msra.mxu0 0.0
  %2669 = vmatprep.subr.mxu0 0.0
  %2670 = vmatpush2.msra.mxu0 0.0
  %2671 = vmatprep.subr.mxu0 0.0
  %2672 = vmatpush2.msra.mxu0 0.0
  %2673 = vmatprep.subr.mxu0 0.0
  %2674 = vmatpush2.msra.mxu0 0.0
  %2675 = vmatprep.subr.mxu0 0.0
  %2676 = vmatpush2.msra.mxu0 0.0
  %2677 = vmatprep.subr.mxu0 0.0
  %2678 = vmatpush2.msra.mxu0 0.0
  %2679 = vmatprep.subr.mxu0 0.0
  %2680 = vmatpush2.msra.mxu0 0.0
  %2681 = vmatprep.subr.mxu0 0.0
  %2682 = vmatpush2.msra.mxu0 0.0
  %2683 = vmatprep.subr.mxu0 0.0
  %2684 = vmatpush2.msra.mxu0 0.0
  %2685 = vmatprep.subr.mxu0 0.0
  %2686 = vmatpush2.msra.mxu0 0.0
  %2687 = vmatprep.subr.mxu0 0.0
  %2688 = vmatpush2.msra.mxu0 0.0
  %2689 = vmatprep.subr.mxu0 0.0
  %2690 = vmatpush2.msra.mxu0 0.0
  %2691 = vmatprep.subr.mxu0 0.0
  %2692 = vmatpush2.msra.mxu0 0.0
  %2693 = vmatprep.subr.mxu0 0.0
  %2694 = vmatpush2.msra.mxu0 0.0
  %2695 = vmatprep.mubr.f32.mxu0 0.0
  %2696 = vmatmul.mubr.f32.gmra.mxu0 %v2417
  %v2697 = vpop.f32.mrf.mxu0
  %v2698 = vadd.f32 0.0, %v2697
  %v2699 = vpop.f32.mrf.mxu0
  %v2700 = vadd.f32 0.0, %v2699
  %2701 = vdwg.mxu0
  %v2702 = vmax.f32 %v2485, 0.0
  %v2703 = vmax.f32 %v2487, 0.0
  %v2704 = vmax.f32 %v2556, 0.0
  %v2705 = vmax.f32 %v2558, 0.0
  %v2706 = vmax.f32 %v2627, 0.0
  %v2707 = vmax.f32 %v2629, 0.0
  %v2708 = vmax.f32 %v2698, 0.0
  %v2709 = vmax.f32 %v2700, 0.0
  %v2710 = vmul.f32 %v2702, %v1512
  %v2711 = vmul.f32 %v2703, %v1516
  %v2712 = vmul.f32 %v2704, %v1520
  %v2713 = vmul.f32 %v2705, %v1524
  %v2714 = vmul.f32 %v2706, %v1528
  %v2715 = vmul.f32 %v2707, %v1532
  %v2716 = vmul.f32 %v2708, %v1536
  %v2717 = vmul.f32 %v2709, %v1540
  %v2718 = vadd.f32 %v2710, %v2712
  %v2719 = vadd.f32 %v2711, %v2713
  %v2720 = vadd.f32 %v2718, %v2714
  %v2721 = vadd.f32 %v2719, %v2715
  %v2722 = vadd.f32 %v2720, %v2716
  %v2723 = vadd.f32 %v2721, %v2717
  %2724 = vadd.xlane.f32.xlu0 %v2722
  %v2725 = vpop.xlane.xlu0 %2724
  %2726 = vadd.xlane.f32.xlu0 %v2723
  %v2727 = vpop.xlane.xlu0 %2726
  %v2728 = vadd.f32 %v1191, %v2725
  %v2729 = vadd.f32 %v1207, %v2727
  %v2730 = vmax.f32 %v2728, %v2729
  %v2731 = vsub.f32 %v2728, %v2730
  %v2732 = vmul.f32 %v2731, 1.442695
  %v2733 = vpow.pop %v2732
  %v2734 = vsub.f32 %v2729, %v2730
  %v2735 = vmul.f32 %v2734, 1.442695
  %v2736 = vpow.pop %v2735
  %v2737 = vadd.f32 %v2733, %v2736
  %v2738 = vrcp.pop %v2737
  %v2739 = vmul.f32 %v2733, %v2738
  %v2740 = vmul.f32 %v2736, %v2738
  %v2741 = vadd.f32 %v600, %v2485
  %v2742 = vadd.f32 %v602, %v2487
  %v2743 = vadd.f32 %v713, %v2556
  %v2744 = vadd.f32 %v715, %v2558
  %v2745 = vadd.f32 %v826, %v2627
  %v2746 = vadd.f32 %v828, %v2629
  %v2747 = vadd.f32 %v939, %v2698
  %v2748 = vadd.f32 %v941, %v2700
  %v2749 = vxor.u32 %v2741, 2147483648
  %v2750 = vxor.u32 %v2742, 2147483648
  %v2751 = vxor.u32 %v2743, 2147483648
  %v2752 = vxor.u32 %v2744, 2147483648
  %v2753 = vxor.u32 %v2745, 2147483648
  %v2754 = vxor.u32 %v2746, 2147483648
  %v2755 = vmul.f32 %v2749, 1.442695
  %v2756 = vpow.pop %v2755
  %v2757 = vmul.f32 %v2750, 1.442695
  %v2758 = vpow.pop %v2757
  %v2759 = vmul.f32 %v2751, 1.442695
  %v2760 = vpow.pop %v2759
  %v2761 = vmul.f32 %v2752, 1.442695
  %v2762 = vpow.pop %v2761
  %v2763 = vmul.f32 %v2753, 1.442695
  %v2764 = vpow.pop %v2763
  %v2765 = vmul.f32 %v2754, 1.442695
  %v2766 = vpow.pop %v2765
  %v2767 = vadd.f32 %v2756, 1.0
  %v2768 = vadd.f32 %v2758, 1.0
  %v2769 = vadd.f32 %v2760, 1.0
  %v2770 = vadd.f32 %v2762, 1.0
  %v2771 = vadd.f32 %v2764, 1.0
  %v2772 = vadd.f32 %v2766, 1.0
  %v2773 = vrcp.pop %v2767
  %v2774 = vmul.f32 1.0, %v2773
  %v2775 = vrcp.pop %v2768
  %v2776 = vmul.f32 1.0, %v2775
  %v2777 = vrcp.pop %v2769
  %v2778 = vmul.f32 1.0, %v2777
  %v2779 = vrcp.pop %v2770
  %v2780 = vmul.f32 1.0, %v2779
  %v2781 = vrcp.pop %v2771
  %v2782 = vmul.f32 1.0, %v2781
  %v2783 = vrcp.pop %v2772
  %v2784 = vmul.f32 1.0, %v2783
  %v2785 = vtanh.pop %v2747
  %v2786 = vtanh.pop %v2748
  %v2787 = vmul.f32 %v2415, %v2778
  %v2788 = vmul.f32 %v2774, %v2785
  %v2789 = vadd.f32 %v2787, %v2788
  %v2790 = vtanh.pop %v2789
  %v2791 = vmul.f32 %v2782, %v2790
  %v2792 = vmul.f32 %v2789, %v2739
  %v2793 = vadd.f32 %v2792, 0.0
  %v2794 = vmul.f32 %v2791, %v2739
  %v2795 = vadd.f32 %v2794, 0.0
  %v2796 = vmul.f32 %v2415, %v2780
  %v2797 = vmul.f32 %v2776, %v2786
  %v2798 = vadd.f32 %v2796, %v2797
  %v2799 = vtanh.pop %v2798
  %v2800 = vmul.f32 %v2784, %v2799
  %v2801 = vmul.f32 %v2798, %v2740
  %v2802 = vadd.f32 %v2793, %v2801
  %v2803 = vmul.f32 %v2800, %v2740
  %v2804 = vadd.f32 %v2795, %v2803
  %2805 = vmatprep.subr.mxu0 %v192
  %2806 = vmatpush1.msra.mxu0 %v191
  %2807 = vmatprep.subr.mxu0 %v184
  %2808 = vmatpush1.msra.mxu0 %v183
  %2809 = vmatprep.subr.mxu0 %v176
  %2810 = vmatpush1.msra.mxu0 %v175
  %2811 = vmatprep.subr.mxu0 %v168
  %2812 = vmatpush1.msra.mxu0 %v167
  %2813 = vmatprep.subr.mxu0 %v160
  %2814 = vmatpush1.msra.mxu0 %v159
  %2815 = vmatprep.subr.mxu0 %v152
  %2816 = vmatpush1.msra.mxu0 %v151
  %2817 = vmatprep.subr.mxu0 %v144
  %2818 = vmatpush1.msra.mxu0 %v143
  %2819 = vmatprep.subr.mxu0 %v136
  %2820 = vmatpush1.msra.mxu0 %v135
  %2821 = vmatprep.subr.mxu0 %v128
  %2822 = vmatpush1.msra.mxu0 %v127
  %2823 = vmatprep.subr.mxu0 %v120
  %2824 = vmatpush1.msra.mxu0 %v119
  %2825 = vmatprep.subr.mxu0 %v112
  %2826 = vmatpush1.msra.mxu0 %v111
  %2827 = vmatprep.subr.mxu0 %v104
  %2828 = vmatpush1.msra.mxu0 %v103
  %2829 = vmatprep.subr.mxu0 %v96
  %2830 = vmatpush1.msra.mxu0 %v95
  %2831 = vmatprep.subr.mxu0 %v88
  %2832 = vmatpush1.msra.mxu0 %v87
  %2833 = vmatprep.subr.mxu0 %v80
  %2834 = vmatpush1.msra.mxu0 %v79
  %2835 = vmatprep.subr.mxu0 %v72
  %2836 = vmatpush1.msra.mxu0 %v71
  %2837 = vmatprep.subr.mxu0 0.0
  %2838 = vmatpush2.msra.mxu0 0.0
  %2839 = vmatprep.subr.mxu0 0.0
  %2840 = vmatpush2.msra.mxu0 0.0
  %2841 = vmatprep.subr.mxu0 0.0
  %2842 = vmatpush2.msra.mxu0 0.0
  %2843 = vmatprep.subr.mxu0 0.0
  %2844 = vmatpush2.msra.mxu0 0.0
  %2845 = vmatprep.subr.mxu0 0.0
  %2846 = vmatpush2.msra.mxu0 0.0
  %2847 = vmatprep.subr.mxu0 0.0
  %2848 = vmatpush2.msra.mxu0 0.0
  %2849 = vmatprep.subr.mxu0 0.0
  %2850 = vmatpush2.msra.mxu0 0.0
  %2851 = vmatprep.subr.mxu0 0.0
  %2852 = vmatpush2.msra.mxu0 0.0
  %2853 = vmatprep.subr.mxu0 0.0
  %2854 = vmatpush2.msra.mxu0 0.0
  %2855 = vmatprep.subr.mxu0 0.0
  %2856 = vmatpush2.msra.mxu0 0.0
  %2857 = vmatprep.subr.mxu0 0.0
  %2858 = vmatpush2.msra.mxu0 0.0
  %2859 = vmatprep.subr.mxu0 0.0
  %2860 = vmatpush2.msra.mxu0 0.0
  %2861 = vmatprep.subr.mxu0 0.0
  %2862 = vmatpush2.msra.mxu0 0.0
  %2863 = vmatprep.subr.mxu0 0.0
  %2864 = vmatpush2.msra.mxu0 0.0
  %2865 = vmatprep.subr.mxu0 0.0
  %2866 = vmatpush2.msra.mxu0 0.0
  %2867 = vmatprep.subr.mxu0 0.0
  %2868 = vmatpush2.msra.mxu0 0.0
  %2869 = vmatprep.mubr.f32.mxu0 0.0
  %2870 = vmatmul.mubr.f32.gmra.mxu0 %v2804
  %v2871 = vpop.f32.mrf.mxu0
  %v2872 = vadd.f32 0.0, %v2871
  %v2873 = vpop.f32.mrf.mxu0
  %v2874 = vadd.f32 0.0, %v2873
  %2875 = vdwg.mxu0
  %2876 = vmatprep.subr.mxu0 %v194
  %2877 = vmatpush1.msra.mxu0 %v193
  %2878 = vmatprep.subr.mxu0 %v186
  %2879 = vmatpush1.msra.mxu0 %v185
  %2880 = vmatprep.subr.mxu0 %v178
  %2881 = vmatpush1.msra.mxu0 %v177
  %2882 = vmatprep.subr.mxu0 %v170
  %2883 = vmatpush1.msra.mxu0 %v169
  %2884 = vmatprep.subr.mxu0 %v162
  %2885 = vmatpush1.msra.mxu0 %v161
  %2886 = vmatprep.subr.mxu0 %v154
  %2887 = vmatpush1.msra.mxu0 %v153
  %2888 = vmatprep.subr.mxu0 %v146
  %2889 = vmatpush1.msra.mxu0 %v145
  %2890 = vmatprep.subr.mxu0 %v138
  %2891 = vmatpush1.msra.mxu0 %v137
  %2892 = vmatprep.subr.mxu0 %v130
  %2893 = vmatpush1.msra.mxu0 %v129
  %2894 = vmatprep.subr.mxu0 %v122
  %2895 = vmatpush1.msra.mxu0 %v121
  %2896 = vmatprep.subr.mxu0 %v114
  %2897 = vmatpush1.msra.mxu0 %v113
  %2898 = vmatprep.subr.mxu0 %v106
  %2899 = vmatpush1.msra.mxu0 %v105
  %2900 = vmatprep.subr.mxu0 %v98
  %2901 = vmatpush1.msra.mxu0 %v97
  %2902 = vmatprep.subr.mxu0 %v90
  %2903 = vmatpush1.msra.mxu0 %v89
  %2904 = vmatprep.subr.mxu0 %v82
  %2905 = vmatpush1.msra.mxu0 %v81
  %2906 = vmatprep.subr.mxu0 %v74
  %2907 = vmatpush1.msra.mxu0 %v73
  %2908 = vmatprep.subr.mxu0 0.0
  %2909 = vmatpush2.msra.mxu0 0.0
  %2910 = vmatprep.subr.mxu0 0.0
  %2911 = vmatpush2.msra.mxu0 0.0
  %2912 = vmatprep.subr.mxu0 0.0
  %2913 = vmatpush2.msra.mxu0 0.0
  %2914 = vmatprep.subr.mxu0 0.0
  %2915 = vmatpush2.msra.mxu0 0.0
  %2916 = vmatprep.subr.mxu0 0.0
  %2917 = vmatpush2.msra.mxu0 0.0
  %2918 = vmatprep.subr.mxu0 0.0
  %2919 = vmatpush2.msra.mxu0 0.0
  %2920 = vmatprep.subr.mxu0 0.0
  %2921 = vmatpush2.msra.mxu0 0.0
  %2922 = vmatprep.subr.mxu0 0.0
  %2923 = vmatpush2.msra.mxu0 0.0
  %2924 = vmatprep.subr.mxu0 0.0
  %2925 = vmatpush2.msra.mxu0 0.0
  %2926 = vmatprep.subr.mxu0 0.0
  %2927 = vmatpush2.msra.mxu0 0.0
  %2928 = vmatprep.subr.mxu0 0.0
  %2929 = vmatpush2.msra.mxu0 0.0
  %2930 = vmatprep.subr.mxu0 0.0
  %2931 = vmatpush2.msra.mxu0 0.0
  %2932 = vmatprep.subr.mxu0 0.0
  %2933 = vmatpush2.msra.mxu0 0.0
  %2934 = vmatprep.subr.mxu0 0.0
  %2935 = vmatpush2.msra.mxu0 0.0
  %2936 = vmatprep.subr.mxu0 0.0
  %2937 = vmatpush2.msra.mxu0 0.0
  %2938 = vmatprep.subr.mxu0 0.0
  %2939 = vmatpush2.msra.mxu0 0.0
  %2940 = vmatprep.mubr.f32.mxu0 0.0
  %2941 = vmatmul.mubr.f32.gmra.mxu0 %v2804
  %v2942 = vpop.f32.mrf.mxu0
  %v2943 = vadd.f32 0.0, %v2942
  %v2944 = vpop.f32.mrf.mxu0
  %v2945 = vadd.f32 0.0, %v2944
  %2946 = vdwg.mxu0
  %2947 = vmatprep.subr.mxu0 %v196
  %2948 = vmatpush1.msra.mxu0 %v195
  %2949 = vmatprep.subr.mxu0 %v188
  %2950 = vmatpush1.msra.mxu0 %v187
  %2951 = vmatprep.subr.mxu0 %v180
  %2952 = vmatpush1.msra.mxu0 %v179
  %2953 = vmatprep.subr.mxu0 %v172
  %2954 = vmatpush1.msra.mxu0 %v171
  %2955 = vmatprep.subr.mxu0 %v164
  %2956 = vmatpush1.msra.mxu0 %v163
  %2957 = vmatprep.subr.mxu0 %v156
  %2958 = vmatpush1.msra.mxu0 %v155
  %2959 = vmatprep.subr.mxu0 %v148
  %2960 = vmatpush1.msra.mxu0 %v147
  %2961 = vmatprep.subr.mxu0 %v140
  %2962 = vmatpush1.msra.mxu0 %v139
  %2963 = vmatprep.subr.mxu0 %v132
  %2964 = vmatpush1.msra.mxu0 %v131
  %2965 = vmatprep.subr.mxu0 %v124
  %2966 = vmatpush1.msra.mxu0 %v123
  %2967 = vmatprep.subr.mxu0 %v116
  %2968 = vmatpush1.msra.mxu0 %v115
  %2969 = vmatprep.subr.mxu0 %v108
  %2970 = vmatpush1.msra.mxu0 %v107
  %2971 = vmatprep.subr.mxu0 %v100
  %2972 = vmatpush1.msra.mxu0 %v99
  %2973 = vmatprep.subr.mxu0 %v92
  %2974 = vmatpush1.msra.mxu0 %v91
  %2975 = vmatprep.subr.mxu0 %v84
  %2976 = vmatpush1.msra.mxu0 %v83
  %2977 = vmatprep.subr.mxu0 %v76
  %2978 = vmatpush1.msra.mxu0 %v75
  %2979 = vmatprep.subr.mxu0 0.0
  %2980 = vmatpush2.msra.mxu0 0.0
  %2981 = vmatprep.subr.mxu0 0.0
  %2982 = vmatpush2.msra.mxu0 0.0
  %2983 = vmatprep.subr.mxu0 0.0
  %2984 = vmatpush2.msra.mxu0 0.0
  %2985 = vmatprep.subr.mxu0 0.0
  %2986 = vmatpush2.msra.mxu0 0.0
  %2987 = vmatprep.subr.mxu0 0.0
  %2988 = vmatpush2.msra.mxu0 0.0
  %2989 = vmatprep.subr.mxu0 0.0
  %2990 = vmatpush2.msra.mxu0 0.0
  %2991 = vmatprep.subr.mxu0 0.0
  %2992 = vmatpush2.msra.mxu0 0.0
  %2993 = vmatprep.subr.mxu0 0.0
  %2994 = vmatpush2.msra.mxu0 0.0
  %2995 = vmatprep.subr.mxu0 0.0
  %2996 = vmatpush2.msra.mxu0 0.0
  %2997 = vmatprep.subr.mxu0 0.0
  %2998 = vmatpush2.msra.mxu0 0.0
  %2999 = vmatprep.subr.mxu0 0.0
  %3000 = vmatpush2.msra.mxu0 0.0
  %3001 = vmatprep.subr.mxu0 0.0
  %3002 = vmatpush2.msra.mxu0 0.0
  %3003 = vmatprep.subr.mxu0 0.0
  %3004 = vmatpush2.msra.mxu0 0.0
  %3005 = vmatprep.subr.mxu0 0.0
  %3006 = vmatpush2.msra.mxu0 0.0
  %3007 = vmatprep.subr.mxu0 0.0
  %3008 = vmatpush2.msra.mxu0 0.0
  %3009 = vmatprep.subr.mxu0 0.0
  %3010 = vmatpush2.msra.mxu0 0.0
  %3011 = vmatprep.mubr.f32.mxu0 0.0
  %3012 = vmatmul.mubr.f32.gmra.mxu0 %v2804
  %v3013 = vpop.f32.mrf.mxu0
  %v3014 = vadd.f32 0.0, %v3013
  %v3015 = vpop.f32.mrf.mxu0
  %v3016 = vadd.f32 0.0, %v3015
  %3017 = vdwg.mxu0
  %3018 = vmatprep.subr.mxu0 %v198
  %3019 = vmatpush1.msra.mxu0 %v197
  %3020 = vmatprep.subr.mxu0 %v190
  %3021 = vmatpush1.msra.mxu0 %v189
  %3022 = vmatprep.subr.mxu0 %v182
  %3023 = vmatpush1.msra.mxu0 %v181
  %3024 = vmatprep.subr.mxu0 %v174
  %3025 = vmatpush1.msra.mxu0 %v173
  %3026 = vmatprep.subr.mxu0 %v166
  %3027 = vmatpush1.msra.mxu0 %v165
  %3028 = vmatprep.subr.mxu0 %v158
  %3029 = vmatpush1.msra.mxu0 %v157
  %3030 = vmatprep.subr.mxu0 %v150
  %3031 = vmatpush1.msra.mxu0 %v149
  %3032 = vmatprep.subr.mxu0 %v142
  %3033 = vmatpush1.msra.mxu0 %v141
  %3034 = vmatprep.subr.mxu0 %v134
  %3035 = vmatpush1.msra.mxu0 %v133
  %3036 = vmatprep.subr.mxu0 %v126
  %3037 = vmatpush1.msra.mxu0 %v125
  %3038 = vmatprep.subr.mxu0 %v118
  %3039 = vmatpush1.msra.mxu0 %v117
  %3040 = vmatprep.subr.mxu0 %v110
  %3041 = vmatpush1.msra.mxu0 %v109
  %3042 = vmatprep.subr.mxu0 %v102
  %3043 = vmatpush1.msra.mxu0 %v101
  %3044 = vmatprep.subr.mxu0 %v94
  %3045 = vmatpush1.msra.mxu0 %v93
  %3046 = vmatprep.subr.mxu0 %v86
  %3047 = vmatpush1.msra.mxu0 %v85
  %3048 = vmatprep.subr.mxu0 %v78
  %3049 = vmatpush1.msra.mxu0 %v77
  %3050 = vmatprep.subr.mxu0 0.0
  %3051 = vmatpush2.msra.mxu0 0.0
  %3052 = vmatprep.subr.mxu0 0.0
  %3053 = vmatpush2.msra.mxu0 0.0
  %3054 = vmatprep.subr.mxu0 0.0
  %3055 = vmatpush2.msra.mxu0 0.0
  %3056 = vmatprep.subr.mxu0 0.0
  %3057 = vmatpush2.msra.mxu0 0.0
  %3058 = vmatprep.subr.mxu0 0.0
  %3059 = vmatpush2.msra.mxu0 0.0
  %3060 = vmatprep.subr.mxu0 0.0
  %3061 = vmatpush2.msra.mxu0 0.0
  %3062 = vmatprep.subr.mxu0 0.0
  %3063 = vmatpush2.msra.mxu0 0.0
  %3064 = vmatprep.subr.mxu0 0.0
  %3065 = vmatpush2.msra.mxu0 0.0
  %3066 = vmatprep.subr.mxu0 0.0
  %3067 = vmatpush2.msra.mxu0 0.0
  %3068 = vmatprep.subr.mxu0 0.0
  %3069 = vmatpush2.msra.mxu0 0.0
  %3070 = vmatprep.subr.mxu0 0.0
  %3071 = vmatpush2.msra.mxu0 0.0
  %3072 = vmatprep.subr.mxu0 0.0
  %3073 = vmatpush2.msra.mxu0 0.0
  %3074 = vmatprep.subr.mxu0 0.0
  %3075 = vmatpush2.msra.mxu0 0.0
  %3076 = vmatprep.subr.mxu0 0.0
  %3077 = vmatpush2.msra.mxu0 0.0
  %3078 = vmatprep.subr.mxu0 0.0
  %3079 = vmatpush2.msra.mxu0 0.0
  %3080 = vmatprep.subr.mxu0 0.0
  %3081 = vmatpush2.msra.mxu0 0.0
  %3082 = vmatprep.mubr.f32.mxu0 0.0
  %3083 = vmatmul.mubr.f32.gmra.mxu0 %v2804
  %v3084 = vpop.f32.mrf.mxu0
  %v3085 = vadd.f32 0.0, %v3084
  %v3086 = vpop.f32.mrf.mxu0
  %v3087 = vadd.f32 0.0, %v3086
  %3088 = vdwg.mxu0
  %v3089 = vmax.f32 %v2872, 0.0
  %v3090 = vmax.f32 %v2874, 0.0
  %v3091 = vmax.f32 %v2943, 0.0
  %v3092 = vmax.f32 %v2945, 0.0
  %v3093 = vmax.f32 %v3014, 0.0
  %v3094 = vmax.f32 %v3016, 0.0
  %v3095 = vmax.f32 %v3085, 0.0
  %v3096 = vmax.f32 %v3087, 0.0
  %v3097 = vmul.f32 %v3089, %v1512
  %v3098 = vmul.f32 %v3090, %v1516
  %v3099 = vmul.f32 %v3091, %v1520
  %v3100 = vmul.f32 %v3092, %v1524
  %v3101 = vmul.f32 %v3093, %v1528
  %v3102 = vmul.f32 %v3094, %v1532
  %v3103 = vmul.f32 %v3095, %v1536
  %v3104 = vmul.f32 %v3096, %v1540
  %v3105 = vadd.f32 %v3097, %v3099
  %v3106 = vadd.f32 %v3098, %v3100
  %v3107 = vadd.f32 %v3105, %v3101
  %v3108 = vadd.f32 %v3106, %v3102
  %v3109 = vadd.f32 %v3107, %v3103
  %v3110 = vadd.f32 %v3108, %v3104
  %3111 = vadd.xlane.f32.xlu0 %v3109
  %v3112 = vpop.xlane.xlu0 %3111
  %3113 = vadd.xlane.f32.xlu0 %v3110
  %v3114 = vpop.xlane.xlu0 %3113
  %v3115 = vadd.f32 %v1193, %v3112
  %v3116 = vadd.f32 %v1209, %v3114
  %v3117 = vmax.f32 %v3115, %v3116
  %v3118 = vsub.f32 %v3115, %v3117
  %v3119 = vmul.f32 %v3118, 1.442695
  %v3120 = vpow.pop %v3119
  %v3121 = vsub.f32 %v3116, %v3117
  %v3122 = vmul.f32 %v3121, 1.442695
  %v3123 = vpow.pop %v3122
  %v3124 = vadd.f32 %v3120, %v3123
  %v3125 = vrcp.pop %v3124
  %v3126 = vmul.f32 %v3120, %v3125
  %v3127 = vmul.f32 %v3123, %v3125
  %v3128 = vadd.f32 %v606, %v2872
  %v3129 = vadd.f32 %v608, %v2874
  %v3130 = vadd.f32 %v719, %v2943
  %v3131 = vadd.f32 %v721, %v2945
  %v3132 = vadd.f32 %v832, %v3014
  %v3133 = vadd.f32 %v834, %v3016
  %v3134 = vadd.f32 %v945, %v3085
  %v3135 = vadd.f32 %v947, %v3087
  %v3136 = vxor.u32 %v3128, 2147483648
  %v3137 = vxor.u32 %v3129, 2147483648
  %v3138 = vxor.u32 %v3130, 2147483648
  %v3139 = vxor.u32 %v3131, 2147483648
  %v3140 = vxor.u32 %v3132, 2147483648
  %v3141 = vxor.u32 %v3133, 2147483648
  %v3142 = vmul.f32 %v3136, 1.442695
  %v3143 = vpow.pop %v3142
  %v3144 = vmul.f32 %v3137, 1.442695
  %v3145 = vpow.pop %v3144
  %v3146 = vmul.f32 %v3138, 1.442695
  %v3147 = vpow.pop %v3146
  %v3148 = vmul.f32 %v3139, 1.442695
  %v3149 = vpow.pop %v3148
  %v3150 = vmul.f32 %v3140, 1.442695
  %v3151 = vpow.pop %v3150
  %v3152 = vmul.f32 %v3141, 1.442695
  %v3153 = vpow.pop %v3152
  %v3154 = vadd.f32 %v3143, 1.0
  %v3155 = vadd.f32 %v3145, 1.0
  %v3156 = vadd.f32 %v3147, 1.0
  %v3157 = vadd.f32 %v3149, 1.0
  %v3158 = vadd.f32 %v3151, 1.0
  %v3159 = vadd.f32 %v3153, 1.0
  %v3160 = vrcp.pop %v3154
  %v3161 = vmul.f32 1.0, %v3160
  %v3162 = vrcp.pop %v3155
  %v3163 = vmul.f32 1.0, %v3162
  %v3164 = vrcp.pop %v3156
  %v3165 = vmul.f32 1.0, %v3164
  %v3166 = vrcp.pop %v3157
  %v3167 = vmul.f32 1.0, %v3166
  %v3168 = vrcp.pop %v3158
  %v3169 = vmul.f32 1.0, %v3168
  %v3170 = vrcp.pop %v3159
  %v3171 = vmul.f32 1.0, %v3170
  %v3172 = vtanh.pop %v3134
  %v3173 = vtanh.pop %v3135
  %v3174 = vmul.f32 %v2802, %v3165
  %v3175 = vmul.f32 %v3161, %v3172
  %v3176 = vadd.f32 %v3174, %v3175
  %v3177 = vtanh.pop %v3176
  %v3178 = vmul.f32 %v3169, %v3177
  %v3179 = vmul.f32 %v3176, %v3126
  %v3180 = vadd.f32 %v3179, 0.0
  %v3181 = vmul.f32 %v3178, %v3126
  %v3182 = vadd.f32 %v3181, 0.0
  %v3183 = vmul.f32 %v2802, %v3167
  %v3184 = vmul.f32 %v3163, %v3173
  %v3185 = vadd.f32 %v3183, %v3184
  %v3186 = vtanh.pop %v3185
  %v3187 = vmul.f32 %v3171, %v3186
  %v3188 = vmul.f32 %v3185, %v3127
  %v3189 = vadd.f32 %v3180, %v3188
  %v3190 = vmul.f32 %v3187, %v3127
  %v3191 = vadd.f32 %v3182, %v3190
  %3192 = vmatprep.subr.mxu0 %v192
  %3193 = vmatpush1.msra.mxu0 %v191
  %3194 = vmatprep.subr.mxu0 %v184
  %3195 = vmatpush1.msra.mxu0 %v183
  %3196 = vmatprep.subr.mxu0 %v176
  %3197 = vmatpush1.msra.mxu0 %v175
  %3198 = vmatprep.subr.mxu0 %v168
  %3199 = vmatpush1.msra.mxu0 %v167
  %3200 = vmatprep.subr.mxu0 %v160
  %3201 = vmatpush1.msra.mxu0 %v159
  %3202 = vmatprep.subr.mxu0 %v152
  %3203 = vmatpush1.msra.mxu0 %v151
  %3204 = vmatprep.subr.mxu0 %v144
  %3205 = vmatpush1.msra.mxu0 %v143
  %3206 = vmatprep.subr.mxu0 %v136
  %3207 = vmatpush1.msra.mxu0 %v135
  %3208 = vmatprep.subr.mxu0 %v128
  %3209 = vmatpush1.msra.mxu0 %v127
  %3210 = vmatprep.subr.mxu0 %v120
  %3211 = vmatpush1.msra.mxu0 %v119
  %3212 = vmatprep.subr.mxu0 %v112
  %3213 = vmatpush1.msra.mxu0 %v111
  %3214 = vmatprep.subr.mxu0 %v104
  %3215 = vmatpush1.msra.mxu0 %v103
  %3216 = vmatprep.subr.mxu0 %v96
  %3217 = vmatpush1.msra.mxu0 %v95
  %3218 = vmatprep.subr.mxu0 %v88
  %3219 = vmatpush1.msra.mxu0 %v87
  %3220 = vmatprep.subr.mxu0 %v80
  %3221 = vmatpush1.msra.mxu0 %v79
  %3222 = vmatprep.subr.mxu0 %v72
  %3223 = vmatpush1.msra.mxu0 %v71
  %3224 = vmatprep.subr.mxu0 0.0
  %3225 = vmatpush2.msra.mxu0 0.0
  %3226 = vmatprep.subr.mxu0 0.0
  %3227 = vmatpush2.msra.mxu0 0.0
  %3228 = vmatprep.subr.mxu0 0.0
  %3229 = vmatpush2.msra.mxu0 0.0
  %3230 = vmatprep.subr.mxu0 0.0
  %3231 = vmatpush2.msra.mxu0 0.0
  %3232 = vmatprep.subr.mxu0 0.0
  %3233 = vmatpush2.msra.mxu0 0.0
  %3234 = vmatprep.subr.mxu0 0.0
  %3235 = vmatpush2.msra.mxu0 0.0
  %3236 = vmatprep.subr.mxu0 0.0
  %3237 = vmatpush2.msra.mxu0 0.0
  %3238 = vmatprep.subr.mxu0 0.0
  %3239 = vmatpush2.msra.mxu0 0.0
  %3240 = vmatprep.subr.mxu0 0.0
  %3241 = vmatpush2.msra.mxu0 0.0
  %3242 = vmatprep.subr.mxu0 0.0
  %3243 = vmatpush2.msra.mxu0 0.0
  %3244 = vmatprep.subr.mxu0 0.0
  %3245 = vmatpush2.msra.mxu0 0.0
  %3246 = vmatprep.subr.mxu0 0.0
  %3247 = vmatpush2.msra.mxu0 0.0
  %3248 = vmatprep.subr.mxu0 0.0
  %3249 = vmatpush2.msra.mxu0 0.0
  %3250 = vmatprep.subr.mxu0 0.0
  %3251 = vmatpush2.msra.mxu0 0.0
  %3252 = vmatprep.subr.mxu0 0.0
  %3253 = vmatpush2.msra.mxu0 0.0
  %3254 = vmatprep.subr.mxu0 0.0
  %3255 = vmatpush2.msra.mxu0 0.0
  %3256 = vmatprep.mubr.f32.mxu0 0.0
  %3257 = vmatmul.mubr.f32.gmra.mxu0 %v3191
  %v3258 = vpop.f32.mrf.mxu0
  %v3259 = vadd.f32 0.0, %v3258
  %v3260 = vpop.f32.mrf.mxu0
  %v3261 = vadd.f32 0.0, %v3260
  %3262 = vdwg.mxu0
  %3263 = vmatprep.subr.mxu0 %v194
  %3264 = vmatpush1.msra.mxu0 %v193
  %3265 = vmatprep.subr.mxu0 %v186
  %3266 = vmatpush1.msra.mxu0 %v185
  %3267 = vmatprep.subr.mxu0 %v178
  %3268 = vmatpush1.msra.mxu0 %v177
  %3269 = vmatprep.subr.mxu0 %v170
  %3270 = vmatpush1.msra.mxu0 %v169
  %3271 = vmatprep.subr.mxu0 %v162
  %3272 = vmatpush1.msra.mxu0 %v161
  %3273 = vmatprep.subr.mxu0 %v154
  %3274 = vmatpush1.msra.mxu0 %v153
  %3275 = vmatprep.subr.mxu0 %v146
  %3276 = vmatpush1.msra.mxu0 %v145
  %3277 = vmatprep.subr.mxu0 %v138
  %3278 = vmatpush1.msra.mxu0 %v137
  %3279 = vmatprep.subr.mxu0 %v130
  %3280 = vmatpush1.msra.mxu0 %v129
  %3281 = vmatprep.subr.mxu0 %v122
  %3282 = vmatpush1.msra.mxu0 %v121
  %3283 = vmatprep.subr.mxu0 %v114
  %3284 = vmatpush1.msra.mxu0 %v113
  %3285 = vmatprep.subr.mxu0 %v106
  %3286 = vmatpush1.msra.mxu0 %v105
  %3287 = vmatprep.subr.mxu0 %v98
  %3288 = vmatpush1.msra.mxu0 %v97
  %3289 = vmatprep.subr.mxu0 %v90
  %3290 = vmatpush1.msra.mxu0 %v89
  %3291 = vmatprep.subr.mxu0 %v82
  %3292 = vmatpush1.msra.mxu0 %v81
  %3293 = vmatprep.subr.mxu0 %v74
  %3294 = vmatpush1.msra.mxu0 %v73
  %3295 = vmatprep.subr.mxu0 0.0
  %3296 = vmatpush2.msra.mxu0 0.0
  %3297 = vmatprep.subr.mxu0 0.0
  %3298 = vmatpush2.msra.mxu0 0.0
  %3299 = vmatprep.subr.mxu0 0.0
  %3300 = vmatpush2.msra.mxu0 0.0
  %3301 = vmatprep.subr.mxu0 0.0
  %3302 = vmatpush2.msra.mxu0 0.0
  %3303 = vmatprep.subr.mxu0 0.0
  %3304 = vmatpush2.msra.mxu0 0.0
  %3305 = vmatprep.subr.mxu0 0.0
  %3306 = vmatpush2.msra.mxu0 0.0
  %3307 = vmatprep.subr.mxu0 0.0
  %3308 = vmatpush2.msra.mxu0 0.0
  %3309 = vmatprep.subr.mxu0 0.0
  %3310 = vmatpush2.msra.mxu0 0.0
  %3311 = vmatprep.subr.mxu0 0.0
  %3312 = vmatpush2.msra.mxu0 0.0
  %3313 = vmatprep.subr.mxu0 0.0
  %3314 = vmatpush2.msra.mxu0 0.0
  %3315 = vmatprep.subr.mxu0 0.0
  %3316 = vmatpush2.msra.mxu0 0.0
  %3317 = vmatprep.subr.mxu0 0.0
  %3318 = vmatpush2.msra.mxu0 0.0
  %3319 = vmatprep.subr.mxu0 0.0
  %3320 = vmatpush2.msra.mxu0 0.0
  %3321 = vmatprep.subr.mxu0 0.0
  %3322 = vmatpush2.msra.mxu0 0.0
  %3323 = vmatprep.subr.mxu0 0.0
  %3324 = vmatpush2.msra.mxu0 0.0
  %3325 = vmatprep.subr.mxu0 0.0
  %3326 = vmatpush2.msra.mxu0 0.0
  %3327 = vmatprep.mubr.f32.mxu0 0.0
  %3328 = vmatmul.mubr.f32.gmra.mxu0 %v3191
  %v3329 = vpop.f32.mrf.mxu0
  %v3330 = vadd.f32 0.0, %v3329
  %v3331 = vpop.f32.mrf.mxu0
  %v3332 = vadd.f32 0.0, %v3331
  %3333 = vdwg.mxu0
  %3334 = vmatprep.subr.mxu0 %v196
  %3335 = vmatpush1.msra.mxu0 %v195
  %3336 = vmatprep.subr.mxu0 %v188
  %3337 = vmatpush1.msra.mxu0 %v187
  %3338 = vmatprep.subr.mxu0 %v180
  %3339 = vmatpush1.msra.mxu0 %v179
  %3340 = vmatprep.subr.mxu0 %v172
  %3341 = vmatpush1.msra.mxu0 %v171
  %3342 = vmatprep.subr.mxu0 %v164
  %3343 = vmatpush1.msra.mxu0 %v163
  %3344 = vmatprep.subr.mxu0 %v156
  %3345 = vmatpush1.msra.mxu0 %v155
  %3346 = vmatprep.subr.mxu0 %v148
  %3347 = vmatpush1.msra.mxu0 %v147
  %3348 = vmatprep.subr.mxu0 %v140
  %3349 = vmatpush1.msra.mxu0 %v139
  %3350 = vmatprep.subr.mxu0 %v132
  %3351 = vmatpush1.msra.mxu0 %v131
  %3352 = vmatprep.subr.mxu0 %v124
  %3353 = vmatpush1.msra.mxu0 %v123
  %3354 = vmatprep.subr.mxu0 %v116
  %3355 = vmatpush1.msra.mxu0 %v115
  %3356 = vmatprep.subr.mxu0 %v108
  %3357 = vmatpush1.msra.mxu0 %v107
  %3358 = vmatprep.subr.mxu0 %v100
  %3359 = vmatpush1.msra.mxu0 %v99
  %3360 = vmatprep.subr.mxu0 %v92
  %3361 = vmatpush1.msra.mxu0 %v91
  %3362 = vmatprep.subr.mxu0 %v84
  %3363 = vmatpush1.msra.mxu0 %v83
  %3364 = vmatprep.subr.mxu0 %v76
  %3365 = vmatpush1.msra.mxu0 %v75
  %3366 = vmatprep.subr.mxu0 0.0
  %3367 = vmatpush2.msra.mxu0 0.0
  %3368 = vmatprep.subr.mxu0 0.0
  %3369 = vmatpush2.msra.mxu0 0.0
  %3370 = vmatprep.subr.mxu0 0.0
  %3371 = vmatpush2.msra.mxu0 0.0
  %3372 = vmatprep.subr.mxu0 0.0
  %3373 = vmatpush2.msra.mxu0 0.0
  %3374 = vmatprep.subr.mxu0 0.0
  %3375 = vmatpush2.msra.mxu0 0.0
  %3376 = vmatprep.subr.mxu0 0.0
  %3377 = vmatpush2.msra.mxu0 0.0
  %3378 = vmatprep.subr.mxu0 0.0
  %3379 = vmatpush2.msra.mxu0 0.0
  %3380 = vmatprep.subr.mxu0 0.0
  %3381 = vmatpush2.msra.mxu0 0.0
  %3382 = vmatprep.subr.mxu0 0.0
  %3383 = vmatpush2.msra.mxu0 0.0
  %3384 = vmatprep.subr.mxu0 0.0
  %3385 = vmatpush2.msra.mxu0 0.0
  %3386 = vmatprep.subr.mxu0 0.0
  %3387 = vmatpush2.msra.mxu0 0.0
  %3388 = vmatprep.subr.mxu0 0.0
  %3389 = vmatpush2.msra.mxu0 0.0
  %3390 = vmatprep.subr.mxu0 0.0
  %3391 = vmatpush2.msra.mxu0 0.0
  %3392 = vmatprep.subr.mxu0 0.0
  %3393 = vmatpush2.msra.mxu0 0.0
  %3394 = vmatprep.subr.mxu0 0.0
  %3395 = vmatpush2.msra.mxu0 0.0
  %3396 = vmatprep.subr.mxu0 0.0
  %3397 = vmatpush2.msra.mxu0 0.0
  %3398 = vmatprep.mubr.f32.mxu0 0.0
  %3399 = vmatmul.mubr.f32.gmra.mxu0 %v3191
  %v3400 = vpop.f32.mrf.mxu0
  %v3401 = vadd.f32 0.0, %v3400
  %v3402 = vpop.f32.mrf.mxu0
  %v3403 = vadd.f32 0.0, %v3402
  %3404 = vdwg.mxu0
  %3405 = vmatprep.subr.mxu0 %v198
  %3406 = vmatpush1.msra.mxu0 %v197
  %3407 = vmatprep.subr.mxu0 %v190
  %3408 = vmatpush1.msra.mxu0 %v189
  %3409 = vmatprep.subr.mxu0 %v182
  %3410 = vmatpush1.msra.mxu0 %v181
  %3411 = vmatprep.subr.mxu0 %v174
  %3412 = vmatpush1.msra.mxu0 %v173
  %3413 = vmatprep.subr.mxu0 %v166
  %3414 = vmatpush1.msra.mxu0 %v165
  %3415 = vmatprep.subr.mxu0 %v158
  %3416 = vmatpush1.msra.mxu0 %v157
  %3417 = vmatprep.subr.mxu0 %v150
  %3418 = vmatpush1.msra.mxu0 %v149
  %3419 = vmatprep.subr.mxu0 %v142
  %3420 = vmatpush1.msra.mxu0 %v141
  %3421 = vmatprep.subr.mxu0 %v134
  %3422 = vmatpush1.msra.mxu0 %v133
  %3423 = vmatprep.subr.mxu0 %v126
  %3424 = vmatpush1.msra.mxu0 %v125
  %3425 = vmatprep.subr.mxu0 %v118
  %3426 = vmatpush1.msra.mxu0 %v117
  %3427 = vmatprep.subr.mxu0 %v110
  %3428 = vmatpush1.msra.mxu0 %v109
  %3429 = vmatprep.subr.mxu0 %v102
  %3430 = vmatpush1.msra.mxu0 %v101
  %3431 = vmatprep.subr.mxu0 %v94
  %3432 = vmatpush1.msra.mxu0 %v93
  %3433 = vmatprep.subr.mxu0 %v86
  %3434 = vmatpush1.msra.mxu0 %v85
  %3435 = vmatprep.subr.mxu0 %v78
  %3436 = vmatpush1.msra.mxu0 %v77
  %3437 = vmatprep.subr.mxu0 0.0
  %3438 = vmatpush2.msra.mxu0 0.0
  %3439 = vmatprep.subr.mxu0 0.0
  %3440 = vmatpush2.msra.mxu0 0.0
  %3441 = vmatprep.subr.mxu0 0.0
  %3442 = vmatpush2.msra.mxu0 0.0
  %3443 = vmatprep.subr.mxu0 0.0
  %3444 = vmatpush2.msra.mxu0 0.0
  %3445 = vmatprep.subr.mxu0 0.0
  %3446 = vmatpush2.msra.mxu0 0.0
  %3447 = vmatprep.subr.mxu0 0.0
  %3448 = vmatpush2.msra.mxu0 0.0
  %3449 = vmatprep.subr.mxu0 0.0
  %3450 = vmatpush2.msra.mxu0 0.0
  %3451 = vmatprep.subr.mxu0 0.0
  %3452 = vmatpush2.msra.mxu0 0.0
  %3453 = vmatprep.subr.mxu0 0.0
  %3454 = vmatpush2.msra.mxu0 0.0
  %3455 = vmatprep.subr.mxu0 0.0
  %3456 = vmatpush2.msra.mxu0 0.0
  %3457 = vmatprep.subr.mxu0 0.0
  %3458 = vmatpush2.msra.mxu0 0.0
  %3459 = vmatprep.subr.mxu0 0.0
  %3460 = vmatpush2.msra.mxu0 0.0
  %3461 = vmatprep.subr.mxu0 0.0
  %3462 = vmatpush2.msra.mxu0 0.0
  %3463 = vmatprep.subr.mxu0 0.0
  %3464 = vmatpush2.msra.mxu0 0.0
  %3465 = vmatprep.subr.mxu0 0.0
  %3466 = vmatpush2.msra.mxu0 0.0
  %3467 = vmatprep.subr.mxu0 0.0
  %3468 = vmatpush2.msra.mxu0 0.0
  %3469 = vmatprep.mubr.f32.mxu0 0.0
  %3470 = vmatmul.mubr.f32.gmra.mxu0 %v3191
  %v3471 = vpop.f32.mrf.mxu0
  %v3472 = vadd.f32 0.0, %v3471
  %v3473 = vpop.f32.mrf.mxu0
  %v3474 = vadd.f32 0.0, %v3473
  %3475 = vdwg.mxu0
  %v3476 = vmax.f32 %v3259, 0.0
  %v3477 = vmax.f32 %v3261, 0.0
  %v3478 = vmax.f32 %v3330, 0.0
  %v3479 = vmax.f32 %v3332, 0.0
  %v3480 = vmax.f32 %v3401, 0.0
  %v3481 = vmax.f32 %v3403, 0.0
  %v3482 = vmax.f32 %v3472, 0.0
  %v3483 = vmax.f32 %v3474, 0.0
  %v3484 = vmul.f32 %v3476, %v1512
  %v3485 = vmul.f32 %v3477, %v1516
  %v3486 = vmul.f32 %v3478, %v1520
  %v3487 = vmul.f32 %v3479, %v1524
  %v3488 = vmul.f32 %v3480, %v1528
  %v3489 = vmul.f32 %v3481, %v1532
  %v3490 = vmul.f32 %v3482, %v1536
  %v3491 = vmul.f32 %v3483, %v1540
  %v3492 = vadd.f32 %v3484, %v3486
  %v3493 = vadd.f32 %v3485, %v3487
  %v3494 = vadd.f32 %v3492, %v3488
  %v3495 = vadd.f32 %v3493, %v3489
  %v3496 = vadd.f32 %v3494, %v3490
  %v3497 = vadd.f32 %v3495, %v3491
  %3498 = vadd.xlane.f32.xlu0 %v3496
  %v3499 = vpop.xlane.xlu0 %3498
  %3500 = vadd.xlane.f32.xlu0 %v3497
  %v3501 = vpop.xlane.xlu0 %3500
  %v3502 = vadd.f32 %v1195, %v3499
  %v3503 = vadd.f32 %v1211, %v3501
  %v3504 = vmax.f32 %v3502, %v3503
  %v3505 = vsub.f32 %v3502, %v3504
  %v3506 = vmul.f32 %v3505, 1.442695
  %v3507 = vpow.pop %v3506
  %v3508 = vsub.f32 %v3503, %v3504
  %v3509 = vmul.f32 %v3508, 1.442695
  %v3510 = vpow.pop %v3509
  %v3511 = vadd.f32 %v3507, %v3510
  %v3512 = vrcp.pop %v3511
  %v3513 = vmul.f32 %v3507, %v3512
  %v3514 = vmul.f32 %v3510, %v3512
  %v3515 = vadd.f32 %v612, %v3259
  %v3516 = vadd.f32 %v614, %v3261
  %v3517 = vadd.f32 %v725, %v3330
  %v3518 = vadd.f32 %v727, %v3332
  %v3519 = vadd.f32 %v838, %v3401
  %v3520 = vadd.f32 %v840, %v3403
  %v3521 = vadd.f32 %v951, %v3472
  %v3522 = vadd.f32 %v953, %v3474
  %v3523 = vxor.u32 %v3515, 2147483648
  %v3524 = vxor.u32 %v3516, 2147483648
  %v3525 = vxor.u32 %v3517, 2147483648
  %v3526 = vxor.u32 %v3518, 2147483648
  %v3527 = vxor.u32 %v3519, 2147483648
  %v3528 = vxor.u32 %v3520, 2147483648
  %v3529 = vmul.f32 %v3523, 1.442695
  %v3530 = vpow.pop %v3529
  %v3531 = vmul.f32 %v3524, 1.442695
  %v3532 = vpow.pop %v3531
  %v3533 = vmul.f32 %v3525, 1.442695
  %v3534 = vpow.pop %v3533
  %v3535 = vmul.f32 %v3526, 1.442695
  %v3536 = vpow.pop %v3535
  %v3537 = vmul.f32 %v3527, 1.442695
  %v3538 = vpow.pop %v3537
  %v3539 = vmul.f32 %v3528, 1.442695
  %v3540 = vpow.pop %v3539
  %v3541 = vadd.f32 %v3530, 1.0
  %v3542 = vadd.f32 %v3532, 1.0
  %v3543 = vadd.f32 %v3534, 1.0
  %v3544 = vadd.f32 %v3536, 1.0
  %v3545 = vadd.f32 %v3538, 1.0
  %v3546 = vadd.f32 %v3540, 1.0
  %v3547 = vrcp.pop %v3541
  %v3548 = vmul.f32 1.0, %v3547
  %v3549 = vrcp.pop %v3542
  %v3550 = vmul.f32 1.0, %v3549
  %v3551 = vrcp.pop %v3543
  %v3552 = vmul.f32 1.0, %v3551
  %v3553 = vrcp.pop %v3544
  %v3554 = vmul.f32 1.0, %v3553
  %v3555 = vrcp.pop %v3545
  %v3556 = vmul.f32 1.0, %v3555
  %v3557 = vrcp.pop %v3546
  %v3558 = vmul.f32 1.0, %v3557
  %v3559 = vtanh.pop %v3521
  %v3560 = vtanh.pop %v3522
  %v3561 = vmul.f32 %v3189, %v3552
  %v3562 = vmul.f32 %v3548, %v3559
  %v3563 = vadd.f32 %v3561, %v3562
  %v3564 = vtanh.pop %v3563
  %v3565 = vmul.f32 %v3556, %v3564
  %v3566 = vmul.f32 %v3563, %v3513
  %v3567 = vadd.f32 %v3566, 0.0
  %v3568 = vmul.f32 %v3565, %v3513
  %v3569 = vadd.f32 %v3568, 0.0
  %v3570 = vmul.f32 %v3189, %v3554
  %v3571 = vmul.f32 %v3550, %v3560
  %v3572 = vadd.f32 %v3570, %v3571
  %v3573 = vtanh.pop %v3572
  %v3574 = vmul.f32 %v3558, %v3573
  %v3575 = vmul.f32 %v3572, %v3514
  %v3576 = vadd.f32 %v3567, %v3575
  %v3577 = vmul.f32 %v3574, %v3514
  %v3578 = vadd.f32 %v3569, %v3577
  %3579 = vmatprep.subr.mxu0 %v192
  %3580 = vmatpush1.msra.mxu0 %v191
  %3581 = vmatprep.subr.mxu0 %v184
  %3582 = vmatpush1.msra.mxu0 %v183
  %3583 = vmatprep.subr.mxu0 %v176
  %3584 = vmatpush1.msra.mxu0 %v175
  %3585 = vmatprep.subr.mxu0 %v168
  %3586 = vmatpush1.msra.mxu0 %v167
  %3587 = vmatprep.subr.mxu0 %v160
  %3588 = vmatpush1.msra.mxu0 %v159
  %3589 = vmatprep.subr.mxu0 %v152
  %3590 = vmatpush1.msra.mxu0 %v151
  %3591 = vmatprep.subr.mxu0 %v144
  %3592 = vmatpush1.msra.mxu0 %v143
  %3593 = vmatprep.subr.mxu0 %v136
  %3594 = vmatpush1.msra.mxu0 %v135
  %3595 = vmatprep.subr.mxu0 %v128
  %3596 = vmatpush1.msra.mxu0 %v127
  %3597 = vmatprep.subr.mxu0 %v120
  %3598 = vmatpush1.msra.mxu0 %v119
  %3599 = vmatprep.subr.mxu0 %v112
  %3600 = vmatpush1.msra.mxu0 %v111
  %3601 = vmatprep.subr.mxu0 %v104
  %3602 = vmatpush1.msra.mxu0 %v103
  %3603 = vmatprep.subr.mxu0 %v96
  %3604 = vmatpush1.msra.mxu0 %v95
  %3605 = vmatprep.subr.mxu0 %v88
  %3606 = vmatpush1.msra.mxu0 %v87
  %3607 = vmatprep.subr.mxu0 %v80
  %3608 = vmatpush1.msra.mxu0 %v79
  %3609 = vmatprep.subr.mxu0 %v72
  %3610 = vmatpush1.msra.mxu0 %v71
  %3611 = vmatprep.subr.mxu0 0.0
  %3612 = vmatpush2.msra.mxu0 0.0
  %3613 = vmatprep.subr.mxu0 0.0
  %3614 = vmatpush2.msra.mxu0 0.0
  %3615 = vmatprep.subr.mxu0 0.0
  %3616 = vmatpush2.msra.mxu0 0.0
  %3617 = vmatprep.subr.mxu0 0.0
  %3618 = vmatpush2.msra.mxu0 0.0
  %3619 = vmatprep.subr.mxu0 0.0
  %3620 = vmatpush2.msra.mxu0 0.0
  %3621 = vmatprep.subr.mxu0 0.0
  %3622 = vmatpush2.msra.mxu0 0.0
  %3623 = vmatprep.subr.mxu0 0.0
  %3624 = vmatpush2.msra.mxu0 0.0
  %3625 = vmatprep.subr.mxu0 0.0
  %3626 = vmatpush2.msra.mxu0 0.0
  %3627 = vmatprep.subr.mxu0 0.0
  %3628 = vmatpush2.msra.mxu0 0.0
  %3629 = vmatprep.subr.mxu0 0.0
  %3630 = vmatpush2.msra.mxu0 0.0
  %3631 = vmatprep.subr.mxu0 0.0
  %3632 = vmatpush2.msra.mxu0 0.0
  %3633 = vmatprep.subr.mxu0 0.0
  %3634 = vmatpush2.msra.mxu0 0.0
  %3635 = vmatprep.subr.mxu0 0.0
  %3636 = vmatpush2.msra.mxu0 0.0
  %3637 = vmatprep.subr.mxu0 0.0
  %3638 = vmatpush2.msra.mxu0 0.0
  %3639 = vmatprep.subr.mxu0 0.0
  %3640 = vmatpush2.msra.mxu0 0.0
  %3641 = vmatprep.subr.mxu0 0.0
  %3642 = vmatpush2.msra.mxu0 0.0
  %3643 = vmatprep.mubr.f32.mxu0 0.0
  %3644 = vmatmul.mubr.f32.gmra.mxu0 %v3578
  %v3645 = vpop.f32.mrf.mxu0
  %v3646 = vadd.f32 0.0, %v3645
  %v3647 = vpop.f32.mrf.mxu0
  %v3648 = vadd.f32 0.0, %v3647
  %3649 = vdwg.mxu0
  %3650 = vmatprep.subr.mxu0 %v194
  %3651 = vmatpush1.msra.mxu0 %v193
  %3652 = vmatprep.subr.mxu0 %v186
  %3653 = vmatpush1.msra.mxu0 %v185
  %3654 = vmatprep.subr.mxu0 %v178
  %3655 = vmatpush1.msra.mxu0 %v177
  %3656 = vmatprep.subr.mxu0 %v170
  %3657 = vmatpush1.msra.mxu0 %v169
  %3658 = vmatprep.subr.mxu0 %v162
  %3659 = vmatpush1.msra.mxu0 %v161
  %3660 = vmatprep.subr.mxu0 %v154
  %3661 = vmatpush1.msra.mxu0 %v153
  %3662 = vmatprep.subr.mxu0 %v146
  %3663 = vmatpush1.msra.mxu0 %v145
  %3664 = vmatprep.subr.mxu0 %v138
  %3665 = vmatpush1.msra.mxu0 %v137
  %3666 = vmatprep.subr.mxu0 %v130
  %3667 = vmatpush1.msra.mxu0 %v129
  %3668 = vmatprep.subr.mxu0 %v122
  %3669 = vmatpush1.msra.mxu0 %v121
  %3670 = vmatprep.subr.mxu0 %v114
  %3671 = vmatpush1.msra.mxu0 %v113
  %3672 = vmatprep.subr.mxu0 %v106
  %3673 = vmatpush1.msra.mxu0 %v105
  %3674 = vmatprep.subr.mxu0 %v98
  %3675 = vmatpush1.msra.mxu0 %v97
  %3676 = vmatprep.subr.mxu0 %v90
  %3677 = vmatpush1.msra.mxu0 %v89
  %3678 = vmatprep.subr.mxu0 %v82
  %3679 = vmatpush1.msra.mxu0 %v81
  %3680 = vmatprep.subr.mxu0 %v74
  %3681 = vmatpush1.msra.mxu0 %v73
  %3682 = vmatprep.subr.mxu0 0.0
  %3683 = vmatpush2.msra.mxu0 0.0
  %3684 = vmatprep.subr.mxu0 0.0
  %3685 = vmatpush2.msra.mxu0 0.0
  %3686 = vmatprep.subr.mxu0 0.0
  %3687 = vmatpush2.msra.mxu0 0.0
  %3688 = vmatprep.subr.mxu0 0.0
  %3689 = vmatpush2.msra.mxu0 0.0
  %3690 = vmatprep.subr.mxu0 0.0
  %3691 = vmatpush2.msra.mxu0 0.0
  %3692 = vmatprep.subr.mxu0 0.0
  %3693 = vmatpush2.msra.mxu0 0.0
  %3694 = vmatprep.subr.mxu0 0.0
  %3695 = vmatpush2.msra.mxu0 0.0
  %3696 = vmatprep.subr.mxu0 0.0
  %3697 = vmatpush2.msra.mxu0 0.0
  %3698 = vmatprep.subr.mxu0 0.0
  %3699 = vmatpush2.msra.mxu0 0.0
  %3700 = vmatprep.subr.mxu0 0.0
  %3701 = vmatpush2.msra.mxu0 0.0
  %3702 = vmatprep.subr.mxu0 0.0
  %3703 = vmatpush2.msra.mxu0 0.0
  %3704 = vmatprep.subr.mxu0 0.0
  %3705 = vmatpush2.msra.mxu0 0.0
  %3706 = vmatprep.subr.mxu0 0.0
  %3707 = vmatpush2.msra.mxu0 0.0
  %3708 = vmatprep.subr.mxu0 0.0
  %3709 = vmatpush2.msra.mxu0 0.0
  %3710 = vmatprep.subr.mxu0 0.0
  %3711 = vmatpush2.msra.mxu0 0.0
  %3712 = vmatprep.subr.mxu0 0.0
  %3713 = vmatpush2.msra.mxu0 0.0
  %3714 = vmatprep.mubr.f32.mxu0 0.0
  %3715 = vmatmul.mubr.f32.gmra.mxu0 %v3578
  %v3716 = vpop.f32.mrf.mxu0
  %v3717 = vadd.f32 0.0, %v3716
  %v3718 = vpop.f32.mrf.mxu0
  %v3719 = vadd.f32 0.0, %v3718
  %3720 = vdwg.mxu0
  %3721 = vmatprep.subr.mxu0 %v196
  %3722 = vmatpush1.msra.mxu0 %v195
  %3723 = vmatprep.subr.mxu0 %v188
  %3724 = vmatpush1.msra.mxu0 %v187
  %3725 = vmatprep.subr.mxu0 %v180
  %3726 = vmatpush1.msra.mxu0 %v179
  %3727 = vmatprep.subr.mxu0 %v172
  %3728 = vmatpush1.msra.mxu0 %v171
  %3729 = vmatprep.subr.mxu0 %v164
  %3730 = vmatpush1.msra.mxu0 %v163
  %3731 = vmatprep.subr.mxu0 %v156
  %3732 = vmatpush1.msra.mxu0 %v155
  %3733 = vmatprep.subr.mxu0 %v148
  %3734 = vmatpush1.msra.mxu0 %v147
  %3735 = vmatprep.subr.mxu0 %v140
  %3736 = vmatpush1.msra.mxu0 %v139
  %3737 = vmatprep.subr.mxu0 %v132
  %3738 = vmatpush1.msra.mxu0 %v131
  %3739 = vmatprep.subr.mxu0 %v124
  %3740 = vmatpush1.msra.mxu0 %v123
  %3741 = vmatprep.subr.mxu0 %v116
  %3742 = vmatpush1.msra.mxu0 %v115
  %3743 = vmatprep.subr.mxu0 %v108
  %3744 = vmatpush1.msra.mxu0 %v107
  %3745 = vmatprep.subr.mxu0 %v100
  %3746 = vmatpush1.msra.mxu0 %v99
  %3747 = vmatprep.subr.mxu0 %v92
  %3748 = vmatpush1.msra.mxu0 %v91
  %3749 = vmatprep.subr.mxu0 %v84
  %3750 = vmatpush1.msra.mxu0 %v83
  %3751 = vmatprep.subr.mxu0 %v76
  %3752 = vmatpush1.msra.mxu0 %v75
  %3753 = vmatprep.subr.mxu0 0.0
  %3754 = vmatpush2.msra.mxu0 0.0
  %3755 = vmatprep.subr.mxu0 0.0
  %3756 = vmatpush2.msra.mxu0 0.0
  %3757 = vmatprep.subr.mxu0 0.0
  %3758 = vmatpush2.msra.mxu0 0.0
  %3759 = vmatprep.subr.mxu0 0.0
  %3760 = vmatpush2.msra.mxu0 0.0
  %3761 = vmatprep.subr.mxu0 0.0
  %3762 = vmatpush2.msra.mxu0 0.0
  %3763 = vmatprep.subr.mxu0 0.0
  %3764 = vmatpush2.msra.mxu0 0.0
  %3765 = vmatprep.subr.mxu0 0.0
  %3766 = vmatpush2.msra.mxu0 0.0
  %3767 = vmatprep.subr.mxu0 0.0
  %3768 = vmatpush2.msra.mxu0 0.0
  %3769 = vmatprep.subr.mxu0 0.0
  %3770 = vmatpush2.msra.mxu0 0.0
  %3771 = vmatprep.subr.mxu0 0.0
  %3772 = vmatpush2.msra.mxu0 0.0
  %3773 = vmatprep.subr.mxu0 0.0
  %3774 = vmatpush2.msra.mxu0 0.0
  %3775 = vmatprep.subr.mxu0 0.0
  %3776 = vmatpush2.msra.mxu0 0.0
  %3777 = vmatprep.subr.mxu0 0.0
  %3778 = vmatpush2.msra.mxu0 0.0
  %3779 = vmatprep.subr.mxu0 0.0
  %3780 = vmatpush2.msra.mxu0 0.0
  %3781 = vmatprep.subr.mxu0 0.0
  %3782 = vmatpush2.msra.mxu0 0.0
  %3783 = vmatprep.subr.mxu0 0.0
  %3784 = vmatpush2.msra.mxu0 0.0
  %3785 = vmatprep.mubr.f32.mxu0 0.0
  %3786 = vmatmul.mubr.f32.gmra.mxu0 %v3578
  %v3787 = vpop.f32.mrf.mxu0
  %v3788 = vadd.f32 0.0, %v3787
  %v3789 = vpop.f32.mrf.mxu0
  %v3790 = vadd.f32 0.0, %v3789
  %3791 = vdwg.mxu0
  %3792 = vmatprep.subr.mxu0 %v198
  %3793 = vmatpush1.msra.mxu0 %v197
  %3794 = vmatprep.subr.mxu0 %v190
  %3795 = vmatpush1.msra.mxu0 %v189
  %3796 = vmatprep.subr.mxu0 %v182
  %3797 = vmatpush1.msra.mxu0 %v181
  %3798 = vmatprep.subr.mxu0 %v174
  %3799 = vmatpush1.msra.mxu0 %v173
  %3800 = vmatprep.subr.mxu0 %v166
  %3801 = vmatpush1.msra.mxu0 %v165
  %3802 = vmatprep.subr.mxu0 %v158
  %3803 = vmatpush1.msra.mxu0 %v157
  %3804 = vmatprep.subr.mxu0 %v150
  %3805 = vmatpush1.msra.mxu0 %v149
  %3806 = vmatprep.subr.mxu0 %v142
  %3807 = vmatpush1.msra.mxu0 %v141
  %3808 = vmatprep.subr.mxu0 %v134
  %3809 = vmatpush1.msra.mxu0 %v133
  %3810 = vmatprep.subr.mxu0 %v126
  %3811 = vmatpush1.msra.mxu0 %v125
  %3812 = vmatprep.subr.mxu0 %v118
  %3813 = vmatpush1.msra.mxu0 %v117
  %3814 = vmatprep.subr.mxu0 %v110
  %3815 = vmatpush1.msra.mxu0 %v109
  %3816 = vmatprep.subr.mxu0 %v102
  %3817 = vmatpush1.msra.mxu0 %v101
  %3818 = vmatprep.subr.mxu0 %v94
  %3819 = vmatpush1.msra.mxu0 %v93
  %3820 = vmatprep.subr.mxu0 %v86
  %3821 = vmatpush1.msra.mxu0 %v85
  %3822 = vmatprep.subr.mxu0 %v78
  %3823 = vmatpush1.msra.mxu0 %v77
  %3824 = vmatprep.subr.mxu0 0.0
  %3825 = vmatpush2.msra.mxu0 0.0
  %3826 = vmatprep.subr.mxu0 0.0
  %3827 = vmatpush2.msra.mxu0 0.0
  %3828 = vmatprep.subr.mxu0 0.0
  %3829 = vmatpush2.msra.mxu0 0.0
  %3830 = vmatprep.subr.mxu0 0.0
  %3831 = vmatpush2.msra.mxu0 0.0
  %3832 = vmatprep.subr.mxu0 0.0
  %3833 = vmatpush2.msra.mxu0 0.0
  %3834 = vmatprep.subr.mxu0 0.0
  %3835 = vmatpush2.msra.mxu0 0.0
  %3836 = vmatprep.subr.mxu0 0.0
  %3837 = vmatpush2.msra.mxu0 0.0
  %3838 = vmatprep.subr.mxu0 0.0
  %3839 = vmatpush2.msra.mxu0 0.0
  %3840 = vmatprep.subr.mxu0 0.0
  %3841 = vmatpush2.msra.mxu0 0.0
  %3842 = vmatprep.subr.mxu0 0.0
  %3843 = vmatpush2.msra.mxu0 0.0
  %3844 = vmatprep.subr.mxu0 0.0
  %3845 = vmatpush2.msra.mxu0 0.0
  %3846 = vmatprep.subr.mxu0 0.0
  %3847 = vmatpush2.msra.mxu0 0.0
  %3848 = vmatprep.subr.mxu0 0.0
  %3849 = vmatpush2.msra.mxu0 0.0
  %3850 = vmatprep.subr.mxu0 0.0
  %3851 = vmatpush2.msra.mxu0 0.0
  %3852 = vmatprep.subr.mxu0 0.0
  %3853 = vmatpush2.msra.mxu0 0.0
  %3854 = vmatprep.subr.mxu0 0.0
  %3855 = vmatpush2.msra.mxu0 0.0
  %3856 = vmatprep.mubr.f32.mxu0 0.0
  %3857 = vmatmul.mubr.f32.gmra.mxu0 %v3578
  %v3858 = vpop.f32.mrf.mxu0
  %v3859 = vadd.f32 0.0, %v3858
  %v3860 = vpop.f32.mrf.mxu0
  %v3861 = vadd.f32 0.0, %v3860
  %3862 = vdwg.mxu0
  %v3863 = vmax.f32 %v3646, 0.0
  %v3864 = vmax.f32 %v3648, 0.0
  %v3865 = vmax.f32 %v3717, 0.0
  %v3866 = vmax.f32 %v3719, 0.0
  %v3867 = vmax.f32 %v3788, 0.0
  %v3868 = vmax.f32 %v3790, 0.0
  %v3869 = vmax.f32 %v3859, 0.0
  %v3870 = vmax.f32 %v3861, 0.0
  %v3871 = vmul.f32 %v3863, %v1512
  %v3872 = vmul.f32 %v3864, %v1516
  %v3873 = vmul.f32 %v3865, %v1520
  %v3874 = vmul.f32 %v3866, %v1524
  %v3875 = vmul.f32 %v3867, %v1528
  %v3876 = vmul.f32 %v3868, %v1532
  %v3877 = vmul.f32 %v3869, %v1536
  %v3878 = vmul.f32 %v3870, %v1540
  %v3879 = vadd.f32 %v3871, %v3873
  %v3880 = vadd.f32 %v3872, %v3874
  %v3881 = vadd.f32 %v3879, %v3875
  %v3882 = vadd.f32 %v3880, %v3876
  %v3883 = vadd.f32 %v3881, %v3877
  %v3884 = vadd.f32 %v3882, %v3878
  %3885 = vadd.xlane.f32.xlu0 %v3883
  %v3886 = vpop.xlane.xlu0 %3885
  %3887 = vadd.xlane.f32.xlu0 %v3884
  %v3888 = vpop.xlane.xlu0 %3887
  %v3889 = vadd.f32 %v1197, %v3886
  %v3890 = vadd.f32 %v1213, %v3888
  %v3891 = vmax.f32 %v3889, %v3890
  %v3892 = vsub.f32 %v3889, %v3891
  %v3893 = vmul.f32 %v3892, 1.442695
  %v3894 = vpow.pop %v3893
  %v3895 = vsub.f32 %v3890, %v3891
  %v3896 = vmul.f32 %v3895, 1.442695
  %v3897 = vpow.pop %v3896
  %v3898 = vadd.f32 %v3894, %v3897
  %v3899 = vrcp.pop %v3898
  %v3900 = vmul.f32 %v3894, %v3899
  %v3901 = vmul.f32 %v3897, %v3899
  %v3902 = vadd.f32 %v618, %v3646
  %v3903 = vadd.f32 %v620, %v3648
  %v3904 = vadd.f32 %v731, %v3717
  %v3905 = vadd.f32 %v733, %v3719
  %v3906 = vadd.f32 %v844, %v3788
  %v3907 = vadd.f32 %v846, %v3790
  %v3908 = vadd.f32 %v957, %v3859
  %v3909 = vadd.f32 %v959, %v3861
  %v3910 = vxor.u32 %v3902, 2147483648
  %v3911 = vxor.u32 %v3903, 2147483648
  %v3912 = vxor.u32 %v3904, 2147483648
  %v3913 = vxor.u32 %v3905, 2147483648
  %v3914 = vxor.u32 %v3906, 2147483648
  %v3915 = vxor.u32 %v3907, 2147483648
  %v3916 = vmul.f32 %v3910, 1.442695
  %v3917 = vpow.pop %v3916
  %v3918 = vmul.f32 %v3911, 1.442695
  %v3919 = vpow.pop %v3918
  %v3920 = vmul.f32 %v3912, 1.442695
  %v3921 = vpow.pop %v3920
  %v3922 = vmul.f32 %v3913, 1.442695
  %v3923 = vpow.pop %v3922
  %v3924 = vmul.f32 %v3914, 1.442695
  %v3925 = vpow.pop %v3924
  %v3926 = vmul.f32 %v3915, 1.442695
  %v3927 = vpow.pop %v3926
  %v3928 = vadd.f32 %v3917, 1.0
  %v3929 = vadd.f32 %v3919, 1.0
  %v3930 = vadd.f32 %v3921, 1.0
  %v3931 = vadd.f32 %v3923, 1.0
  %v3932 = vadd.f32 %v3925, 1.0
  %v3933 = vadd.f32 %v3927, 1.0
  %v3934 = vrcp.pop %v3928
  %v3935 = vmul.f32 1.0, %v3934
  %v3936 = vrcp.pop %v3929
  %v3937 = vmul.f32 1.0, %v3936
  %v3938 = vrcp.pop %v3930
  %v3939 = vmul.f32 1.0, %v3938
  %v3940 = vrcp.pop %v3931
  %v3941 = vmul.f32 1.0, %v3940
  %v3942 = vrcp.pop %v3932
  %v3943 = vmul.f32 1.0, %v3942
  %v3944 = vrcp.pop %v3933
  %v3945 = vmul.f32 1.0, %v3944
  %v3946 = vtanh.pop %v3908
  %v3947 = vtanh.pop %v3909
  %v3948 = vmul.f32 %v3576, %v3939
  %v3949 = vmul.f32 %v3935, %v3946
  %v3950 = vadd.f32 %v3948, %v3949
  %v3951 = vtanh.pop %v3950
  %v3952 = vmul.f32 %v3943, %v3951
  %v3953 = vmul.f32 %v3950, %v3900
  %v3954 = vadd.f32 %v3953, 0.0
  %v3955 = vmul.f32 %v3952, %v3900
  %v3956 = vadd.f32 %v3955, 0.0
  %v3957 = vmul.f32 %v3576, %v3941
  %v3958 = vmul.f32 %v3937, %v3947
  %v3959 = vadd.f32 %v3957, %v3958
  %v3960 = vtanh.pop %v3959
  %v3961 = vmul.f32 %v3945, %v3960
  %v3962 = vmul.f32 %v3959, %v3901
  %v3963 = vadd.f32 %v3954, %v3962
  %v3964 = vmul.f32 %v3961, %v3901
  %v3965 = vadd.f32 %v3956, %v3964
  %3966 = vmatprep.subr.mxu0 %v192
  %3967 = vmatpush1.msra.mxu0 %v191
  %3968 = vmatprep.subr.mxu0 %v184
  %3969 = vmatpush1.msra.mxu0 %v183
  %3970 = vmatprep.subr.mxu0 %v176
  %3971 = vmatpush1.msra.mxu0 %v175
  %3972 = vmatprep.subr.mxu0 %v168
  %3973 = vmatpush1.msra.mxu0 %v167
  %3974 = vmatprep.subr.mxu0 %v160
  %3975 = vmatpush1.msra.mxu0 %v159
  %3976 = vmatprep.subr.mxu0 %v152
  %3977 = vmatpush1.msra.mxu0 %v151
  %3978 = vmatprep.subr.mxu0 %v144
  %3979 = vmatpush1.msra.mxu0 %v143
  %3980 = vmatprep.subr.mxu0 %v136
  %3981 = vmatpush1.msra.mxu0 %v135
  %3982 = vmatprep.subr.mxu0 %v128
  %3983 = vmatpush1.msra.mxu0 %v127
  %3984 = vmatprep.subr.mxu0 %v120
  %3985 = vmatpush1.msra.mxu0 %v119
  %3986 = vmatprep.subr.mxu0 %v112
  %3987 = vmatpush1.msra.mxu0 %v111
  %3988 = vmatprep.subr.mxu0 %v104
  %3989 = vmatpush1.msra.mxu0 %v103
  %3990 = vmatprep.subr.mxu0 %v96
  %3991 = vmatpush1.msra.mxu0 %v95
  %3992 = vmatprep.subr.mxu0 %v88
  %3993 = vmatpush1.msra.mxu0 %v87
  %3994 = vmatprep.subr.mxu0 %v80
  %3995 = vmatpush1.msra.mxu0 %v79
  %3996 = vmatprep.subr.mxu0 %v72
  %3997 = vmatpush1.msra.mxu0 %v71
  %3998 = vmatprep.subr.mxu0 0.0
  %3999 = vmatpush2.msra.mxu0 0.0
  %4000 = vmatprep.subr.mxu0 0.0
  %4001 = vmatpush2.msra.mxu0 0.0
  %4002 = vmatprep.subr.mxu0 0.0
  %4003 = vmatpush2.msra.mxu0 0.0
  %4004 = vmatprep.subr.mxu0 0.0
  %4005 = vmatpush2.msra.mxu0 0.0
  %4006 = vmatprep.subr.mxu0 0.0
  %4007 = vmatpush2.msra.mxu0 0.0
  %4008 = vmatprep.subr.mxu0 0.0
  %4009 = vmatpush2.msra.mxu0 0.0
  %4010 = vmatprep.subr.mxu0 0.0
  %4011 = vmatpush2.msra.mxu0 0.0
  %4012 = vmatprep.subr.mxu0 0.0
  %4013 = vmatpush2.msra.mxu0 0.0
  %4014 = vmatprep.subr.mxu0 0.0
  %4015 = vmatpush2.msra.mxu0 0.0
  %4016 = vmatprep.subr.mxu0 0.0
  %4017 = vmatpush2.msra.mxu0 0.0
  %4018 = vmatprep.subr.mxu0 0.0
  %4019 = vmatpush2.msra.mxu0 0.0
  %4020 = vmatprep.subr.mxu0 0.0
  %4021 = vmatpush2.msra.mxu0 0.0
  %4022 = vmatprep.subr.mxu0 0.0
  %4023 = vmatpush2.msra.mxu0 0.0
  %4024 = vmatprep.subr.mxu0 0.0
  %4025 = vmatpush2.msra.mxu0 0.0
  %4026 = vmatprep.subr.mxu0 0.0
  %4027 = vmatpush2.msra.mxu0 0.0
  %4028 = vmatprep.subr.mxu0 0.0
  %4029 = vmatpush2.msra.mxu0 0.0
  %4030 = vmatprep.mubr.f32.mxu0 0.0
  %4031 = vmatmul.mubr.f32.gmra.mxu0 %v3965
  %v4032 = vpop.f32.mrf.mxu0
  %v4033 = vadd.f32 0.0, %v4032
  %v4034 = vpop.f32.mrf.mxu0
  %v4035 = vadd.f32 0.0, %v4034
  %4036 = vdwg.mxu0
  %4037 = vmatprep.subr.mxu0 %v194
  %4038 = vmatpush1.msra.mxu0 %v193
  %4039 = vmatprep.subr.mxu0 %v186
  %4040 = vmatpush1.msra.mxu0 %v185
  %4041 = vmatprep.subr.mxu0 %v178
  %4042 = vmatpush1.msra.mxu0 %v177
  %4043 = vmatprep.subr.mxu0 %v170
  %4044 = vmatpush1.msra.mxu0 %v169
  %4045 = vmatprep.subr.mxu0 %v162
  %4046 = vmatpush1.msra.mxu0 %v161
  %4047 = vmatprep.subr.mxu0 %v154
  %4048 = vmatpush1.msra.mxu0 %v153
  %4049 = vmatprep.subr.mxu0 %v146
  %4050 = vmatpush1.msra.mxu0 %v145
  %4051 = vmatprep.subr.mxu0 %v138
  %4052 = vmatpush1.msra.mxu0 %v137
  %4053 = vmatprep.subr.mxu0 %v130
  %4054 = vmatpush1.msra.mxu0 %v129
  %4055 = vmatprep.subr.mxu0 %v122
  %4056 = vmatpush1.msra.mxu0 %v121
  %4057 = vmatprep.subr.mxu0 %v114
  %4058 = vmatpush1.msra.mxu0 %v113
  %4059 = vmatprep.subr.mxu0 %v106
  %4060 = vmatpush1.msra.mxu0 %v105
  %4061 = vmatprep.subr.mxu0 %v98
  %4062 = vmatpush1.msra.mxu0 %v97
  %4063 = vmatprep.subr.mxu0 %v90
  %4064 = vmatpush1.msra.mxu0 %v89
  %4065 = vmatprep.subr.mxu0 %v82
  %4066 = vmatpush1.msra.mxu0 %v81
  %4067 = vmatprep.subr.mxu0 %v74
  %4068 = vmatpush1.msra.mxu0 %v73
  %4069 = vmatprep.subr.mxu0 0.0
  %4070 = vmatpush2.msra.mxu0 0.0
  %4071 = vmatprep.subr.mxu0 0.0
  %4072 = vmatpush2.msra.mxu0 0.0
  %4073 = vmatprep.subr.mxu0 0.0
  %4074 = vmatpush2.msra.mxu0 0.0
  %4075 = vmatprep.subr.mxu0 0.0
  %4076 = vmatpush2.msra.mxu0 0.0
  %4077 = vmatprep.subr.mxu0 0.0
  %4078 = vmatpush2.msra.mxu0 0.0
  %4079 = vmatprep.subr.mxu0 0.0
  %4080 = vmatpush2.msra.mxu0 0.0
  %4081 = vmatprep.subr.mxu0 0.0
  %4082 = vmatpush2.msra.mxu0 0.0
  %4083 = vmatprep.subr.mxu0 0.0
  %4084 = vmatpush2.msra.mxu0 0.0
  %4085 = vmatprep.subr.mxu0 0.0
  %4086 = vmatpush2.msra.mxu0 0.0
  %4087 = vmatprep.subr.mxu0 0.0
  %4088 = vmatpush2.msra.mxu0 0.0
  %4089 = vmatprep.subr.mxu0 0.0
  %4090 = vmatpush2.msra.mxu0 0.0
  %4091 = vmatprep.subr.mxu0 0.0
  %4092 = vmatpush2.msra.mxu0 0.0
  %4093 = vmatprep.subr.mxu0 0.0
  %4094 = vmatpush2.msra.mxu0 0.0
  %4095 = vmatprep.subr.mxu0 0.0
  %4096 = vmatpush2.msra.mxu0 0.0
  %4097 = vmatprep.subr.mxu0 0.0
  %4098 = vmatpush2.msra.mxu0 0.0
  %4099 = vmatprep.subr.mxu0 0.0
  %4100 = vmatpush2.msra.mxu0 0.0
  %4101 = vmatprep.mubr.f32.mxu0 0.0
  %4102 = vmatmul.mubr.f32.gmra.mxu0 %v3965
  %v4103 = vpop.f32.mrf.mxu0
  %v4104 = vadd.f32 0.0, %v4103
  %v4105 = vpop.f32.mrf.mxu0
  %v4106 = vadd.f32 0.0, %v4105
  %4107 = vdwg.mxu0
  %4108 = vmatprep.subr.mxu0 %v196
  %4109 = vmatpush1.msra.mxu0 %v195
  %4110 = vmatprep.subr.mxu0 %v188
  %4111 = vmatpush1.msra.mxu0 %v187
  %4112 = vmatprep.subr.mxu0 %v180
  %4113 = vmatpush1.msra.mxu0 %v179
  %4114 = vmatprep.subr.mxu0 %v172
  %4115 = vmatpush1.msra.mxu0 %v171
  %4116 = vmatprep.subr.mxu0 %v164
  %4117 = vmatpush1.msra.mxu0 %v163
  %4118 = vmatprep.subr.mxu0 %v156
  %4119 = vmatpush1.msra.mxu0 %v155
  %4120 = vmatprep.subr.mxu0 %v148
  %4121 = vmatpush1.msra.mxu0 %v147
  %4122 = vmatprep.subr.mxu0 %v140
  %4123 = vmatpush1.msra.mxu0 %v139
  %4124 = vmatprep.subr.mxu0 %v132
  %4125 = vmatpush1.msra.mxu0 %v131
  %4126 = vmatprep.subr.mxu0 %v124
  %4127 = vmatpush1.msra.mxu0 %v123
  %4128 = vmatprep.subr.mxu0 %v116
  %4129 = vmatpush1.msra.mxu0 %v115
  %4130 = vmatprep.subr.mxu0 %v108
  %4131 = vmatpush1.msra.mxu0 %v107
  %4132 = vmatprep.subr.mxu0 %v100
  %4133 = vmatpush1.msra.mxu0 %v99
  %4134 = vmatprep.subr.mxu0 %v92
  %4135 = vmatpush1.msra.mxu0 %v91
  %4136 = vmatprep.subr.mxu0 %v84
  %4137 = vmatpush1.msra.mxu0 %v83
  %4138 = vmatprep.subr.mxu0 %v76
  %4139 = vmatpush1.msra.mxu0 %v75
  %4140 = vmatprep.subr.mxu0 0.0
  %4141 = vmatpush2.msra.mxu0 0.0
  %4142 = vmatprep.subr.mxu0 0.0
  %4143 = vmatpush2.msra.mxu0 0.0
  %4144 = vmatprep.subr.mxu0 0.0
  %4145 = vmatpush2.msra.mxu0 0.0
  %4146 = vmatprep.subr.mxu0 0.0
  %4147 = vmatpush2.msra.mxu0 0.0
  %4148 = vmatprep.subr.mxu0 0.0
  %4149 = vmatpush2.msra.mxu0 0.0
  %4150 = vmatprep.subr.mxu0 0.0
  %4151 = vmatpush2.msra.mxu0 0.0
  %4152 = vmatprep.subr.mxu0 0.0
  %4153 = vmatpush2.msra.mxu0 0.0
  %4154 = vmatprep.subr.mxu0 0.0
  %4155 = vmatpush2.msra.mxu0 0.0
  %4156 = vmatprep.subr.mxu0 0.0
  %4157 = vmatpush2.msra.mxu0 0.0
  %4158 = vmatprep.subr.mxu0 0.0
  %4159 = vmatpush2.msra.mxu0 0.0
  %4160 = vmatprep.subr.mxu0 0.0
  %4161 = vmatpush2.msra.mxu0 0.0
  %4162 = vmatprep.subr.mxu0 0.0
  %4163 = vmatpush2.msra.mxu0 0.0
  %4164 = vmatprep.subr.mxu0 0.0
  %4165 = vmatpush2.msra.mxu0 0.0
  %4166 = vmatprep.subr.mxu0 0.0
  %4167 = vmatpush2.msra.mxu0 0.0
  %4168 = vmatprep.subr.mxu0 0.0
  %4169 = vmatpush2.msra.mxu0 0.0
  %4170 = vmatprep.subr.mxu0 0.0
  %4171 = vmatpush2.msra.mxu0 0.0
  %4172 = vmatprep.mubr.f32.mxu0 0.0
  %4173 = vmatmul.mubr.f32.gmra.mxu0 %v3965
  %v4174 = vpop.f32.mrf.mxu0
  %v4175 = vadd.f32 0.0, %v4174
  %v4176 = vpop.f32.mrf.mxu0
  %v4177 = vadd.f32 0.0, %v4176
  %4178 = vdwg.mxu0
  %4179 = vmatprep.subr.mxu0 %v198
  %4180 = vmatpush1.msra.mxu0 %v197
  %4181 = vmatprep.subr.mxu0 %v190
  %4182 = vmatpush1.msra.mxu0 %v189
  %4183 = vmatprep.subr.mxu0 %v182
  %4184 = vmatpush1.msra.mxu0 %v181
  %4185 = vmatprep.subr.mxu0 %v174
  %4186 = vmatpush1.msra.mxu0 %v173
  %4187 = vmatprep.subr.mxu0 %v166
  %4188 = vmatpush1.msra.mxu0 %v165
  %4189 = vmatprep.subr.mxu0 %v158
  %4190 = vmatpush1.msra.mxu0 %v157
  %4191 = vmatprep.subr.mxu0 %v150
  %4192 = vmatpush1.msra.mxu0 %v149
  %4193 = vmatprep.subr.mxu0 %v142
  %4194 = vmatpush1.msra.mxu0 %v141
  %4195 = vmatprep.subr.mxu0 %v134
  %4196 = vmatpush1.msra.mxu0 %v133
  %4197 = vmatprep.subr.mxu0 %v126
  %4198 = vmatpush1.msra.mxu0 %v125
  %4199 = vmatprep.subr.mxu0 %v118
  %4200 = vmatpush1.msra.mxu0 %v117
  %4201 = vmatprep.subr.mxu0 %v110
  %4202 = vmatpush1.msra.mxu0 %v109
  %4203 = vmatprep.subr.mxu0 %v102
  %4204 = vmatpush1.msra.mxu0 %v101
  %4205 = vmatprep.subr.mxu0 %v94
  %4206 = vmatpush1.msra.mxu0 %v93
  %4207 = vmatprep.subr.mxu0 %v86
  %4208 = vmatpush1.msra.mxu0 %v85
  %4209 = vmatprep.subr.mxu0 %v78
  %4210 = vmatpush1.msra.mxu0 %v77
  %4211 = vmatprep.subr.mxu0 0.0
  %4212 = vmatpush2.msra.mxu0 0.0
  %4213 = vmatprep.subr.mxu0 0.0
  %4214 = vmatpush2.msra.mxu0 0.0
  %4215 = vmatprep.subr.mxu0 0.0
  %4216 = vmatpush2.msra.mxu0 0.0
  %4217 = vmatprep.subr.mxu0 0.0
  %4218 = vmatpush2.msra.mxu0 0.0
  %4219 = vmatprep.subr.mxu0 0.0
  %4220 = vmatpush2.msra.mxu0 0.0
  %4221 = vmatprep.subr.mxu0 0.0
  %4222 = vmatpush2.msra.mxu0 0.0
  %4223 = vmatprep.subr.mxu0 0.0
  %4224 = vmatpush2.msra.mxu0 0.0
  %4225 = vmatprep.subr.mxu0 0.0
  %4226 = vmatpush2.msra.mxu0 0.0
  %4227 = vmatprep.subr.mxu0 0.0
  %4228 = vmatpush2.msra.mxu0 0.0
  %4229 = vmatprep.subr.mxu0 0.0
  %4230 = vmatpush2.msra.mxu0 0.0
  %4231 = vmatprep.subr.mxu0 0.0
  %4232 = vmatpush2.msra.mxu0 0.0
  %4233 = vmatprep.subr.mxu0 0.0
  %4234 = vmatpush2.msra.mxu0 0.0
  %4235 = vmatprep.subr.mxu0 0.0
  %4236 = vmatpush2.msra.mxu0 0.0
  %4237 = vmatprep.subr.mxu0 0.0
  %4238 = vmatpush2.msra.mxu0 0.0
  %4239 = vmatprep.subr.mxu0 0.0
  %4240 = vmatpush2.msra.mxu0 0.0
  %4241 = vmatprep.subr.mxu0 0.0
  %4242 = vmatpush2.msra.mxu0 0.0
  %4243 = vmatprep.mubr.f32.mxu0 0.0
  %4244 = vmatmul.mubr.f32.gmra.mxu0 %v3965
  %v4245 = vpop.f32.mrf.mxu0
  %v4246 = vadd.f32 0.0, %v4245
  %v4247 = vpop.f32.mrf.mxu0
  %v4248 = vadd.f32 0.0, %v4247
  %4249 = vdwg.mxu0
  %v4250 = vmax.f32 %v4033, 0.0
  %v4251 = vmax.f32 %v4035, 0.0
  %v4252 = vmax.f32 %v4104, 0.0
  %v4253 = vmax.f32 %v4106, 0.0
  %v4254 = vmax.f32 %v4175, 0.0
  %v4255 = vmax.f32 %v4177, 0.0
  %v4256 = vmax.f32 %v4246, 0.0
  %v4257 = vmax.f32 %v4248, 0.0
  %v4258 = vmul.f32 %v4250, %v1512
  %v4259 = vmul.f32 %v4251, %v1516
  %v4260 = vmul.f32 %v4252, %v1520
  %v4261 = vmul.f32 %v4253, %v1524
  %v4262 = vmul.f32 %v4254, %v1528
  %v4263 = vmul.f32 %v4255, %v1532
  %v4264 = vmul.f32 %v4256, %v1536
  %v4265 = vmul.f32 %v4257, %v1540
  %v4266 = vadd.f32 %v4258, %v4260
  %v4267 = vadd.f32 %v4259, %v4261
  %v4268 = vadd.f32 %v4266, %v4262
  %v4269 = vadd.f32 %v4267, %v4263
  %v4270 = vadd.f32 %v4268, %v4264
  %v4271 = vadd.f32 %v4269, %v4265
  %4272 = vadd.xlane.f32.xlu0 %v4270
  %v4273 = vpop.xlane.xlu0 %4272
  %4274 = vadd.xlane.f32.xlu0 %v4271
  %v4275 = vpop.xlane.xlu0 %4274
  %v4276 = vadd.f32 %v1199, %v4273
  %v4277 = vadd.f32 %v1215, %v4275
  %v4278 = vmax.f32 %v4276, %v4277
  %v4279 = vsub.f32 %v4276, %v4278
  %v4280 = vmul.f32 %v4279, 1.442695
  %v4281 = vpow.pop %v4280
  %v4282 = vsub.f32 %v4277, %v4278
  %v4283 = vmul.f32 %v4282, 1.442695
  %v4284 = vpow.pop %v4283
  %v4285 = vadd.f32 %v4281, %v4284
  %v4286 = vrcp.pop %v4285
  %v4287 = vmul.f32 %v4281, %v4286
  %v4288 = vmul.f32 %v4284, %v4286
  %v4289 = vadd.f32 %v624, %v4033
  %v4290 = vadd.f32 %v626, %v4035
  %v4291 = vadd.f32 %v737, %v4104
  %v4292 = vadd.f32 %v739, %v4106
  %v4293 = vadd.f32 %v850, %v4175
  %v4294 = vadd.f32 %v852, %v4177
  %v4295 = vadd.f32 %v963, %v4246
  %v4296 = vadd.f32 %v965, %v4248
  %v4297 = vxor.u32 %v4289, 2147483648
  %v4298 = vxor.u32 %v4290, 2147483648
  %v4299 = vxor.u32 %v4291, 2147483648
  %v4300 = vxor.u32 %v4292, 2147483648
  %v4301 = vxor.u32 %v4293, 2147483648
  %v4302 = vxor.u32 %v4294, 2147483648
  %v4303 = vmul.f32 %v4297, 1.442695
  %v4304 = vpow.pop %v4303
  %v4305 = vmul.f32 %v4298, 1.442695
  %v4306 = vpow.pop %v4305
  %v4307 = vmul.f32 %v4299, 1.442695
  %v4308 = vpow.pop %v4307
  %v4309 = vmul.f32 %v4300, 1.442695
  %v4310 = vpow.pop %v4309
  %v4311 = vmul.f32 %v4301, 1.442695
  %v4312 = vpow.pop %v4311
  %v4313 = vmul.f32 %v4302, 1.442695
  %v4314 = vpow.pop %v4313
  %v4315 = vadd.f32 %v4304, 1.0
  %v4316 = vadd.f32 %v4306, 1.0
  %v4317 = vadd.f32 %v4308, 1.0
  %v4318 = vadd.f32 %v4310, 1.0
  %v4319 = vadd.f32 %v4312, 1.0
  %v4320 = vadd.f32 %v4314, 1.0
  %v4321 = vrcp.pop %v4315
  %v4322 = vmul.f32 1.0, %v4321
  %v4323 = vrcp.pop %v4316
  %v4324 = vmul.f32 1.0, %v4323
  %v4325 = vrcp.pop %v4317
  %v4326 = vmul.f32 1.0, %v4325
  %v4327 = vrcp.pop %v4318
  %v4328 = vmul.f32 1.0, %v4327
  %v4329 = vrcp.pop %v4319
  %v4330 = vmul.f32 1.0, %v4329
  %v4331 = vrcp.pop %v4320
  %v4332 = vmul.f32 1.0, %v4331
  %v4333 = vtanh.pop %v4295
  %v4334 = vtanh.pop %v4296
  %v4335 = vmul.f32 %v3963, %v4326
  %v4336 = vmul.f32 %v4322, %v4333
  %v4337 = vadd.f32 %v4335, %v4336
  %v4338 = vtanh.pop %v4337
  %v4339 = vmul.f32 %v4330, %v4338
  %v4340 = vmul.f32 %v4339, %v4287
  %v4341 = vadd.f32 %v4340, 0.0
  %v4342 = vmul.f32 %v3963, %v4328
  %v4343 = vmul.f32 %v4324, %v4334
  %v4344 = vadd.f32 %v4342, %v4343
  %v4345 = vtanh.pop %v4344
  %v4346 = vmul.f32 %v4332, %v4345
  %v4347 = vmul.f32 %v4346, %v4288
  %v4348 = vadd.f32 %v4341, %v4347
  %v4349 = vlaneseq
  %v4350 = vshrl.u32 %v4349, 7
  %v4351 = vsub.s32 0, %v4350
  %v4352 = vrot.slane %v18, %v4351
  %4353 = vmatprep.subr.mxu0 0.0
  %4354 = vmatpush1.msra.mxu0 %v38
  %4355 = vmatprep.subr.mxu0 0.0
  %4356 = vmatpush1.msra.mxu0 %v37
  %4357 = vmatprep.subr.mxu0 0.0
  %4358 = vmatpush1.msra.mxu0 %v36
  %4359 = vmatprep.subr.mxu0 0.0
  %4360 = vmatpush1.msra.mxu0 %v35
  %4361 = vmatprep.subr.mxu0 0.0
  %4362 = vmatpush1.msra.mxu0 %v34
  %4363 = vmatprep.subr.mxu0 0.0
  %4364 = vmatpush1.msra.mxu0 %v33
  %4365 = vmatprep.subr.mxu0 0.0
  %4366 = vmatpush1.msra.mxu0 %v32
  %4367 = vmatprep.subr.mxu0 0.0
  %4368 = vmatpush1.msra.mxu0 %v31
  %4369 = vmatprep.subr.mxu0 0.0
  %4370 = vmatpush1.msra.mxu0 %v30
  %4371 = vmatprep.subr.mxu0 0.0
  %4372 = vmatpush1.msra.mxu0 %v29
  %4373 = vmatprep.subr.mxu0 0.0
  %4374 = vmatpush1.msra.mxu0 %v28
  %4375 = vmatprep.subr.mxu0 0.0
  %4376 = vmatpush1.msra.mxu0 %v27
  %4377 = vmatprep.subr.mxu0 0.0
  %4378 = vmatpush1.msra.mxu0 %v26
  %4379 = vmatprep.subr.mxu0 0.0
  %4380 = vmatpush1.msra.mxu0 %v25
  %4381 = vmatprep.subr.mxu0 0.0
  %4382 = vmatpush1.msra.mxu0 %v24
  %4383 = vmatprep.subr.mxu0 0.0
  %4384 = vmatpush1.msra.mxu0 %v23
  %4385 = vmatprep.subr.mxu0 0.0
  %4386 = vmatpush2.msra.mxu0 0.0
  %4387 = vmatprep.subr.mxu0 0.0
  %4388 = vmatpush2.msra.mxu0 0.0
  %4389 = vmatprep.subr.mxu0 0.0
  %4390 = vmatpush2.msra.mxu0 0.0
  %4391 = vmatprep.subr.mxu0 0.0
  %4392 = vmatpush2.msra.mxu0 0.0
  %4393 = vmatprep.subr.mxu0 0.0
  %4394 = vmatpush2.msra.mxu0 0.0
  %4395 = vmatprep.subr.mxu0 0.0
  %4396 = vmatpush2.msra.mxu0 0.0
  %4397 = vmatprep.subr.mxu0 0.0
  %4398 = vmatpush2.msra.mxu0 0.0
  %4399 = vmatprep.subr.mxu0 0.0
  %4400 = vmatpush2.msra.mxu0 0.0
  %4401 = vmatprep.subr.mxu0 0.0
  %4402 = vmatpush2.msra.mxu0 0.0
  %4403 = vmatprep.subr.mxu0 0.0
  %4404 = vmatpush2.msra.mxu0 0.0
  %4405 = vmatprep.subr.mxu0 0.0
  %4406 = vmatpush2.msra.mxu0 0.0
  %4407 = vmatprep.subr.mxu0 0.0
  %4408 = vmatpush2.msra.mxu0 0.0
  %4409 = vmatprep.subr.mxu0 0.0
  %4410 = vmatpush2.msra.mxu0 0.0
  %4411 = vmatprep.subr.mxu0 0.0
  %4412 = vmatpush2.msra.mxu0 0.0
  %4413 = vmatprep.subr.mxu0 0.0
  %4414 = vmatpush2.msra.mxu0 0.0
  %4415 = vmatprep.subr.mxu0 0.0
  %4416 = vmatpush2.msra.mxu0 0.0
  %4417 = vmatprep.mubr.f32.mxu0 0.0
  %4418 = vmatmul.mubr.f32.gmra.mxu0 %v1643
  %v4419 = vpop.f32.mrf.mxu0
  %v4420 = vadd.f32 %v4352, %v4419
  %v4421 = vpop.f32.mrf.mxu0
  %4422 = vmatprep.mubr.f32.mxu0 0.0
  %4423 = vmatmul.mubr.f32.gmra.mxu0 %v2030
  %v4424 = vpop.f32.mrf.mxu0
  %v4425 = vadd.f32 %v4352, %v4424
  %v4426 = vpop.f32.mrf.mxu0
  %4427 = vmatprep.mubr.f32.mxu0 0.0
  %4428 = vmatmul.mubr.f32.gmra.mxu0 %v2417
  %v4429 = vpop.f32.mrf.mxu0
  %v4430 = vadd.f32 %v4352, %v4429
  %v4431 = vpop.f32.mrf.mxu0
  %4432 = vmatprep.mubr.f32.mxu0 0.0
  %4433 = vmatmul.mubr.f32.gmra.mxu0 %v2804
  %v4434 = vpop.f32.mrf.mxu0
  %v4435 = vadd.f32 %v4352, %v4434
  %v4436 = vpop.f32.mrf.mxu0
  %4437 = vmatprep.mubr.f32.mxu0 0.0
  %4438 = vmatmul.mubr.f32.gmra.mxu0 %v3191
  %v4439 = vpop.f32.mrf.mxu0
  %v4440 = vadd.f32 %v4352, %v4439
  %v4441 = vpop.f32.mrf.mxu0
  %4442 = vmatprep.mubr.f32.mxu0 0.0
  %4443 = vmatmul.mubr.f32.gmra.mxu0 %v3578
  %v4444 = vpop.f32.mrf.mxu0
  %v4445 = vadd.f32 %v4352, %v4444
  %v4446 = vpop.f32.mrf.mxu0
  %4447 = vmatprep.mubr.f32.mxu0 0.0
  %4448 = vmatmul.mubr.f32.gmra.mxu0 %v3965
  %v4449 = vpop.f32.mrf.mxu0
  %v4450 = vadd.f32 %v4352, %v4449
  %v4451 = vpop.f32.mrf.mxu0
  %4452 = vmatprep.mubr.f32.mxu0 0.0
  %4453 = vmatmul.mubr.f32.gmra.mxu0 %v4348
  %v4454 = vpop.f32.mrf.mxu0
  %v4455 = vadd.f32 %v4352, %v4454
  %v4456 = vpop.f32.mrf.mxu0
  %4457 = vdwg.mxu0
  %v4458 = vmax.f32 %v4420, 0.0
  %v4459 = vmax.f32 %v4425, 0.0
  %v4460 = vmax.f32 %v4430, 0.0
  %v4461 = vmax.f32 %v4435, 0.0
  %v4462 = vmax.f32 %v4440, 0.0
  %v4463 = vmax.f32 %v4445, 0.0
  %v4464 = vmax.f32 %v4450, 0.0
  %v4465 = vmax.f32 %v4455, 0.0
  %v4466 = vlaneseq
  %v4467 = vshrl.u32 %v4466, 7
  %v4468 = vsub.s32 0, %v4467
  %v4469 = vrot.slane %v19, %v4468
  %4470 = vmatprep.subr.mxu0 0.0
  %4471 = vmatpush1.msra.mxu0 %v54
  %4472 = vmatprep.subr.mxu0 0.0
  %4473 = vmatpush1.msra.mxu0 %v53
  %4474 = vmatprep.subr.mxu0 0.0
  %4475 = vmatpush1.msra.mxu0 %v52
  %4476 = vmatprep.subr.mxu0 0.0
  %4477 = vmatpush1.msra.mxu0 %v51
  %4478 = vmatprep.subr.mxu0 0.0
  %4479 = vmatpush1.msra.mxu0 %v50
  %4480 = vmatprep.subr.mxu0 0.0
  %4481 = vmatpush1.msra.mxu0 %v49
  %4482 = vmatprep.subr.mxu0 0.0
  %4483 = vmatpush1.msra.mxu0 %v48
  %4484 = vmatprep.subr.mxu0 0.0
  %4485 = vmatpush1.msra.mxu0 %v47
  %4486 = vmatprep.subr.mxu0 0.0
  %4487 = vmatpush1.msra.mxu0 %v46
  %4488 = vmatprep.subr.mxu0 0.0
  %4489 = vmatpush1.msra.mxu0 %v45
  %4490 = vmatprep.subr.mxu0 0.0
  %4491 = vmatpush1.msra.mxu0 %v44
  %4492 = vmatprep.subr.mxu0 0.0
  %4493 = vmatpush1.msra.mxu0 %v43
  %4494 = vmatprep.subr.mxu0 0.0
  %4495 = vmatpush1.msra.mxu0 %v42
  %4496 = vmatprep.subr.mxu0 0.0
  %4497 = vmatpush1.msra.mxu0 %v41
  %4498 = vmatprep.subr.mxu0 0.0
  %4499 = vmatpush1.msra.mxu0 %v40
  %4500 = vmatprep.subr.mxu0 0.0
  %4501 = vmatpush1.msra.mxu0 %v39
  %4502 = vmatprep.subr.mxu0 0.0
  %4503 = vmatpush2.msra.mxu0 0.0
  %4504 = vmatprep.subr.mxu0 0.0
  %4505 = vmatpush2.msra.mxu0 0.0
  %4506 = vmatprep.subr.mxu0 0.0
  %4507 = vmatpush2.msra.mxu0 0.0
  %4508 = vmatprep.subr.mxu0 0.0
  %4509 = vmatpush2.msra.mxu0 0.0
  %4510 = vmatprep.subr.mxu0 0.0
  %4511 = vmatpush2.msra.mxu0 0.0
  %4512 = vmatprep.subr.mxu0 0.0
  %4513 = vmatpush2.msra.mxu0 0.0
  %4514 = vmatprep.subr.mxu0 0.0
  %4515 = vmatpush2.msra.mxu0 0.0
  %4516 = vmatprep.subr.mxu0 0.0
  %4517 = vmatpush2.msra.mxu0 0.0
  %4518 = vmatprep.subr.mxu0 0.0
  %4519 = vmatpush2.msra.mxu0 0.0
  %4520 = vmatprep.subr.mxu0 0.0
  %4521 = vmatpush2.msra.mxu0 0.0
  %4522 = vmatprep.subr.mxu0 0.0
  %4523 = vmatpush2.msra.mxu0 0.0
  %4524 = vmatprep.subr.mxu0 0.0
  %4525 = vmatpush2.msra.mxu0 0.0
  %4526 = vmatprep.subr.mxu0 0.0
  %4527 = vmatpush2.msra.mxu0 0.0
  %4528 = vmatprep.subr.mxu0 0.0
  %4529 = vmatpush2.msra.mxu0 0.0
  %4530 = vmatprep.subr.mxu0 0.0
  %4531 = vmatpush2.msra.mxu0 0.0
  %4532 = vmatprep.subr.mxu0 0.0
  %4533 = vmatpush2.msra.mxu0 0.0
  %4534 = vmatprep.mubr.f32.mxu0 0.0
  %4535 = vmatmul.mubr.f32.gmra.mxu0 %v4458
  %v4536 = vpop.f32.mrf.mxu0
  %v4537 = vadd.f32 %v4469, %v4536
  %v4538 = vpop.f32.mrf.mxu0
  %4539 = vmatprep.mubr.f32.mxu0 0.0
  %4540 = vmatmul.mubr.f32.gmra.mxu0 %v4459
  %v4541 = vpop.f32.mrf.mxu0
  %v4542 = vadd.f32 %v4469, %v4541
  %v4543 = vpop.f32.mrf.mxu0
  %4544 = vmatprep.mubr.f32.mxu0 0.0
  %4545 = vmatmul.mubr.f32.gmra.mxu0 %v4460
  %v4546 = vpop.f32.mrf.mxu0
  %v4547 = vadd.f32 %v4469, %v4546
  %v4548 = vpop.f32.mrf.mxu0
  %4549 = vmatprep.mubr.f32.mxu0 0.0
  %4550 = vmatmul.mubr.f32.gmra.mxu0 %v4461
  %v4551 = vpop.f32.mrf.mxu0
  %v4552 = vadd.f32 %v4469, %v4551
  %v4553 = vpop.f32.mrf.mxu0
  %4554 = vmatprep.mubr.f32.mxu0 0.0
  %4555 = vmatmul.mubr.f32.gmra.mxu0 %v4462
  %v4556 = vpop.f32.mrf.mxu0
  %v4557 = vadd.f32 %v4469, %v4556
  %v4558 = vpop.f32.mrf.mxu0
  %4559 = vmatprep.mubr.f32.mxu0 0.0
  %4560 = vmatmul.mubr.f32.gmra.mxu0 %v4463
  %v4561 = vpop.f32.mrf.mxu0
  %v4562 = vadd.f32 %v4469, %v4561
  %v4563 = vpop.f32.mrf.mxu0
  %4564 = vmatprep.mubr.f32.mxu0 0.0
  %4565 = vmatmul.mubr.f32.gmra.mxu0 %v4464
  %v4566 = vpop.f32.mrf.mxu0
  %v4567 = vadd.f32 %v4469, %v4566
  %v4568 = vpop.f32.mrf.mxu0
  %4569 = vmatprep.mubr.f32.mxu0 0.0
  %4570 = vmatmul.mubr.f32.gmra.mxu0 %v4465
  %v4571 = vpop.f32.mrf.mxu0
  %v4572 = vadd.f32 %v4469, %v4571
  %v4573 = vpop.f32.mrf.mxu0
  %4574 = vdwg.mxu0
  %vm4575 = vcmask 31744
  %4576 = vst.msk [vmem:[%s3] sm:$0xff] %vm4575, %v4537
  %4577 = vst.msk [vmem:[%s3 + $0x8] sm:$0xff] %vm4575, %v4542
  %4578 = vst.msk [vmem:[%s3 + $0x10] sm:$0xff] %vm4575, %v4547
  %4579 = vst.msk [vmem:[%s3 + $0x18] sm:$0xff] %vm4575, %v4552
  %4580 = vst.msk [vmem:[%s3 + $0x20] sm:$0xff] %vm4575, %v4557
  %4581 = vst.msk [vmem:[%s3 + $0x28] sm:$0xff] %vm4575, %v4562
  %4582 = vst.msk [vmem:[%s3 + $0x30] sm:$0xff] %vm4575, %v4567
  %4583 = vst.msk [vmem:[%s3 + $0x38] sm:$0xff] %vm4575, %v4572
  %4592 = vrot.lane.b32.xlu0 %v1579, 1
  %v4593 = vpop.permute.xlu0 %4592
  %4594 = vrot.lane.b32.xlu0 %v1966, 1
  %v4595 = vpop.permute.xlu0 %4594
  %4596 = vrot.lane.b32.xlu0 %v2353, 1
  %v4597 = vpop.permute.xlu0 %4596
  %4598 = vrot.lane.b32.xlu0 %v2740, 1
  %v4599 = vpop.permute.xlu0 %4598
  %4600 = vrot.lane.b32.xlu0 %v3127, 1
  %v4601 = vpop.permute.xlu0 %4600
  %4602 = vrot.lane.b32.xlu0 %v3514, 1
  %v4603 = vpop.permute.xlu0 %4602
  %4604 = vrot.lane.b32.xlu0 %v3901, 1
  %v4605 = vpop.permute.xlu0 %4604
  %4606 = vrot.lane.b32.xlu0 %v4288, 1
  %v4607 = vpop.permute.xlu0 %4606
  %vm4616 = vcmask 7168
  %v4617 = vsel %vm4616, %v1578, %v4593
  %v4618 = vsel %vm4616, %v1965, %v4595
  %v4619 = vsel %vm4616, %v2352, %v4597
  %v4620 = vsel %vm4616, %v2739, %v4599
  %v4621 = vsel %vm4616, %v3126, %v4601
  %v4622 = vsel %vm4616, %v3513, %v4603
  %v4623 = vsel %vm4616, %v3900, %v4605
  %v4624 = vsel %vm4616, %v4287, %v4607
  %vm4625 = vcmask 15360
  %4626 = vst.msk [vmem:[%s4] sm:$0xff] %vm4625, %v4617
  %4627 = vst.msk [vmem:[%s4 + $0x8] sm:$0xff] %vm4625, %v4618
  %4628 = vst.msk [vmem:[%s4 + $0x10] sm:$0xff] %vm4625, %v4619
  %4629 = vst.msk [vmem:[%s4 + $0x18] sm:$0xff] %vm4625, %v4620
  %4630 = vst.msk [vmem:[%s4 + $0x20] sm:$0xff] %vm4625, %v4621
  %4631 = vst.msk [vmem:[%s4 + $0x28] sm:$0xff] %vm4625, %v4622
  %4632 = vst.msk [vmem:[%s4 + $0x30] sm:$0xff] %vm4625, %v4623
  %4633 = vst.msk [vmem:[%s4 + $0x38] sm:$0xff] %vm4625, %v4624
  // Predicated region
  $region14: #{model_forward.1} parent=0 // pred_check
    _
  $region15: #{model_forward.1} parent=0 // pred_check_branch
    %4635 = sbr.rel (0) target = $region17
  $region16: #{model_forward.1} parent=0 // pred_region
    _
  $region17: #{model_forward.1} parent=0 // pred_fallthru
    _
  // Predicated region
  $region18: #{model_forward.1} parent=0 // pred_check
    _
  $region19: #{model_forward.1} parent=0 // pred_check_branch
    %4637 = sbr.rel (0) target = $region21
  $region20: #{model_forward.1} parent=0 // pred_region
    _
  $region21: #{model_forward.1} parent=0 // pred_fallthru
    _
  // Predicated region
  $region22: #{model_forward.1} parent=0 // pred_check
    _
  $region23: #{model_forward.1} parent=0 // pred_check_branch
    %4639 = sbr.rel (0) target = $region25
  $region24: #{model_forward.1} parent=0 // pred_region
    _
  $region25: #{model_forward.1} parent=0 // pred_fallthru
    _
  // Predicated region
  $region26: #{model_forward.1} parent=0 // pred_check
    _
  $region27: #{model_forward.1} parent=0 // pred_check_branch
    %4641 = sbr.rel (0) target = $region29
  $region28: #{model_forward.1} parent=0 // pred_region
    _
  $region29: #{model_forward.1} parent=0 // pred_fallthru
    _

</llo_original>
